<compile_context>
chip_gen: v7x
topology: tpu7x:2x2x1
jax: 0.10.0
libtpu: 0.0.40
codegen_flags: <defaults>
</compile_context>

<pallas_src>
import math

import jax
import jax.numpy as jnp
import numpy as np
from jax import lax
from jax.experimental import pallas as pl
from jax.experimental.pallas import tpu as pltpu


def _round_up(x, m):
    return (x + m - 1) // m * m


# ----------------------------------------------------------------------------
# Fused Pallas kernel: encoder LSTM stack + decoder LSTM stack + fc epilogue
# ----------------------------------------------------------------------------
def _make_fused_kernel(num_layers, T, n_ahead, Bp, H, Dp, Cp):
    G = 4 * H  # gate width, PyTorch layout [i | f | g | o]

    def kernel(*refs):
        # ---- unpack refs: inputs, output, scratch ----
        idx = 0
        x_ref = refs[idx]; idx += 1                        # (T*Bp, Dp)
        enc = []
        for _ in range(num_layers):                        # wih (in,4H), whh (H,4H), b (1,4H)
            enc.append(refs[idx:idx + 3]); idx += 3
        dec0_whh_ref = refs[idx]; dec0_b_ref = refs[idx + 1]; idx += 2
        dec_rest = []
        for _ in range(num_layers - 1):
            dec_rest.append(refs[idx:idx + 3]); idx += 3
        fc_w_ref = refs[idx]; fc_b_ref = refs[idx + 1]; idx += 2
        out_ref = refs[idx]; idx += 1                      # (n_ahead*Bp, Cp)
        gx_ref, seq_ref = refs[idx:idx + 2]                # shared scratches

        # Precomputed (hoisted once, never rebuilt inside a loop) lane mask
        # selecting the g-gate columns of the [i|f|g|o] gate vreg.
        lane = jax.lax.broadcasted_iota(jnp.int32, (Bp, G), 1)
        g_mask = (lane >= 2 * H) & (lane < 3 * H)

        def row(t):
            # sublane-aligned row offset of time step t
            return pl.multiple_of(t * Bp, Bp)

        def gate_reader(t):
            return gx_ref[pl.ds(row(t), Bp), :]

        def seq_writer(t, h):
            seq_ref[pl.ds(row(t), Bp), :] = h

        def no_write(t, h):
            del t, h

        def recurrence(gate_in, whh, h0, c0_full, steps, store):
            """(h, c) carried in vregs; only h @ W_hh on the sequential path.

            c is carried full-gate-width (Bp, 4H) with the valid cell state in
            lane block 0; the i/f/g/o combination uses full-vreg sigmoid/tanh
            plus lane rotations, avoiding per-gate sub-128-lane slices.
            """
            def step(t, carry):
                h, c_full = carry
                gates = gate_in(t) + jnp.dot(
                    h.astype(whh.dtype), whh, preferred_element_type=jnp.float32)
                sig = jax.nn.sigmoid(gates)                  # full (Bp, 4H) EUP push
                th = jnp.tanh(gates)                         # full (Bp, 4H) EUP push
                acts = jnp.where(g_mask, th, sig)            # [i | f | g | o] activated
                # block0 = i * g
                ig = acts * pltpu.roll(acts, shift=2 * H, axis=1)
                # block0 = f * c   (c lives in block0 of c_full)
                fc = pltpu.roll(acts * pltpu.roll(c_full, shift=H, axis=1),
                                shift=3 * H, axis=1)
                c_new = ig + fc                              # block0 = new cell state
                # block0 = o * tanh(c_new)
                h_full = pltpu.roll(acts, shift=H, axis=1) * jnp.tanh(c_new)
                h_new = h_full[:, :H]                        # single offset-0 slice
                store(t, h_new)
                return (h_new, c_new)

            return lax.fori_loop(0, steps, step, (h0, c0_full),
                                 unroll=min(steps, 8))

        zeros_h = jnp.zeros((Bp, H), jnp.float32)
        zeros_c = jnp.zeros((Bp, G), jnp.float32)

        # -------------------- encoder stack --------------------
        Re = T * Bp
        enc_states = []
        for l in range(num_layers):
            wih_ref, whh_ref, b_ref = enc[l]
            xin = x_ref[...] if l == 0 else seq_ref[pl.ds(0, Re), :]
            # Hoisted input projection + bias: ONE batched matmul per layer.
            gx_ref[pl.ds(0, Re), :] = (
                jnp.dot(xin.astype(wih_ref.dtype), wih_ref[...],
                        preferred_element_type=jnp.float32)
                + b_ref[...])
            last = (l == num_layers - 1)
            # The last encoder layer's output sequence is never consumed.
            store = no_write if last else seq_writer
            hN, cN = recurrence(gate_reader, whh_ref[...], zeros_h, zeros_c, T, store)
            enc_states.append((hN, cN))

        # -------------------- decoder stack --------------------
        # Layer 0: inputs are all-zero -> x @ W_ih == 0; only the bias, broadcast
        # once outside the time loop.
        bias0 = jnp.broadcast_to(dec0_b_ref[...], (Bp, G))
        h0d, c0d = enc_states[0]
        recurrence(lambda t: bias0, dec0_whh_ref[...], h0d, c0d, n_ahead, seq_writer)

        Rd = n_ahead * Bp
        for l in range(1, num_layers):
            wih_ref, whh_ref, b_ref = dec_rest[l - 1]
            xin = seq_ref[pl.ds(0, Rd), :]                    # previous decoder layer
            gx_ref[pl.ds(0, Rd), :] = (
                jnp.dot(xin.astype(wih_ref.dtype), wih_ref[...],
                        preferred_element_type=jnp.float32)
                + b_ref[...])
            hl, cl = enc_states[l]
            recurrence(gate_reader, whh_ref[...], hl, cl, n_ahead, seq_writer)

        # ------------- fc epilogue (fused, lane-dense HBM store) -------------
        out_ref[...] = (jnp.dot(seq_ref[pl.ds(0, Rd), :].astype(fc_w_ref.dtype),
                                fc_w_ref[...], preferred_element_type=jnp.float32)
                        + fc_b_ref[...])

    return kernel


# ----------------------------------------------------------------------------
# Wrapper: padding, weight packing, pallas_call
# ----------------------------------------------------------------------------
def lstm_autoencoder_forward(x, enc_params, dec_params, fc_w_t, fc_b, n_ahead,
                             param_dtype=jnp.float32):
    """x: (B, T, input_size) batch_first. Returns (B, n_ahead, num_classes).

    param_dtype=jnp.bfloat16 halves weight VMEM / MXU push bandwidth for
    production sizes (recommended on v6e/v7x); gate math and accumulation
    always stay f32.
    """
    B, T, D = x.shape
    H = enc_params[0]['whh_t'].shape[0]
    C = fc_w_t.shape[1]
    num_layers = len(enc_params)
    assert H % 8 == 0, "hidden_size must be a multiple of 8"

    Bp = _round_up(B, 8)        # sublane-pad batch
    Dp = _round_up(D, 8)        # pad feature dim (contraction) to sublane multiple
    Cp = _round_up(C, 128)      # lane-pad fc output (the only HBM store)

    # time-major, batch/feature-padded, flattened to 2D (T*Bp, Dp)
    x_tm = jnp.transpose(x, (1, 0, 2)).astype(jnp.float32)
    x_p = jnp.zeros((T, Bp, Dp), jnp.float32).at[:, :B, :D].set(x_tm)
    x_p = x_p.reshape(T * Bp, Dp)

    def cast_w(w):
        return w.astype(param_dtype)

    # encoder layer-0 W_ih padded along the (zero-padded) input dim
    wih0 = jnp.zeros((Dp, 4 * H), jnp.float32).at[:D, :].set(enc_params[0]['wih_t'])

    fc_w_p = jnp.zeros((H, Cp), jnp.float32).at[:, :C].set(fc_w_t)
    fc_b_p = jnp.zeros((1, Cp), jnp.float32).at[:, :C].set(fc_b)

    inputs = [x_p]
    for l, p in enumerate(enc_params):
        wih = wih0 if l == 0 else p['wih_t']
        inputs += [cast_w(wih), cast_w(p['whh_t']), p['bias']]
    # decoder layer 0 input is all-zero -> its W_ih is never needed
    inputs += [cast_w(dec_params[0]['whh_t']), dec_params[0]['bias']]
    for p in dec_params[1:]:
        inputs += [cast_w(p['wih_t']), cast_w(p['whh_t']), p['bias']]
    inputs += [cast_w(fc_w_p), fc_b_p]

    def full_spec(shape):
        nd = len(shape)
        return pl.BlockSpec(shape, lambda i, nd=nd: (0,) * nd)

    kernel = _make_fused_kernel(num_layers, T, n_ahead, Bp, H, Dp, Cp)

    # Shared scratches (encoder & decoder reuse them -> peak VMEM halved).
    R = max(T, n_ahead) * Bp
    out_rows = n_ahead * Bp
    scratch_shapes = [
        pltpu.VMEM((R, 4 * H), jnp.float32),   # hoisted gate pre-activations
        pltpu.VMEM((R, H), jnp.float32),       # layer output sequence
    ]

    # Explicit VMEM budget: double-buffered inputs/outputs + scratch + headroom,
    # clamped to the smallest physical VMEM across generations (64 MiB on v7x).
    def nbytes(a):
        return int(np.prod(a.shape)) * jnp.dtype(a.dtype).itemsize
    io_bytes = sum(nbytes(a) for a in inputs) + out_rows * Cp * 4
    scratch_bytes = R * (4 * H + H) * 4
    vmem_limit = int(min(max(2 * io_bytes + scratch_bytes + (8 << 20), 32 << 20),
                         64 << 20))

    out = pl.pallas_call(
        kernel,
        grid=(1,),
        in_specs=[full_spec(a.shape) for a in inputs],
        out_specs=full_spec((out_rows, Cp)),
        out_shape=jax.ShapeDtypeStruct((out_rows, Cp), jnp.float32),
        scratch_shapes=scratch_shapes,
        compiler_params=pltpu.CompilerParams(
            dimension_semantics=("arbitrary",),
            vmem_limit_bytes=vmem_limit),
    )(*inputs)

    out = out.reshape(n_ahead, Bp, Cp)[:, :B, :C]       # (n_ahead, B, C)
    return jnp.transpose(out, (1, 0, 2))                # (B, n_ahead, C)


# ----------------------------------------------------------------------------
# Parameter initialization (matches nn.LSTM / nn.Linear shapes; uniform(-k, k))
# ----------------------------------------------------------------------------
def init_lstm_params(key, input_size, hidden_size, num_layers):
    params = []
    k = 1.0 / math.sqrt(hidden_size)
    for layer in range(num_layers):
        in_dim = input_size if layer == 0 else hidden_size
        key, k1, k2, k3, k4 = jax.random.split(key, 5)
        w_ih = jax.random.uniform(k1, (4 * hidden_size, in_dim), jnp.float32, -k, k)
        w_hh = jax.random.uniform(k2, (4 * hidden_size, hidden_size), jnp.float32, -k, k)
        b_ih = jax.random.uniform(k3, (4 * hidden_size,), jnp.float32, -k, k)
        b_hh = jax.random.uniform(k4, (4 * hidden_size,), jnp.float32, -k, k)
        params.append(dict(wih_t=jnp.asarray(w_ih.T),
                           whh_t=jnp.asarray(w_hh.T),
                           bias=(b_ih + b_hh)[None, :]))
    return key, params


def init_linear_params(key, in_features, out_features):
    k = 1.0 / math.sqrt(in_features)
    key, k1, k2 = jax.random.split(key, 3)
    w = jax.random.uniform(k1, (out_features, in_features), jnp.float32, -k, k)
    b = jax.random.uniform(k2, (out_features,), jnp.float32, -k, k)
    return key, jnp.asarray(w.T), b[None, :]


# ----------------------------------------------------------------------------
# Pure-JAX reference (for correctness check)
# ----------------------------------------------------------------------------
def _ref_lstm_layer(x_tm, h0, c0, wih_t, whh_t, bias):
    H = h0.shape[-1]

    def step(carry, x_t):
        h, c = carry
        gates = x_t @ wih_t + h @ whh_t + bias
        i = jax.nn.sigmoid(gates[:, 0 * H:1 * H])
        f = jax.nn.sigmoid(gates[:, 1 * H:2 * H])
        g = jnp.tanh(gates[:, 2 * H:3 * H])
        o = jax.nn.sigmoid(gates[:, 3 * H:4 * H])
        c = f * c + i * g
        h = o * jnp.tanh(c)
        return (h, c), h

    (hN, cN), ys = lax.scan(step, (h0, c0), x_tm)
    return ys, hN, cN


def ref_forward(x, enc_params, dec_params, fc_w_t, fc_b, n_ahead):
    B, T, _ = x.shape
    H = enc_params[0]['whh_t'].shape[0]
    x_tm = jnp.transpose(x, (1, 0, 2))
    h0 = jnp.zeros((B, H), jnp.float32)
    c0 = jnp.zeros((B, H), jnp.float32)
    hs, cs = [], []
    y = x_tm
    for p in enc_params:
        y, hN, cN = _ref_lstm_layer(y, h0, c0, p['wih_t'], p['whh_t'], p['bias'])
        hs.append(hN)
        cs.append(cN)
    y = jnp.zeros((n_ahead, B, H), jnp.float32)
    for p, hN, cN in zip(dec_params, hs, cs):
        y, _, _ = _ref_lstm_layer(y, hN, cN, p['wih_t'], p['whh_t'], p['bias'])
    out = y.reshape(n_ahead * B, H) @ fc_w_t + fc_b
    return out.reshape(n_ahead, B, -1).transpose(1, 0, 2)


# ----------------------------------------------------------------------------
if __name__ == "__main__":
    # small shapes consistent with LSTMAutoencoder(input_size, hidden, layers, classes, n_ahead)
    batch, seq_len = 2, 8
    input_size, hidden_size, num_layers, num_classes, n_ahead = 4, 32, 2, 3, 5

    key = jax.random.PRNGKey(0)
    key, enc_params = init_lstm_params(key, input_size, hidden_size, num_layers)
    key, dec_params = init_lstm_params(key, hidden_size, hidden_size, num_layers)
    key, fc_w_t, fc_b = init_linear_params(key, hidden_size, num_classes)

    key, kx = jax.random.split(key)
    x = jax.random.normal(kx, (batch, seq_len, input_size), jnp.float32)

    out = lstm_autoencoder_forward(x, enc_params, dec_params, fc_w_t, fc_b, n_ahead)
    out = jax.block_until_ready(out)
    assert out.shape == (batch, n_ahead, num_classes), out.shape

    ref = jax.block_until_ready(
        ref_forward(x, enc_params, dec_params, fc_w_t, fc_b, n_ahead))
    np.testing.assert_allclose(np.asarray(out), np.asarray(ref),
                               rtol=1e-4, atol=1e-4)

    print("KERNEL_OK")
</pallas_src>

<mosaic_0001>
module attributes {stable_mosaic.version = 11 : i64} {
  func.func @kernel(%arg0: i32, %arg1: memref<64x8xf32, #tpu.memory_space<vmem>>, %arg2: memref<8x128xf32, #tpu.memory_space<vmem>>, %arg3: memref<32x128xf32, #tpu.memory_space<vmem>>, %arg4: memref<1x128xf32, #tpu.memory_space<vmem>>, %arg5: memref<32x128xf32, #tpu.memory_space<vmem>>, %arg6: memref<32x128xf32, #tpu.memory_space<vmem>>, %arg7: memref<1x128xf32, #tpu.memory_space<vmem>>, %arg8: memref<32x128xf32, #tpu.memory_space<vmem>>, %arg9: memref<1x128xf32, #tpu.memory_space<vmem>>, %arg10: memref<32x128xf32, #tpu.memory_space<vmem>>, %arg11: memref<32x128xf32, #tpu.memory_space<vmem>>, %arg12: memref<1x128xf32, #tpu.memory_space<vmem>>, %arg13: memref<32x128xf32, #tpu.memory_space<vmem>>, %arg14: memref<1x128xf32, #tpu.memory_space<vmem>>, %arg15: memref<40x128xf32, #tpu.memory_space<vmem>>, %arg16: memref<64x128xf32, #tpu.memory_space<vmem>>, %arg17: memref<64x32xf32, #tpu.memory_space<vmem>>) attributes {dimension_semantics = [#tpu.dimension_semantics<arbitrary>], iteration_bounds = array<i64: 1>, scalar_prefetch = 0 : i64, scratch_operands = 2 : i64, tpu.core_type = #tpu.core_type<tc>, window_params = [{pipeline_mode = #tpu.pipeline_mode<synchronous>, transform_indices = @transform_0, window_bounds = array<i64: 64, 8>}, {pipeline_mode = #tpu.pipeline_mode<synchronous>, transform_indices = @transform_1, window_bounds = array<i64: 8, 128>}, {pipeline_mode = #tpu.pipeline_mode<synchronous>, transform_indices = @transform_2, window_bounds = array<i64: 32, 128>}, {pipeline_mode = #tpu.pipeline_mode<synchronous>, transform_indices = @transform_3, window_bounds = array<i64: 1, 128>}, {pipeline_mode = #tpu.pipeline_mode<synchronous>, transform_indices = @transform_4, window_bounds = array<i64: 32, 128>}, {pipeline_mode = #tpu.pipeline_mode<synchronous>, transform_indices = @transform_5, window_bounds = array<i64: 32, 128>}, {pipeline_mode = #tpu.pipeline_mode<synchronous>, transform_indices = @transform_6, window_bounds = array<i64: 1, 128>}, {pipeline_mode = #tpu.pipeline_mode<synchronous>, transform_indices = @transform_7, window_bounds = array<i64: 32, 128>}, {pipeline_mode = #tpu.pipeline_mode<synchronous>, transform_indices = @transform_8, window_bounds = array<i64: 1, 128>}, {pipeline_mode = #tpu.pipeline_mode<synchronous>, transform_indices = @transform_9, window_bounds = array<i64: 32, 128>}, {pipeline_mode = #tpu.pipeline_mode<synchronous>, transform_indices = @transform_10, window_bounds = array<i64: 32, 128>}, {pipeline_mode = #tpu.pipeline_mode<synchronous>, transform_indices = @transform_11, window_bounds = array<i64: 1, 128>}, {pipeline_mode = #tpu.pipeline_mode<synchronous>, transform_indices = @transform_12, window_bounds = array<i64: 32, 128>}, {pipeline_mode = #tpu.pipeline_mode<synchronous>, transform_indices = @transform_13, window_bounds = array<i64: 1, 128>}, {pipeline_mode = #tpu.pipeline_mode<synchronous>, transform_indices = @transform_14, window_bounds = array<i64: 40, 128>}]} {
    %0 = tpu.iota {dimensions = array<i32: 1>} : vector<8x128xi32>
    %c64_i32 = arith.constant 64 : i32
    %1 = vector.broadcast %c64_i32 : i32 to vector<8x128xi32>
    %2 = arith.cmpi sge, %0, %1 : vector<8x128xi32>
    %c96_i32 = arith.constant 96 : i32
    %3 = vector.broadcast %c96_i32 : i32 to vector<8x128xi32>
    %4 = arith.cmpi slt, %0, %3 : vector<8x128xi32>
    %5 = arith.andi %2, %4 : vector<8x128xi1>
    %cst = arith.constant 0.000000e+00 : f32
    %6 = vector.broadcast %cst : f32 to vector<8x32xf32>
    %cst_0 = arith.constant 0.000000e+00 : f32
    %7 = vector.broadcast %cst_0 : f32 to vector<8x128xf32>
    %c0 = arith.constant 0 : index
    %c0_1 = arith.constant 0 : index
    %8 = vector.load %arg1[%c0, %c0_1] : memref<64x8xf32, #tpu.memory_space<vmem>>, vector<64x8xf32>
    %c0_2 = arith.constant 0 : index
    %c0_3 = arith.constant 0 : index
    %9 = vector.load %arg2[%c0_2, %c0_3] : memref<8x128xf32, #tpu.memory_space<vmem>>, vector<8x128xf32>
    %cst_4 = arith.constant dense<0.000000e+00> : vector<64x128xf32>
    %10 = tpu.matmul %8, %9, %cst_4 {dimension_numbers = #tpu.dot_dimension_numbers<[1], [0], [0], [1], [0, 0, 1, 1], [], []>} : vector<64x8xf32>, vector<8x128xf32>, vector<64x128xf32> -> vector<64x128xf32>
    %c0_5 = arith.constant 0 : index
    %c0_6 = arith.constant 0 : index
    %11 = vector.load %arg4[%c0_5, %c0_6] : memref<1x128xf32, #tpu.memory_space<vmem>>, vector<1x128xf32>
    %12 = vector.broadcast %11 : vector<1x128xf32> to vector<64x128xf32>
    %13 = arith.addf %10, %12 : vector<64x128xf32>
    %c0_7 = arith.constant 0 : index
    %c0_8 = arith.constant 0 : index
    %14 = vector.load %arg16[%c0_7, %c0_8] : memref<64x128xf32, #tpu.memory_space<vmem>>, vector<64x128xf32>
    tpu.vector_store %arg16[%c0_7, %c0_8], %13 {strides = array<i32>} : memref<64x128xf32, #tpu.memory_space<vmem>>, vector<64x128xf32>,
    %c0_9 = arith.constant 0 : index
    %c0_10 = arith.constant 0 : index
    %15 = vector.load %arg3[%c0_9, %c0_10] : memref<32x128xf32, #tpu.memory_space<vmem>>, vector<32x128xf32>
    %c0_i32 = arith.constant 0 : i32
    %c8_i32 = arith.constant 8 : i32
    %16 = arith.muli %c0_i32, %c8_i32 : i32
    %17 = tpu.assume_multiple %16, 8 : i32
    %18 = arith.index_cast %17 : i32 to index
    %c0_11 = arith.constant 0 : index
    %19 = vector.load %arg16[%18, %c0_11] : memref<64x128xf32, #tpu.memory_space<vmem>>, vector<8x128xf32>
    %cst_12 = arith.constant dense<0.000000e+00> : vector<8x128xf32>
    %20 = tpu.matmul %6, %15, %cst_12 {dimension_numbers = #tpu.dot_dimension_numbers<[1], [0], [0], [1], [0, 0, 1, 1], [], []>} : vector<8x32xf32>, vector<32x128xf32>, vector<8x128xf32> -> vector<8x128xf32>
    %21 = arith.addf %19, %20 : vector<8x128xf32>
    %22 = arith.negf %21 : vector<8x128xf32>
    %23 = math.exp %22 : vector<8x128xf32>
    %cst_13 = arith.constant 1.000000e+00 : f32
    %24 = vector.broadcast %cst_13 : f32 to vector<8x128xf32>
    %25 = arith.addf %24, %23 : vector<8x128xf32>
    %26 = arith.divf %24, %25 : vector<8x128xf32>
    %27 = math.tanh %21 : vector<8x128xf32>
    %28 = arith.select %5, %27, %26 : vector<8x128xi1>, vector<8x128xf32>
    %c64_i32_14 = arith.constant 64 : i32
    %29 = tpu.dynamic_rotate %28 by %c64_i32_14 dim 1 : vector<8x128xf32>, i32 -> vector<8x128xf32>
    %30 = arith.mulf %28, %29 : vector<8x128xf32>
    %c32_i32 = arith.constant 32 : i32
    %31 = tpu.dynamic_rotate %7 by %c32_i32 dim 1 : vector<8x128xf32>, i32 -> vector<8x128xf32>
    %32 = arith.mulf %28, %31 : vector<8x128xf32>
    %c96_i32_15 = arith.constant 96 : i32
    %33 = tpu.dynamic_rotate %32 by %c96_i32_15 dim 1 : vector<8x128xf32>, i32 -> vector<8x128xf32>
    %34 = arith.addf %30, %33 : vector<8x128xf32>
    %c32_i32_16 = arith.constant 32 : i32
    %35 = tpu.dynamic_rotate %28 by %c32_i32_16 dim 1 : vector<8x128xf32>, i32 -> vector<8x128xf32>
    %36 = math.tanh %34 : vector<8x128xf32>
    %37 = arith.mulf %35, %36 : vector<8x128xf32>
    %38 = vector.extract_strided_slice %37 {offsets = [0, 0], sizes = [8, 32], strides = [1, 1]} : vector<8x128xf32> to vector<8x32xf32>
    %c8_i32_17 = arith.constant 8 : i32
    %39 = arith.muli %c0_i32, %c8_i32_17 : i32
    %40 = tpu.assume_multiple %39, 8 : i32
    %41 = arith.index_cast %40 : i32 to index
    %c0_18 = arith.constant 0 : index
    %42 = vector.load %arg17[%41, %c0_18] : memref<64x32xf32, #tpu.memory_space<vmem>>, vector<8x32xf32>
    tpu.vector_store %arg17[%41, %c0_18], %38 {strides = array<i32>} : memref<64x32xf32, #tpu.memory_space<vmem>>, vector<8x32xf32>,
    %c1_i32 = arith.constant 1 : i32
    %c8_i32_19 = arith.constant 8 : i32
    %43 = arith.muli %c1_i32, %c8_i32_19 : i32
    %44 = tpu.assume_multiple %43, 8 : i32
    %45 = arith.index_cast %44 : i32 to index
    %c0_20 = arith.constant 0 : index
    %46 = vector.load %arg16[%45, %c0_20] : memref<64x128xf32, #tpu.memory_space<vmem>>, vector<8x128xf32>
    %cst_21 = arith.constant dense<0.000000e+00> : vector<8x128xf32>
    %47 = tpu.matmul %38, %15, %cst_21 {dimension_numbers = #tpu.dot_dimension_numbers<[1], [0], [0], [1], [0, 0, 1, 1], [], []>} : vector<8x32xf32>, vector<32x128xf32>, vector<8x128xf32> -> vector<8x128xf32>
    %48 = arith.addf %46, %47 : vector<8x128xf32>
    %49 = arith.negf %48 : vector<8x128xf32>
    %50 = math.exp %49 : vector<8x128xf32>
    %cst_22 = arith.constant 1.000000e+00 : f32
    %51 = vector.broadcast %cst_22 : f32 to vector<8x128xf32>
    %52 = arith.addf %51, %50 : vector<8x128xf32>
    %53 = arith.divf %51, %52 : vector<8x128xf32>
    %54 = math.tanh %48 : vector<8x128xf32>
    %55 = arith.select %5, %54, %53 : vector<8x128xi1>, vector<8x128xf32>
    %c64_i32_23 = arith.constant 64 : i32
    %56 = tpu.dynamic_rotate %55 by %c64_i32_23 dim 1 : vector<8x128xf32>, i32 -> vector<8x128xf32>
    %57 = arith.mulf %55, %56 : vector<8x128xf32>
    %c32_i32_24 = arith.constant 32 : i32
    %58 = tpu.dynamic_rotate %34 by %c32_i32_24 dim 1 : vector<8x128xf32>, i32 -> vector<8x128xf32>
    %59 = arith.mulf %55, %58 : vector<8x128xf32>
    %c96_i32_25 = arith.constant 96 : i32
    %60 = tpu.dynamic_rotate %59 by %c96_i32_25 dim 1 : vector<8x128xf32>, i32 -> vector<8x128xf32>
    %61 = arith.addf %57, %60 : vector<8x128xf32>
    %c32_i32_26 = arith.constant 32 : i32
    %62 = tpu.dynamic_rotate %55 by %c32_i32_26 dim 1 : vector<8x128xf32>, i32 -> vector<8x128xf32>
    %63 = math.tanh %61 : vector<8x128xf32>
    %64 = arith.mulf %62, %63 : vector<8x128xf32>
    %65 = vector.extract_strided_slice %64 {offsets = [0, 0], sizes = [8, 32], strides = [1, 1]} : vector<8x128xf32> to vector<8x32xf32>
    %c8_i32_27 = arith.constant 8 : i32
    %66 = arith.muli %c1_i32, %c8_i32_27 : i32
    %67 = tpu.assume_multiple %66, 8 : i32
    %68 = arith.index_cast %67 : i32 to index
    %c0_28 = arith.constant 0 : index
    %69 = vector.load %arg17[%68, %c0_28] : memref<64x32xf32, #tpu.memory_space<vmem>>, vector<8x32xf32>
    tpu.vector_store %arg17[%68, %c0_28], %65 {strides = array<i32>} : memref<64x32xf32, #tpu.memory_space<vmem>>, vector<8x32xf32>,
    %c2_i32 = arith.constant 2 : i32
    %c8_i32_29 = arith.constant 8 : i32
    %70 = arith.muli %c2_i32, %c8_i32_29 : i32
    %71 = tpu.assume_multiple %70, 8 : i32
    %72 = arith.index_cast %71 : i32 to index
    %c0_30 = arith.constant 0 : index
    %73 = vector.load %arg16[%72, %c0_30] : memref<64x128xf32, #tpu.memory_space<vmem>>, vector<8x128xf32>
    %cst_31 = arith.constant dense<0.000000e+00> : vector<8x128xf32>
    %74 = tpu.matmul %65, %15, %cst_31 {dimension_numbers = #tpu.dot_dimension_numbers<[1], [0], [0], [1], [0, 0, 1, 1], [], []>} : vector<8x32xf32>, vector<32x128xf32>, vector<8x128xf32> -> vector<8x128xf32>
    %75 = arith.addf %73, %74 : vector<8x128xf32>
    %76 = arith.negf %75 : vector<8x128xf32>
    %77 = math.exp %76 : vector<8x128xf32>
    %cst_32 = arith.constant 1.000000e+00 : f32
    %78 = vector.broadcast %cst_32 : f32 to vector<8x128xf32>
    %79 = arith.addf %78, %77 : vector<8x128xf32>
    %80 = arith.divf %78, %79 : vector<8x128xf32>
    %81 = math.tanh %75 : vector<8x128xf32>
    %82 = arith.select %5, %81, %80 : vector<8x128xi1>, vector<8x128xf32>
    %c64_i32_33 = arith.constant 64 : i32
    %83 = tpu.dynamic_rotate %82 by %c64_i32_33 dim 1 : vector<8x128xf32>, i32 -> vector<8x128xf32>
    %84 = arith.mulf %82, %83 : vector<8x128xf32>
    %c32_i32_34 = arith.constant 32 : i32
    %85 = tpu.dynamic_rotate %61 by %c32_i32_34 dim 1 : vector<8x128xf32>, i32 -> vector<8x128xf32>
    %86 = arith.mulf %82, %85 : vector<8x128xf32>
    %c96_i32_35 = arith.constant 96 : i32
    %87 = tpu.dynamic_rotate %86 by %c96_i32_35 dim 1 : vector<8x128xf32>, i32 -> vector<8x128xf32>
    %88 = arith.addf %84, %87 : vector<8x128xf32>
    %c32_i32_36 = arith.constant 32 : i32
    %89 = tpu.dynamic_rotate %82 by %c32_i32_36 dim 1 : vector<8x128xf32>, i32 -> vector<8x128xf32>
    %90 = math.tanh %88 : vector<8x128xf32>
    %91 = arith.mulf %89, %90 : vector<8x128xf32>
    %92 = vector.extract_strided_slice %91 {offsets = [0, 0], sizes = [8, 32], strides = [1, 1]} : vector<8x128xf32> to vector<8x32xf32>
    %c8_i32_37 = arith.constant 8 : i32
    %93 = arith.muli %c2_i32, %c8_i32_37 : i32
    %94 = tpu.assume_multiple %93, 8 : i32
    %95 = arith.index_cast %94 : i32 to index
    %c0_38 = arith.constant 0 : index
    %96 = vector.load %arg17[%95, %c0_38] : memref<64x32xf32, #tpu.memory_space<vmem>>, vector<8x32xf32>
    tpu.vector_store %arg17[%95, %c0_38], %92 {strides = array<i32>} : memref<64x32xf32, #tpu.memory_space<vmem>>, vector<8x32xf32>,
    %c3_i32 = arith.constant 3 : i32
    %c8_i32_39 = arith.constant 8 : i32
    %97 = arith.muli %c3_i32, %c8_i32_39 : i32
    %98 = tpu.assume_multiple %97, 8 : i32
    %99 = arith.index_cast %98 : i32 to index
    %c0_40 = arith.constant 0 : index
    %100 = vector.load %arg16[%99, %c0_40] : memref<64x128xf32, #tpu.memory_space<vmem>>, vector<8x128xf32>
    %cst_41 = arith.constant dense<0.000000e+00> : vector<8x128xf32>
    %101 = tpu.matmul %92, %15, %cst_41 {dimension_numbers = #tpu.dot_dimension_numbers<[1], [0], [0], [1], [0, 0, 1, 1], [], []>} : vector<8x32xf32>, vector<32x128xf32>, vector<8x128xf32> -> vector<8x128xf32>
    %102 = arith.addf %100, %101 : vector<8x128xf32>
    %103 = arith.negf %102 : vector<8x128xf32>
    %104 = math.exp %103 : vector<8x128xf32>
    %cst_42 = arith.constant 1.000000e+00 : f32
    %105 = vector.broadcast %cst_42 : f32 to vector<8x128xf32>
    %106 = arith.addf %105, %104 : vector<8x128xf32>
    %107 = arith.divf %105, %106 : vector<8x128xf32>
    %108 = math.tanh %102 : vector<8x128xf32>
    %109 = arith.select %5, %108, %107 : vector<8x128xi1>, vector<8x128xf32>
    %c64_i32_43 = arith.constant 64 : i32
    %110 = tpu.dynamic_rotate %109 by %c64_i32_43 dim 1 : vector<8x128xf32>, i32 -> vector<8x128xf32>
    %111 = arith.mulf %109, %110 : vector<8x128xf32>
    %c32_i32_44 = arith.constant 32 : i32
    %112 = tpu.dynamic_rotate %88 by %c32_i32_44 dim 1 : vector<8x128xf32>, i32 -> vector<8x128xf32>
    %113 = arith.mulf %109, %112 : vector<8x128xf32>
    %c96_i32_45 = arith.constant 96 : i32
    %114 = tpu.dynamic_rotate %113 by %c96_i32_45 dim 1 : vector<8x128xf32>, i32 -> vector<8x128xf32>
    %115 = arith.addf %111, %114 : vector<8x128xf32>
    %c32_i32_46 = arith.constant 32 : i32
    %116 = tpu.dynamic_rotate %109 by %c32_i32_46 dim 1 : vector<8x128xf32>, i32 -> vector<8x128xf32>
    %117 = math.tanh %115 : vector<8x128xf32>
    %118 = arith.mulf %116, %117 : vector<8x128xf32>
    %119 = vector.extract_strided_slice %118 {offsets = [0, 0], sizes = [8, 32], strides = [1, 1]} : vector<8x128xf32> to vector<8x32xf32>
    %c8_i32_47 = arith.constant 8 : i32
    %120 = arith.muli %c3_i32, %c8_i32_47 : i32
    %121 = tpu.assume_multiple %120, 8 : i32
    %122 = arith.index_cast %121 : i32 to index
    %c0_48 = arith.constant 0 : index
    %123 = vector.load %arg17[%122, %c0_48] : memref<64x32xf32, #tpu.memory_space<vmem>>, vector<8x32xf32>
    tpu.vector_store %arg17[%122, %c0_48], %119 {strides = array<i32>} : memref<64x32xf32, #tpu.memory_space<vmem>>, vector<8x32xf32>,
    %c4_i32 = arith.constant 4 : i32
    %c8_i32_49 = arith.constant 8 : i32
    %124 = arith.muli %c4_i32, %c8_i32_49 : i32
    %125 = tpu.assume_multiple %124, 8 : i32
    %126 = arith.index_cast %125 : i32 to index
    %c0_50 = arith.constant 0 : index
    %127 = vector.load %arg16[%126, %c0_50] : memref<64x128xf32, #tpu.memory_space<vmem>>, vector<8x128xf32>
    %cst_51 = arith.constant dense<0.000000e+00> : vector<8x128xf32>
    %128 = tpu.matmul %119, %15, %cst_51 {dimension_numbers = #tpu.dot_dimension_numbers<[1], [0], [0], [1], [0, 0, 1, 1], [], []>} : vector<8x32xf32>, vector<32x128xf32>, vector<8x128xf32> -> vector<8x128xf32>
    %129 = arith.addf %127, %128 : vector<8x128xf32>
    %130 = arith.negf %129 : vector<8x128xf32>
    %131 = math.exp %130 : vector<8x128xf32>
    %cst_52 = arith.constant 1.000000e+00 : f32
    %132 = vector.broadcast %cst_52 : f32 to vector<8x128xf32>
    %133 = arith.addf %132, %131 : vector<8x128xf32>
    %134 = arith.divf %132, %133 : vector<8x128xf32>
    %135 = math.tanh %129 : vector<8x128xf32>
    %136 = arith.select %5, %135, %134 : vector<8x128xi1>, vector<8x128xf32>
    %c64_i32_53 = arith.constant 64 : i32
    %137 = tpu.dynamic_rotate %136 by %c64_i32_53 dim 1 : vector<8x128xf32>, i32 -> vector<8x128xf32>
    %138 = arith.mulf %136, %137 : vector<8x128xf32>
    %c32_i32_54 = arith.constant 32 : i32
    %139 = tpu.dynamic_rotate %115 by %c32_i32_54 dim 1 : vector<8x128xf32>, i32 -> vector<8x128xf32>
    %140 = arith.mulf %136, %139 : vector<8x128xf32>
    %c96_i32_55 = arith.constant 96 : i32
    %141 = tpu.dynamic_rotate %140 by %c96_i32_55 dim 1 : vector<8x128xf32>, i32 -> vector<8x128xf32>
    %142 = arith.addf %138, %141 : vector<8x128xf32>
    %c32_i32_56 = arith.constant 32 : i32
    %143 = tpu.dynamic_rotate %136 by %c32_i32_56 dim 1 : vector<8x128xf32>, i32 -> vector<8x128xf32>
    %144 = math.tanh %142 : vector<8x128xf32>
    %145 = arith.mulf %143, %144 : vector<8x128xf32>
    %146 = vector.extract_strided_slice %145 {offsets = [0, 0], sizes = [8, 32], strides = [1, 1]} : vector<8x128xf32> to vector<8x32xf32>
    %c8_i32_57 = arith.constant 8 : i32
    %147 = arith.muli %c4_i32, %c8_i32_57 : i32
    %148 = tpu.assume_multiple %147, 8 : i32
    %149 = arith.index_cast %148 : i32 to index
    %c0_58 = arith.constant 0 : index
    %150 = vector.load %arg17[%149, %c0_58] : memref<64x32xf32, #tpu.memory_space<vmem>>, vector<8x32xf32>
    tpu.vector_store %arg17[%149, %c0_58], %146 {strides = array<i32>} : memref<64x32xf32, #tpu.memory_space<vmem>>, vector<8x32xf32>,
    %c5_i32 = arith.constant 5 : i32
    %c8_i32_59 = arith.constant 8 : i32
    %151 = arith.muli %c5_i32, %c8_i32_59 : i32
    %152 = tpu.assume_multiple %151, 8 : i32
    %153 = arith.index_cast %152 : i32 to index
    %c0_60 = arith.constant 0 : index
    %154 = vector.load %arg16[%153, %c0_60] : memref<64x128xf32, #tpu.memory_space<vmem>>, vector<8x128xf32>
    %cst_61 = arith.constant dense<0.000000e+00> : vector<8x128xf32>
    %155 = tpu.matmul %146, %15, %cst_61 {dimension_numbers = #tpu.dot_dimension_numbers<[1], [0], [0], [1], [0, 0, 1, 1], [], []>} : vector<8x32xf32>, vector<32x128xf32>, vector<8x128xf32> -> vector<8x128xf32>
    %156 = arith.addf %154, %155 : vector<8x128xf32>
    %157 = arith.negf %156 : vector<8x128xf32>
    %158 = math.exp %157 : vector<8x128xf32>
    %cst_62 = arith.constant 1.000000e+00 : f32
    %159 = vector.broadcast %cst_62 : f32 to vector<8x128xf32>
    %160 = arith.addf %159, %158 : vector<8x128xf32>
    %161 = arith.divf %159, %160 : vector<8x128xf32>
    %162 = math.tanh %156 : vector<8x128xf32>
    %163 = arith.select %5, %162, %161 : vector<8x128xi1>, vector<8x128xf32>
    %c64_i32_63 = arith.constant 64 : i32
    %164 = tpu.dynamic_rotate %163 by %c64_i32_63 dim 1 : vector<8x128xf32>, i32 -> vector<8x128xf32>
    %165 = arith.mulf %163, %164 : vector<8x128xf32>
    %c32_i32_64 = arith.constant 32 : i32
    %166 = tpu.dynamic_rotate %142 by %c32_i32_64 dim 1 : vector<8x128xf32>, i32 -> vector<8x128xf32>
    %167 = arith.mulf %163, %166 : vector<8x128xf32>
    %c96_i32_65 = arith.constant 96 : i32
    %168 = tpu.dynamic_rotate %167 by %c96_i32_65 dim 1 : vector<8x128xf32>, i32 -> vector<8x128xf32>
    %169 = arith.addf %165, %168 : vector<8x128xf32>
    %c32_i32_66 = arith.constant 32 : i32
    %170 = tpu.dynamic_rotate %163 by %c32_i32_66 dim 1 : vector<8x128xf32>, i32 -> vector<8x128xf32>
    %171 = math.tanh %169 : vector<8x128xf32>
    %172 = arith.mulf %170, %171 : vector<8x128xf32>
    %173 = vector.extract_strided_slice %172 {offsets = [0, 0], sizes = [8, 32], strides = [1, 1]} : vector<8x128xf32> to vector<8x32xf32>
    %c8_i32_67 = arith.constant 8 : i32
    %174 = arith.muli %c5_i32, %c8_i32_67 : i32
    %175 = tpu.assume_multiple %174, 8 : i32
    %176 = arith.index_cast %175 : i32 to index
    %c0_68 = arith.constant 0 : index
    %177 = vector.load %arg17[%176, %c0_68] : memref<64x32xf32, #tpu.memory_space<vmem>>, vector<8x32xf32>
    tpu.vector_store %arg17[%176, %c0_68], %173 {strides = array<i32>} : memref<64x32xf32, #tpu.memory_space<vmem>>, vector<8x32xf32>,
    %c6_i32 = arith.constant 6 : i32
    %c8_i32_69 = arith.constant 8 : i32
    %178 = arith.muli %c6_i32, %c8_i32_69 : i32
    %179 = tpu.assume_multiple %178, 8 : i32
    %180 = arith.index_cast %179 : i32 to index
    %c0_70 = arith.constant 0 : index
    %181 = vector.load %arg16[%180, %c0_70] : memref<64x128xf32, #tpu.memory_space<vmem>>, vector<8x128xf32>
    %cst_71 = arith.constant dense<0.000000e+00> : vector<8x128xf32>
    %182 = tpu.matmul %173, %15, %cst_71 {dimension_numbers = #tpu.dot_dimension_numbers<[1], [0], [0], [1], [0, 0, 1, 1], [], []>} : vector<8x32xf32>, vector<32x128xf32>, vector<8x128xf32> -> vector<8x128xf32>
    %183 = arith.addf %181, %182 : vector<8x128xf32>
    %184 = arith.negf %183 : vector<8x128xf32>
    %185 = math.exp %184 : vector<8x128xf32>
    %cst_72 = arith.constant 1.000000e+00 : f32
    %186 = vector.broadcast %cst_72 : f32 to vector<8x128xf32>
    %187 = arith.addf %186, %185 : vector<8x128xf32>
    %188 = arith.divf %186, %187 : vector<8x128xf32>
    %189 = math.tanh %183 : vector<8x128xf32>
    %190 = arith.select %5, %189, %188 : vector<8x128xi1>, vector<8x128xf32>
    %c64_i32_73 = arith.constant 64 : i32
    %191 = tpu.dynamic_rotate %190 by %c64_i32_73 dim 1 : vector<8x128xf32>, i32 -> vector<8x128xf32>
    %192 = arith.mulf %190, %191 : vector<8x128xf32>
    %c32_i32_74 = arith.constant 32 : i32
    %193 = tpu.dynamic_rotate %169 by %c32_i32_74 dim 1 : vector<8x128xf32>, i32 -> vector<8x128xf32>
    %194 = arith.mulf %190, %193 : vector<8x128xf32>
    %c96_i32_75 = arith.constant 96 : i32
    %195 = tpu.dynamic_rotate %194 by %c96_i32_75 dim 1 : vector<8x128xf32>, i32 -> vector<8x128xf32>
    %196 = arith.addf %192, %195 : vector<8x128xf32>
    %c32_i32_76 = arith.constant 32 : i32
    %197 = tpu.dynamic_rotate %190 by %c32_i32_76 dim 1 : vector<8x128xf32>, i32 -> vector<8x128xf32>
    %198 = math.tanh %196 : vector<8x128xf32>
    %199 = arith.mulf %197, %198 : vector<8x128xf32>
    %200 = vector.extract_strided_slice %199 {offsets = [0, 0], sizes = [8, 32], strides = [1, 1]} : vector<8x128xf32> to vector<8x32xf32>
    %c8_i32_77 = arith.constant 8 : i32
    %201 = arith.muli %c6_i32, %c8_i32_77 : i32
    %202 = tpu.assume_multiple %201, 8 : i32
    %203 = arith.index_cast %202 : i32 to index
    %c0_78 = arith.constant 0 : index
    %204 = vector.load %arg17[%203, %c0_78] : memref<64x32xf32, #tpu.memory_space<vmem>>, vector<8x32xf32>
    tpu.vector_store %arg17[%203, %c0_78], %200 {strides = array<i32>} : memref<64x32xf32, #tpu.memory_space<vmem>>, vector<8x32xf32>,
    %c7_i32 = arith.constant 7 : i32
    %c8_i32_79 = arith.constant 8 : i32
    %205 = arith.muli %c7_i32, %c8_i32_79 : i32
    %206 = tpu.assume_multiple %205, 8 : i32
    %207 = arith.index_cast %206 : i32 to index
    %c0_80 = arith.constant 0 : index
    %208 = vector.load %arg16[%207, %c0_80] : memref<64x128xf32, #tpu.memory_space<vmem>>, vector<8x128xf32>
    %cst_81 = arith.constant dense<0.000000e+00> : vector<8x128xf32>
    %209 = tpu.matmul %200, %15, %cst_81 {dimension_numbers = #tpu.dot_dimension_numbers<[1], [0], [0], [1], [0, 0, 1, 1], [], []>} : vector<8x32xf32>, vector<32x128xf32>, vector<8x128xf32> -> vector<8x128xf32>
    %210 = arith.addf %208, %209 : vector<8x128xf32>
    %211 = arith.negf %210 : vector<8x128xf32>
    %212 = math.exp %211 : vector<8x128xf32>
    %cst_82 = arith.constant 1.000000e+00 : f32
    %213 = vector.broadcast %cst_82 : f32 to vector<8x128xf32>
    %214 = arith.addf %213, %212 : vector<8x128xf32>
    %215 = arith.divf %213, %214 : vector<8x128xf32>
    %216 = math.tanh %210 : vector<8x128xf32>
    %217 = arith.select %5, %216, %215 : vector<8x128xi1>, vector<8x128xf32>
    %c64_i32_83 = arith.constant 64 : i32
    %218 = tpu.dynamic_rotate %217 by %c64_i32_83 dim 1 : vector<8x128xf32>, i32 -> vector<8x128xf32>
    %219 = arith.mulf %217, %218 : vector<8x128xf32>
    %c32_i32_84 = arith.constant 32 : i32
    %220 = tpu.dynamic_rotate %196 by %c32_i32_84 dim 1 : vector<8x128xf32>, i32 -> vector<8x128xf32>
    %221 = arith.mulf %217, %220 : vector<8x128xf32>
    %c96_i32_85 = arith.constant 96 : i32
    %222 = tpu.dynamic_rotate %221 by %c96_i32_85 dim 1 : vector<8x128xf32>, i32 -> vector<8x128xf32>
    %223 = arith.addf %219, %222 : vector<8x128xf32>
    %c32_i32_86 = arith.constant 32 : i32
    %224 = tpu.dynamic_rotate %217 by %c32_i32_86 dim 1 : vector<8x128xf32>, i32 -> vector<8x128xf32>
    %225 = math.tanh %223 : vector<8x128xf32>
    %226 = arith.mulf %224, %225 : vector<8x128xf32>
    %227 = vector.extract_strided_slice %226 {offsets = [0, 0], sizes = [8, 32], strides = [1, 1]} : vector<8x128xf32> to vector<8x32xf32>
    %c8_i32_87 = arith.constant 8 : i32
    %228 = arith.muli %c7_i32, %c8_i32_87 : i32
    %229 = tpu.assume_multiple %228, 8 : i32
    %230 = arith.index_cast %229 : i32 to index
    %c0_88 = arith.constant 0 : index
    %231 = vector.load %arg17[%230, %c0_88] : memref<64x32xf32, #tpu.memory_space<vmem>>, vector<8x32xf32>
    tpu.vector_store %arg17[%230, %c0_88], %227 {strides = array<i32>} : memref<64x32xf32, #tpu.memory_space<vmem>>, vector<8x32xf32>,
    %c8_i32_89 = arith.constant 8 : i32
    %c0_90 = arith.constant 0 : index
    %c0_91 = arith.constant 0 : index
    %232 = vector.load %arg17[%c0_90, %c0_91] : memref<64x32xf32, #tpu.memory_space<vmem>>, vector<64x32xf32>
    %c0_92 = arith.constant 0 : index
    %c0_93 = arith.constant 0 : index
    %233 = vector.load %arg5[%c0_92, %c0_93] : memref<32x128xf32, #tpu.memory_space<vmem>>, vector<32x128xf32>
    %cst_94 = arith.constant dense<0.000000e+00> : vector<64x128xf32>
    %234 = tpu.matmul %232, %233, %cst_94 {dimension_numbers = #tpu.dot_dimension_numbers<[1], [0], [0], [1], [0, 0, 1, 1], [], []>} : vector<64x32xf32>, vector<32x128xf32>, vector<64x128xf32> -> vector<64x128xf32>
    %c0_95 = arith.constant 0 : index
    %c0_96 = arith.constant 0 : index
    %235 = vector.load %arg7[%c0_95, %c0_96] : memref<1x128xf32, #tpu.memory_space<vmem>>, vector<1x128xf32>
    %236 = vector.broadcast %235 : vector<1x128xf32> to vector<64x128xf32>
    %237 = arith.addf %234, %236 : vector<64x128xf32>
    %c0_97 = arith.constant 0 : index
    %c0_98 = arith.constant 0 : index
    %238 = vector.load %arg16[%c0_97, %c0_98] : memref<64x128xf32, #tpu.memory_space<vmem>>, vector<64x128xf32>
    tpu.vector_store %arg16[%c0_97, %c0_98], %237 {strides = array<i32>} : memref<64x128xf32, #tpu.memory_space<vmem>>, vector<64x128xf32>,
    %c0_99 = arith.constant 0 : index
    %c0_100 = arith.constant 0 : index
    %239 = vector.load %arg6[%c0_99, %c0_100] : memref<32x128xf32, #tpu.memory_space<vmem>>, vector<32x128xf32>
    %c0_i32_101 = arith.constant 0 : i32
    %c8_i32_102 = arith.constant 8 : i32
    %240 = arith.muli %c0_i32_101, %c8_i32_102 : i32
    %241 = tpu.assume_multiple %240, 8 : i32
    %242 = arith.index_cast %241 : i32 to index
    %c0_103 = arith.constant 0 : index
    %243 = vector.load %arg16[%242, %c0_103] : memref<64x128xf32, #tpu.memory_space<vmem>>, vector<8x128xf32>
    %cst_104 = arith.constant dense<0.000000e+00> : vector<8x128xf32>
    %244 = tpu.matmul %6, %239, %cst_104 {dimension_numbers = #tpu.dot_dimension_numbers<[1], [0], [0], [1], [0, 0, 1, 1], [], []>} : vector<8x32xf32>, vector<32x128xf32>, vector<8x128xf32> -> vector<8x128xf32>
    %245 = arith.addf %243, %244 : vector<8x128xf32>
    %246 = arith.negf %245 : vector<8x128xf32>
    %247 = math.exp %246 : vector<8x128xf32>
    %cst_105 = arith.constant 1.000000e+00 : f32
    %248 = vector.broadcast %cst_105 : f32 to vector<8x128xf32>
    %249 = arith.addf %248, %247 : vector<8x128xf32>
    %250 = arith.divf %248, %249 : vector<8x128xf32>
    %251 = math.tanh %245 : vector<8x128xf32>
    %252 = arith.select %5, %251, %250 : vector<8x128xi1>, vector<8x128xf32>
    %c64_i32_106 = arith.constant 64 : i32
    %253 = tpu.dynamic_rotate %252 by %c64_i32_106 dim 1 : vector<8x128xf32>, i32 -> vector<8x128xf32>
    %254 = arith.mulf %252, %253 : vector<8x128xf32>
    %c32_i32_107 = arith.constant 32 : i32
    %255 = tpu.dynamic_rotate %7 by %c32_i32_107 dim 1 : vector<8x128xf32>, i32 -> vector<8x128xf32>
    %256 = arith.mulf %252, %255 : vector<8x128xf32>
    %c96_i32_108 = arith.constant 96 : i32
    %257 = tpu.dynamic_rotate %256 by %c96_i32_108 dim 1 : vector<8x128xf32>, i32 -> vector<8x128xf32>
    %258 = arith.addf %254, %257 : vector<8x128xf32>
    %c32_i32_109 = arith.constant 32 : i32
    %259 = tpu.dynamic_rotate %252 by %c32_i32_109 dim 1 : vector<8x128xf32>, i32 -> vector<8x128xf32>
    %260 = math.tanh %258 : vector<8x128xf32>
    %261 = arith.mulf %259, %260 : vector<8x128xf32>
    %262 = vector.extract_strided_slice %261 {offsets = [0, 0], sizes = [8, 32], strides = [1, 1]} : vector<8x128xf32> to vector<8x32xf32>
    %c1_i32_110 = arith.constant 1 : i32
    %c8_i32_111 = arith.constant 8 : i32
    %263 = arith.muli %c1_i32_110, %c8_i32_111 : i32
    %264 = tpu.assume_multiple %263, 8 : i32
    %265 = arith.index_cast %264 : i32 to index
    %c0_112 = arith.constant 0 : index
    %266 = vector.load %arg16[%265, %c0_112] : memref<64x128xf32, #tpu.memory_space<vmem>>, vector<8x128xf32>
    %cst_113 = arith.constant dense<0.000000e+00> : vector<8x128xf32>
    %267 = tpu.matmul %262, %239, %cst_113 {dimension_numbers = #tpu.dot_dimension_numbers<[1], [0], [0], [1], [0, 0, 1, 1], [], []>} : vector<8x32xf32>, vector<32x128xf32>, vector<8x128xf32> -> vector<8x128xf32>
    %268 = arith.addf %266, %267 : vector<8x128xf32>
    %269 = arith.negf %268 : vector<8x128xf32>
    %270 = math.exp %269 : vector<8x128xf32>
    %cst_114 = arith.constant 1.000000e+00 : f32
    %271 = vector.broadcast %cst_114 : f32 to vector<8x128xf32>
    %272 = arith.addf %271, %270 : vector<8x128xf32>
    %273 = arith.divf %271, %272 : vector<8x128xf32>
    %274 = math.tanh %268 : vector<8x128xf32>
    %275 = arith.select %5, %274, %273 : vector<8x128xi1>, vector<8x128xf32>
    %c64_i32_115 = arith.constant 64 : i32
    %276 = tpu.dynamic_rotate %275 by %c64_i32_115 dim 1 : vector<8x128xf32>, i32 -> vector<8x128xf32>
    %277 = arith.mulf %275, %276 : vector<8x128xf32>
    %c32_i32_116 = arith.constant 32 : i32
    %278 = tpu.dynamic_rotate %258 by %c32_i32_116 dim 1 : vector<8x128xf32>, i32 -> vector<8x128xf32>
    %279 = arith.mulf %275, %278 : vector<8x128xf32>
    %c96_i32_117 = arith.constant 96 : i32
    %280 = tpu.dynamic_rotate %279 by %c96_i32_117 dim 1 : vector<8x128xf32>, i32 -> vector<8x128xf32>
    %281 = arith.addf %277, %280 : vector<8x128xf32>
    %c32_i32_118 = arith.constant 32 : i32
    %282 = tpu.dynamic_rotate %275 by %c32_i32_118 dim 1 : vector<8x128xf32>, i32 -> vector<8x128xf32>
    %283 = math.tanh %281 : vector<8x128xf32>
    %284 = arith.mulf %282, %283 : vector<8x128xf32>
    %285 = vector.extract_strided_slice %284 {offsets = [0, 0], sizes = [8, 32], strides = [1, 1]} : vector<8x128xf32> to vector<8x32xf32>
    %c2_i32_119 = arith.constant 2 : i32
    %c8_i32_120 = arith.constant 8 : i32
    %286 = arith.muli %c2_i32_119, %c8_i32_120 : i32
    %287 = tpu.assume_multiple %286, 8 : i32
    %288 = arith.index_cast %287 : i32 to index
    %c0_121 = arith.constant 0 : index
    %289 = vector.load %arg16[%288, %c0_121] : memref<64x128xf32, #tpu.memory_space<vmem>>, vector<8x128xf32>
    %cst_122 = arith.constant dense<0.000000e+00> : vector<8x128xf32>
    %290 = tpu.matmul %285, %239, %cst_122 {dimension_numbers = #tpu.dot_dimension_numbers<[1], [0], [0], [1], [0, 0, 1, 1], [], []>} : vector<8x32xf32>, vector<32x128xf32>, vector<8x128xf32> -> vector<8x128xf32>
    %291 = arith.addf %289, %290 : vector<8x128xf32>
    %292 = arith.negf %291 : vector<8x128xf32>
    %293 = math.exp %292 : vector<8x128xf32>
    %cst_123 = arith.constant 1.000000e+00 : f32
    %294 = vector.broadcast %cst_123 : f32 to vector<8x128xf32>
    %295 = arith.addf %294, %293 : vector<8x128xf32>
    %296 = arith.divf %294, %295 : vector<8x128xf32>
    %297 = math.tanh %291 : vector<8x128xf32>
    %298 = arith.select %5, %297, %296 : vector<8x128xi1>, vector<8x128xf32>
    %c64_i32_124 = arith.constant 64 : i32
    %299 = tpu.dynamic_rotate %298 by %c64_i32_124 dim 1 : vector<8x128xf32>, i32 -> vector<8x128xf32>
    %300 = arith.mulf %298, %299 : vector<8x128xf32>
    %c32_i32_125 = arith.constant 32 : i32
    %301 = tpu.dynamic_rotate %281 by %c32_i32_125 dim 1 : vector<8x128xf32>, i32 -> vector<8x128xf32>
    %302 = arith.mulf %298, %301 : vector<8x128xf32>
    %c96_i32_126 = arith.constant 96 : i32
    %303 = tpu.dynamic_rotate %302 by %c96_i32_126 dim 1 : vector<8x128xf32>, i32 -> vector<8x128xf32>
    %304 = arith.addf %300, %303 : vector<8x128xf32>
    %c32_i32_127 = arith.constant 32 : i32
    %305 = tpu.dynamic_rotate %298 by %c32_i32_127 dim 1 : vector<8x128xf32>, i32 -> vector<8x128xf32>
    %306 = math.tanh %304 : vector<8x128xf32>
    %307 = arith.mulf %305, %306 : vector<8x128xf32>
    %308 = vector.extract_strided_slice %307 {offsets = [0, 0], sizes = [8, 32], strides = [1, 1]} : vector<8x128xf32> to vector<8x32xf32>
    %c3_i32_128 = arith.constant 3 : i32
    %c8_i32_129 = arith.constant 8 : i32
    %309 = arith.muli %c3_i32_128, %c8_i32_129 : i32
    %310 = tpu.assume_multiple %309, 8 : i32
    %311 = arith.index_cast %310 : i32 to index
    %c0_130 = arith.constant 0 : index
    %312 = vector.load %arg16[%311, %c0_130] : memref<64x128xf32, #tpu.memory_space<vmem>>, vector<8x128xf32>
    %cst_131 = arith.constant dense<0.000000e+00> : vector<8x128xf32>
    %313 = tpu.matmul %308, %239, %cst_131 {dimension_numbers = #tpu.dot_dimension_numbers<[1], [0], [0], [1], [0, 0, 1, 1], [], []>} : vector<8x32xf32>, vector<32x128xf32>, vector<8x128xf32> -> vector<8x128xf32>
    %314 = arith.addf %312, %313 : vector<8x128xf32>
    %315 = arith.negf %314 : vector<8x128xf32>
    %316 = math.exp %315 : vector<8x128xf32>
    %cst_132 = arith.constant 1.000000e+00 : f32
    %317 = vector.broadcast %cst_132 : f32 to vector<8x128xf32>
    %318 = arith.addf %317, %316 : vector<8x128xf32>
    %319 = arith.divf %317, %318 : vector<8x128xf32>
    %320 = math.tanh %314 : vector<8x128xf32>
    %321 = arith.select %5, %320, %319 : vector<8x128xi1>, vector<8x128xf32>
    %c64_i32_133 = arith.constant 64 : i32
    %322 = tpu.dynamic_rotate %321 by %c64_i32_133 dim 1 : vector<8x128xf32>, i32 -> vector<8x128xf32>
    %323 = arith.mulf %321, %322 : vector<8x128xf32>
    %c32_i32_134 = arith.constant 32 : i32
    %324 = tpu.dynamic_rotate %304 by %c32_i32_134 dim 1 : vector<8x128xf32>, i32 -> vector<8x128xf32>
    %325 = arith.mulf %321, %324 : vector<8x128xf32>
    %c96_i32_135 = arith.constant 96 : i32
    %326 = tpu.dynamic_rotate %325 by %c96_i32_135 dim 1 : vector<8x128xf32>, i32 -> vector<8x128xf32>
    %327 = arith.addf %323, %326 : vector<8x128xf32>
    %c32_i32_136 = arith.constant 32 : i32
    %328 = tpu.dynamic_rotate %321 by %c32_i32_136 dim 1 : vector<8x128xf32>, i32 -> vector<8x128xf32>
    %329 = math.tanh %327 : vector<8x128xf32>
    %330 = arith.mulf %328, %329 : vector<8x128xf32>
    %331 = vector.extract_strided_slice %330 {offsets = [0, 0], sizes = [8, 32], strides = [1, 1]} : vector<8x128xf32> to vector<8x32xf32>
    %c4_i32_137 = arith.constant 4 : i32
    %c8_i32_138 = arith.constant 8 : i32
    %332 = arith.muli %c4_i32_137, %c8_i32_138 : i32
    %333 = tpu.assume_multiple %332, 8 : i32
    %334 = arith.index_cast %333 : i32 to index
    %c0_139 = arith.constant 0 : index
    %335 = vector.load %arg16[%334, %c0_139] : memref<64x128xf32, #tpu.memory_space<vmem>>, vector<8x128xf32>
    %cst_140 = arith.constant dense<0.000000e+00> : vector<8x128xf32>
    %336 = tpu.matmul %331, %239, %cst_140 {dimension_numbers = #tpu.dot_dimension_numbers<[1], [0], [0], [1], [0, 0, 1, 1], [], []>} : vector<8x32xf32>, vector<32x128xf32>, vector<8x128xf32> -> vector<8x128xf32>
    %337 = arith.addf %335, %336 : vector<8x128xf32>
    %338 = arith.negf %337 : vector<8x128xf32>
    %339 = math.exp %338 : vector<8x128xf32>
    %cst_141 = arith.constant 1.000000e+00 : f32
    %340 = vector.broadcast %cst_141 : f32 to vector<8x128xf32>
    %341 = arith.addf %340, %339 : vector<8x128xf32>
    %342 = arith.divf %340, %341 : vector<8x128xf32>
    %343 = math.tanh %337 : vector<8x128xf32>
    %344 = arith.select %5, %343, %342 : vector<8x128xi1>, vector<8x128xf32>
    %c64_i32_142 = arith.constant 64 : i32
    %345 = tpu.dynamic_rotate %344 by %c64_i32_142 dim 1 : vector<8x128xf32>, i32 -> vector<8x128xf32>
    %346 = arith.mulf %344, %345 : vector<8x128xf32>
    %c32_i32_143 = arith.constant 32 : i32
    %347 = tpu.dynamic_rotate %327 by %c32_i32_143 dim 1 : vector<8x128xf32>, i32 -> vector<8x128xf32>
    %348 = arith.mulf %344, %347 : vector<8x128xf32>
    %c96_i32_144 = arith.constant 96 : i32
    %349 = tpu.dynamic_rotate %348 by %c96_i32_144 dim 1 : vector<8x128xf32>, i32 -> vector<8x128xf32>
    %350 = arith.addf %346, %349 : vector<8x128xf32>
    %c32_i32_145 = arith.constant 32 : i32
    %351 = tpu.dynamic_rotate %344 by %c32_i32_145 dim 1 : vector<8x128xf32>, i32 -> vector<8x128xf32>
    %352 = math.tanh %350 : vector<8x128xf32>
    %353 = arith.mulf %351, %352 : vector<8x128xf32>
    %354 = vector.extract_strided_slice %353 {offsets = [0, 0], sizes = [8, 32], strides = [1, 1]} : vector<8x128xf32> to vector<8x32xf32>
    %c5_i32_146 = arith.constant 5 : i32
    %c8_i32_147 = arith.constant 8 : i32
    %355 = arith.muli %c5_i32_146, %c8_i32_147 : i32
    %356 = tpu.assume_multiple %355, 8 : i32
    %357 = arith.index_cast %356 : i32 to index
    %c0_148 = arith.constant 0 : index
    %358 = vector.load %arg16[%357, %c0_148] : memref<64x128xf32, #tpu.memory_space<vmem>>, vector<8x128xf32>
    %cst_149 = arith.constant dense<0.000000e+00> : vector<8x128xf32>
    %359 = tpu.matmul %354, %239, %cst_149 {dimension_numbers = #tpu.dot_dimension_numbers<[1], [0], [0], [1], [0, 0, 1, 1], [], []>} : vector<8x32xf32>, vector<32x128xf32>, vector<8x128xf32> -> vector<8x128xf32>
    %360 = arith.addf %358, %359 : vector<8x128xf32>
    %361 = arith.negf %360 : vector<8x128xf32>
    %362 = math.exp %361 : vector<8x128xf32>
    %cst_150 = arith.constant 1.000000e+00 : f32
    %363 = vector.broadcast %cst_150 : f32 to vector<8x128xf32>
    %364 = arith.addf %363, %362 : vector<8x128xf32>
    %365 = arith.divf %363, %364 : vector<8x128xf32>
    %366 = math.tanh %360 : vector<8x128xf32>
    %367 = arith.select %5, %366, %365 : vector<8x128xi1>, vector<8x128xf32>
    %c64_i32_151 = arith.constant 64 : i32
    %368 = tpu.dynamic_rotate %367 by %c64_i32_151 dim 1 : vector<8x128xf32>, i32 -> vector<8x128xf32>
    %369 = arith.mulf %367, %368 : vector<8x128xf32>
    %c32_i32_152 = arith.constant 32 : i32
    %370 = tpu.dynamic_rotate %350 by %c32_i32_152 dim 1 : vector<8x128xf32>, i32 -> vector<8x128xf32>
    %371 = arith.mulf %367, %370 : vector<8x128xf32>
    %c96_i32_153 = arith.constant 96 : i32
    %372 = tpu.dynamic_rotate %371 by %c96_i32_153 dim 1 : vector<8x128xf32>, i32 -> vector<8x128xf32>
    %373 = arith.addf %369, %372 : vector<8x128xf32>
    %c32_i32_154 = arith.constant 32 : i32
    %374 = tpu.dynamic_rotate %367 by %c32_i32_154 dim 1 : vector<8x128xf32>, i32 -> vector<8x128xf32>
    %375 = math.tanh %373 : vector<8x128xf32>
    %376 = arith.mulf %374, %375 : vector<8x128xf32>
    %377 = vector.extract_strided_slice %376 {offsets = [0, 0], sizes = [8, 32], strides = [1, 1]} : vector<8x128xf32> to vector<8x32xf32>
    %c6_i32_155 = arith.constant 6 : i32
    %c8_i32_156 = arith.constant 8 : i32
    %378 = arith.muli %c6_i32_155, %c8_i32_156 : i32
    %379 = tpu.assume_multiple %378, 8 : i32
    %380 = arith.index_cast %379 : i32 to index
    %c0_157 = arith.constant 0 : index
    %381 = vector.load %arg16[%380, %c0_157] : memref<64x128xf32, #tpu.memory_space<vmem>>, vector<8x128xf32>
    %cst_158 = arith.constant dense<0.000000e+00> : vector<8x128xf32>
    %382 = tpu.matmul %377, %239, %cst_158 {dimension_numbers = #tpu.dot_dimension_numbers<[1], [0], [0], [1], [0, 0, 1, 1], [], []>} : vector<8x32xf32>, vector<32x128xf32>, vector<8x128xf32> -> vector<8x128xf32>
    %383 = arith.addf %381, %382 : vector<8x128xf32>
    %384 = arith.negf %383 : vector<8x128xf32>
    %385 = math.exp %384 : vector<8x128xf32>
    %cst_159 = arith.constant 1.000000e+00 : f32
    %386 = vector.broadcast %cst_159 : f32 to vector<8x128xf32>
    %387 = arith.addf %386, %385 : vector<8x128xf32>
    %388 = arith.divf %386, %387 : vector<8x128xf32>
    %389 = math.tanh %383 : vector<8x128xf32>
    %390 = arith.select %5, %389, %388 : vector<8x128xi1>, vector<8x128xf32>
    %c64_i32_160 = arith.constant 64 : i32
    %391 = tpu.dynamic_rotate %390 by %c64_i32_160 dim 1 : vector<8x128xf32>, i32 -> vector<8x128xf32>
    %392 = arith.mulf %390, %391 : vector<8x128xf32>
    %c32_i32_161 = arith.constant 32 : i32
    %393 = tpu.dynamic_rotate %373 by %c32_i32_161 dim 1 : vector<8x128xf32>, i32 -> vector<8x128xf32>
    %394 = arith.mulf %390, %393 : vector<8x128xf32>
    %c96_i32_162 = arith.constant 96 : i32
    %395 = tpu.dynamic_rotate %394 by %c96_i32_162 dim 1 : vector<8x128xf32>, i32 -> vector<8x128xf32>
    %396 = arith.addf %392, %395 : vector<8x128xf32>
    %c32_i32_163 = arith.constant 32 : i32
    %397 = tpu.dynamic_rotate %390 by %c32_i32_163 dim 1 : vector<8x128xf32>, i32 -> vector<8x128xf32>
    %398 = math.tanh %396 : vector<8x128xf32>
    %399 = arith.mulf %397, %398 : vector<8x128xf32>
    %400 = vector.extract_strided_slice %399 {offsets = [0, 0], sizes = [8, 32], strides = [1, 1]} : vector<8x128xf32> to vector<8x32xf32>
    %c7_i32_164 = arith.constant 7 : i32
    %c8_i32_165 = arith.constant 8 : i32
    %401 = arith.muli %c7_i32_164, %c8_i32_165 : i32
    %402 = tpu.assume_multiple %401, 8 : i32
    %403 = arith.index_cast %402 : i32 to index
    %c0_166 = arith.constant 0 : index
    %404 = vector.load %arg16[%403, %c0_166] : memref<64x128xf32, #tpu.memory_space<vmem>>, vector<8x128xf32>
    %cst_167 = arith.constant dense<0.000000e+00> : vector<8x128xf32>
    %405 = tpu.matmul %400, %239, %cst_167 {dimension_numbers = #tpu.dot_dimension_numbers<[1], [0], [0], [1], [0, 0, 1, 1], [], []>} : vector<8x32xf32>, vector<32x128xf32>, vector<8x128xf32> -> vector<8x128xf32>
    %406 = arith.addf %404, %405 : vector<8x128xf32>
    %407 = arith.negf %406 : vector<8x128xf32>
    %408 = math.exp %407 : vector<8x128xf32>
    %cst_168 = arith.constant 1.000000e+00 : f32
    %409 = vector.broadcast %cst_168 : f32 to vector<8x128xf32>
    %410 = arith.addf %409, %408 : vector<8x128xf32>
    %411 = arith.divf %409, %410 : vector<8x128xf32>
    %412 = math.tanh %406 : vector<8x128xf32>
    %413 = arith.select %5, %412, %411 : vector<8x128xi1>, vector<8x128xf32>
    %c64_i32_169 = arith.constant 64 : i32
    %414 = tpu.dynamic_rotate %413 by %c64_i32_169 dim 1 : vector<8x128xf32>, i32 -> vector<8x128xf32>
    %415 = arith.mulf %413, %414 : vector<8x128xf32>
    %c32_i32_170 = arith.constant 32 : i32
    %416 = tpu.dynamic_rotate %396 by %c32_i32_170 dim 1 : vector<8x128xf32>, i32 -> vector<8x128xf32>
    %417 = arith.mulf %413, %416 : vector<8x128xf32>
    %c96_i32_171 = arith.constant 96 : i32
    %418 = tpu.dynamic_rotate %417 by %c96_i32_171 dim 1 : vector<8x128xf32>, i32 -> vector<8x128xf32>
    %419 = arith.addf %415, %418 : vector<8x128xf32>
    %c32_i32_172 = arith.constant 32 : i32
    %420 = tpu.dynamic_rotate %413 by %c32_i32_172 dim 1 : vector<8x128xf32>, i32 -> vector<8x128xf32>
    %421 = math.tanh %419 : vector<8x128xf32>
    %422 = arith.mulf %420, %421 : vector<8x128xf32>
    %423 = vector.extract_strided_slice %422 {offsets = [0, 0], sizes = [8, 32], strides = [1, 1]} : vector<8x128xf32> to vector<8x32xf32>
    %c8_i32_173 = arith.constant 8 : i32
    %c0_174 = arith.constant 0 : index
    %c0_175 = arith.constant 0 : index
    %424 = vector.load %arg9[%c0_174, %c0_175] : memref<1x128xf32, #tpu.memory_space<vmem>>, vector<1x128xf32>
    %425 = vector.shape_cast %424 : vector<1x128xf32> to vector<1x128xf32>
    %426 = vector.broadcast %425 : vector<1x128xf32> to vector<8x128xf32>
    %c0_176 = arith.constant 0 : index
    %c0_177 = arith.constant 0 : index
    %427 = vector.load %arg8[%c0_176, %c0_177] : memref<32x128xf32, #tpu.memory_space<vmem>>, vector<32x128xf32>
    %c0_i32_178 = arith.constant 0 : i32
    %cst_179 = arith.constant dense<0.000000e+00> : vector<8x128xf32>
    %428 = tpu.matmul %227, %427, %cst_179 {dimension_numbers = #tpu.dot_dimension_numbers<[1], [0], [0], [1], [0, 0, 1, 1], [], []>} : vector<8x32xf32>, vector<32x128xf32>, vector<8x128xf32> -> vector<8x128xf32>
    %429 = arith.addf %426, %428 : vector<8x128xf32>
    %430 = arith.negf %429 : vector<8x128xf32>
    %431 = math.exp %430 : vector<8x128xf32>
    %cst_180 = arith.constant 1.000000e+00 : f32
    %432 = vector.broadcast %cst_180 : f32 to vector<8x128xf32>
    %433 = arith.addf %432, %431 : vector<8x128xf32>
    %434 = arith.divf %432, %433 : vector<8x128xf32>
    %435 = math.tanh %429 : vector<8x128xf32>
    %436 = arith.select %5, %435, %434 : vector<8x128xi1>, vector<8x128xf32>
    %c64_i32_181 = arith.constant 64 : i32
    %437 = tpu.dynamic_rotate %436 by %c64_i32_181 dim 1 : vector<8x128xf32>, i32 -> vector<8x128xf32>
    %438 = arith.mulf %436, %437 : vector<8x128xf32>
    %c32_i32_182 = arith.constant 32 : i32
    %439 = tpu.dynamic_rotate %223 by %c32_i32_182 dim 1 : vector<8x128xf32>, i32 -> vector<8x128xf32>
    %440 = arith.mulf %436, %439 : vector<8x128xf32>
    %c96_i32_183 = arith.constant 96 : i32
    %441 = tpu.dynamic_rotate %440 by %c96_i32_183 dim 1 : vector<8x128xf32>, i32 -> vector<8x128xf32>
    %442 = arith.addf %438, %441 : vector<8x128xf32>
    %c32_i32_184 = arith.constant 32 : i32
    %443 = tpu.dynamic_rotate %436 by %c32_i32_184 dim 1 : vector<8x128xf32>, i32 -> vector<8x128xf32>
    %444 = math.tanh %442 : vector<8x128xf32>
    %445 = arith.mulf %443, %444 : vector<8x128xf32>
    %446 = vector.extract_strided_slice %445 {offsets = [0, 0], sizes = [8, 32], strides = [1, 1]} : vector<8x128xf32> to vector<8x32xf32>
    %c8_i32_185 = arith.constant 8 : i32
    %447 = arith.muli %c0_i32_178, %c8_i32_185 : i32
    %448 = tpu.assume_multiple %447, 8 : i32
    %449 = arith.index_cast %448 : i32 to index
    %c0_186 = arith.constant 0 : index
    %450 = vector.load %arg17[%449, %c0_186] : memref<64x32xf32, #tpu.memory_space<vmem>>, vector<8x32xf32>
    tpu.vector_store %arg17[%449, %c0_186], %446 {strides = array<i32>} : memref<64x32xf32, #tpu.memory_space<vmem>>, vector<8x32xf32>,
    %c1_i32_187 = arith.constant 1 : i32
    %cst_188 = arith.constant dense<0.000000e+00> : vector<8x128xf32>
    %451 = tpu.matmul %446, %427, %cst_188 {dimension_numbers = #tpu.dot_dimension_numbers<[1], [0], [0], [1], [0, 0, 1, 1], [], []>} : vector<8x32xf32>, vector<32x128xf32>, vector<8x128xf32> -> vector<8x128xf32>
    %452 = arith.addf %426, %451 : vector<8x128xf32>
    %453 = arith.negf %452 : vector<8x128xf32>
    %454 = math.exp %453 : vector<8x128xf32>
    %cst_189 = arith.constant 1.000000e+00 : f32
    %455 = vector.broadcast %cst_189 : f32 to vector<8x128xf32>
    %456 = arith.addf %455, %454 : vector<8x128xf32>
    %457 = arith.divf %455, %456 : vector<8x128xf32>
    %458 = math.tanh %452 : vector<8x128xf32>
    %459 = arith.select %5, %458, %457 : vector<8x128xi1>, vector<8x128xf32>
    %c64_i32_190 = arith.constant 64 : i32
    %460 = tpu.dynamic_rotate %459 by %c64_i32_190 dim 1 : vector<8x128xf32>, i32 -> vector<8x128xf32>
    %461 = arith.mulf %459, %460 : vector<8x128xf32>
    %c32_i32_191 = arith.constant 32 : i32
    %462 = tpu.dynamic_rotate %442 by %c32_i32_191 dim 1 : vector<8x128xf32>, i32 -> vector<8x128xf32>
    %463 = arith.mulf %459, %462 : vector<8x128xf32>
    %c96_i32_192 = arith.constant 96 : i32
    %464 = tpu.dynamic_rotate %463 by %c96_i32_192 dim 1 : vector<8x128xf32>, i32 -> vector<8x128xf32>
    %465 = arith.addf %461, %464 : vector<8x128xf32>
    %c32_i32_193 = arith.constant 32 : i32
    %466 = tpu.dynamic_rotate %459 by %c32_i32_193 dim 1 : vector<8x128xf32>, i32 -> vector<8x128xf32>
    %467 = math.tanh %465 : vector<8x128xf32>
    %468 = arith.mulf %466, %467 : vector<8x128xf32>
    %469 = vector.extract_strided_slice %468 {offsets = [0, 0], sizes = [8, 32], strides = [1, 1]} : vector<8x128xf32> to vector<8x32xf32>
    %c8_i32_194 = arith.constant 8 : i32
    %470 = arith.muli %c1_i32_187, %c8_i32_194 : i32
    %471 = tpu.assume_multiple %470, 8 : i32
    %472 = arith.index_cast %471 : i32 to index
    %c0_195 = arith.constant 0 : index
    %473 = vector.load %arg17[%472, %c0_195] : memref<64x32xf32, #tpu.memory_space<vmem>>, vector<8x32xf32>
    tpu.vector_store %arg17[%472, %c0_195], %469 {strides = array<i32>} : memref<64x32xf32, #tpu.memory_space<vmem>>, vector<8x32xf32>,
    %c2_i32_196 = arith.constant 2 : i32
    %cst_197 = arith.constant dense<0.000000e+00> : vector<8x128xf32>
    %474 = tpu.matmul %469, %427, %cst_197 {dimension_numbers = #tpu.dot_dimension_numbers<[1], [0], [0], [1], [0, 0, 1, 1], [], []>} : vector<8x32xf32>, vector<32x128xf32>, vector<8x128xf32> -> vector<8x128xf32>
    %475 = arith.addf %426, %474 : vector<8x128xf32>
    %476 = arith.negf %475 : vector<8x128xf32>
    %477 = math.exp %476 : vector<8x128xf32>
    %cst_198 = arith.constant 1.000000e+00 : f32
    %478 = vector.broadcast %cst_198 : f32 to vector<8x128xf32>
    %479 = arith.addf %478, %477 : vector<8x128xf32>
    %480 = arith.divf %478, %479 : vector<8x128xf32>
    %481 = math.tanh %475 : vector<8x128xf32>
    %482 = arith.select %5, %481, %480 : vector<8x128xi1>, vector<8x128xf32>
    %c64_i32_199 = arith.constant 64 : i32
    %483 = tpu.dynamic_rotate %482 by %c64_i32_199 dim 1 : vector<8x128xf32>, i32 -> vector<8x128xf32>
    %484 = arith.mulf %482, %483 : vector<8x128xf32>
    %c32_i32_200 = arith.constant 32 : i32
    %485 = tpu.dynamic_rotate %465 by %c32_i32_200 dim 1 : vector<8x128xf32>, i32 -> vector<8x128xf32>
    %486 = arith.mulf %482, %485 : vector<8x128xf32>
    %c96_i32_201 = arith.constant 96 : i32
    %487 = tpu.dynamic_rotate %486 by %c96_i32_201 dim 1 : vector<8x128xf32>, i32 -> vector<8x128xf32>
    %488 = arith.addf %484, %487 : vector<8x128xf32>
    %c32_i32_202 = arith.constant 32 : i32
    %489 = tpu.dynamic_rotate %482 by %c32_i32_202 dim 1 : vector<8x128xf32>, i32 -> vector<8x128xf32>
    %490 = math.tanh %488 : vector<8x128xf32>
    %491 = arith.mulf %489, %490 : vector<8x128xf32>
    %492 = vector.extract_strided_slice %491 {offsets = [0, 0], sizes = [8, 32], strides = [1, 1]} : vector<8x128xf32> to vector<8x32xf32>
    %c8_i32_203 = arith.constant 8 : i32
    %493 = arith.muli %c2_i32_196, %c8_i32_203 : i32
    %494 = tpu.assume_multiple %493, 8 : i32
    %495 = arith.index_cast %494 : i32 to index
    %c0_204 = arith.constant 0 : index
    %496 = vector.load %arg17[%495, %c0_204] : memref<64x32xf32, #tpu.memory_space<vmem>>, vector<8x32xf32>
    tpu.vector_store %arg17[%495, %c0_204], %492 {strides = array<i32>} : memref<64x32xf32, #tpu.memory_space<vmem>>, vector<8x32xf32>,
    %c3_i32_205 = arith.constant 3 : i32
    %cst_206 = arith.constant dense<0.000000e+00> : vector<8x128xf32>
    %497 = tpu.matmul %492, %427, %cst_206 {dimension_numbers = #tpu.dot_dimension_numbers<[1], [0], [0], [1], [0, 0, 1, 1], [], []>} : vector<8x32xf32>, vector<32x128xf32>, vector<8x128xf32> -> vector<8x128xf32>
    %498 = arith.addf %426, %497 : vector<8x128xf32>
    %499 = arith.negf %498 : vector<8x128xf32>
    %500 = math.exp %499 : vector<8x128xf32>
    %cst_207 = arith.constant 1.000000e+00 : f32
    %501 = vector.broadcast %cst_207 : f32 to vector<8x128xf32>
    %502 = arith.addf %501, %500 : vector<8x128xf32>
    %503 = arith.divf %501, %502 : vector<8x128xf32>
    %504 = math.tanh %498 : vector<8x128xf32>
    %505 = arith.select %5, %504, %503 : vector<8x128xi1>, vector<8x128xf32>
    %c64_i32_208 = arith.constant 64 : i32
    %506 = tpu.dynamic_rotate %505 by %c64_i32_208 dim 1 : vector<8x128xf32>, i32 -> vector<8x128xf32>
    %507 = arith.mulf %505, %506 : vector<8x128xf32>
    %c32_i32_209 = arith.constant 32 : i32
    %508 = tpu.dynamic_rotate %488 by %c32_i32_209 dim 1 : vector<8x128xf32>, i32 -> vector<8x128xf32>
    %509 = arith.mulf %505, %508 : vector<8x128xf32>
    %c96_i32_210 = arith.constant 96 : i32
    %510 = tpu.dynamic_rotate %509 by %c96_i32_210 dim 1 : vector<8x128xf32>, i32 -> vector<8x128xf32>
    %511 = arith.addf %507, %510 : vector<8x128xf32>
    %c32_i32_211 = arith.constant 32 : i32
    %512 = tpu.dynamic_rotate %505 by %c32_i32_211 dim 1 : vector<8x128xf32>, i32 -> vector<8x128xf32>
    %513 = math.tanh %511 : vector<8x128xf32>
    %514 = arith.mulf %512, %513 : vector<8x128xf32>
    %515 = vector.extract_strided_slice %514 {offsets = [0, 0], sizes = [8, 32], strides = [1, 1]} : vector<8x128xf32> to vector<8x32xf32>
    %c8_i32_212 = arith.constant 8 : i32
    %516 = arith.muli %c3_i32_205, %c8_i32_212 : i32
    %517 = tpu.assume_multiple %516, 8 : i32
    %518 = arith.index_cast %517 : i32 to index
    %c0_213 = arith.constant 0 : index
    %519 = vector.load %arg17[%518, %c0_213] : memref<64x32xf32, #tpu.memory_space<vmem>>, vector<8x32xf32>
    tpu.vector_store %arg17[%518, %c0_213], %515 {strides = array<i32>} : memref<64x32xf32, #tpu.memory_space<vmem>>, vector<8x32xf32>,
    %c4_i32_214 = arith.constant 4 : i32
    %cst_215 = arith.constant dense<0.000000e+00> : vector<8x128xf32>
    %520 = tpu.matmul %515, %427, %cst_215 {dimension_numbers = #tpu.dot_dimension_numbers<[1], [0], [0], [1], [0, 0, 1, 1], [], []>} : vector<8x32xf32>, vector<32x128xf32>, vector<8x128xf32> -> vector<8x128xf32>
    %521 = arith.addf %426, %520 : vector<8x128xf32>
    %522 = arith.negf %521 : vector<8x128xf32>
    %523 = math.exp %522 : vector<8x128xf32>
    %cst_216 = arith.constant 1.000000e+00 : f32
    %524 = vector.broadcast %cst_216 : f32 to vector<8x128xf32>
    %525 = arith.addf %524, %523 : vector<8x128xf32>
    %526 = arith.divf %524, %525 : vector<8x128xf32>
    %527 = math.tanh %521 : vector<8x128xf32>
    %528 = arith.select %5, %527, %526 : vector<8x128xi1>, vector<8x128xf32>
    %c64_i32_217 = arith.constant 64 : i32
    %529 = tpu.dynamic_rotate %528 by %c64_i32_217 dim 1 : vector<8x128xf32>, i32 -> vector<8x128xf32>
    %530 = arith.mulf %528, %529 : vector<8x128xf32>
    %c32_i32_218 = arith.constant 32 : i32
    %531 = tpu.dynamic_rotate %511 by %c32_i32_218 dim 1 : vector<8x128xf32>, i32 -> vector<8x128xf32>
    %532 = arith.mulf %528, %531 : vector<8x128xf32>
    %c96_i32_219 = arith.constant 96 : i32
    %533 = tpu.dynamic_rotate %532 by %c96_i32_219 dim 1 : vector<8x128xf32>, i32 -> vector<8x128xf32>
    %534 = arith.addf %530, %533 : vector<8x128xf32>
    %c32_i32_220 = arith.constant 32 : i32
    %535 = tpu.dynamic_rotate %528 by %c32_i32_220 dim 1 : vector<8x128xf32>, i32 -> vector<8x128xf32>
    %536 = math.tanh %534 : vector<8x128xf32>
    %537 = arith.mulf %535, %536 : vector<8x128xf32>
    %538 = vector.extract_strided_slice %537 {offsets = [0, 0], sizes = [8, 32], strides = [1, 1]} : vector<8x128xf32> to vector<8x32xf32>
    %c8_i32_221 = arith.constant 8 : i32
    %539 = arith.muli %c4_i32_214, %c8_i32_221 : i32
    %540 = tpu.assume_multiple %539, 8 : i32
    %541 = arith.index_cast %540 : i32 to index
    %c0_222 = arith.constant 0 : index
    %542 = vector.load %arg17[%541, %c0_222] : memref<64x32xf32, #tpu.memory_space<vmem>>, vector<8x32xf32>
    tpu.vector_store %arg17[%541, %c0_222], %538 {strides = array<i32>} : memref<64x32xf32, #tpu.memory_space<vmem>>, vector<8x32xf32>,
    %c5_i32_223 = arith.constant 5 : i32
    %c0_224 = arith.constant 0 : index
    %c0_225 = arith.constant 0 : index
    %543 = vector.load %arg17[%c0_224, %c0_225] : memref<64x32xf32, #tpu.memory_space<vmem>>, vector<40x32xf32>
    %c0_226 = arith.constant 0 : index
    %c0_227 = arith.constant 0 : index
    %544 = vector.load %arg10[%c0_226, %c0_227] : memref<32x128xf32, #tpu.memory_space<vmem>>, vector<32x128xf32>
    %cst_228 = arith.constant dense<0.000000e+00> : vector<40x128xf32>
    %545 = tpu.matmul %543, %544, %cst_228 {dimension_numbers = #tpu.dot_dimension_numbers<[1], [0], [0], [1], [0, 0, 1, 1], [], []>} : vector<40x32xf32>, vector<32x128xf32>, vector<40x128xf32> -> vector<40x128xf32>
    %c0_229 = arith.constant 0 : index
    %c0_230 = arith.constant 0 : index
    %546 = vector.load %arg12[%c0_229, %c0_230] : memref<1x128xf32, #tpu.memory_space<vmem>>, vector<1x128xf32>
    %547 = vector.broadcast %546 : vector<1x128xf32> to vector<40x128xf32>
    %548 = arith.addf %545, %547 : vector<40x128xf32>
    %c0_231 = arith.constant 0 : index
    %c0_232 = arith.constant 0 : index
    %549 = vector.load %arg16[%c0_231, %c0_232] : memref<64x128xf32, #tpu.memory_space<vmem>>, vector<40x128xf32>
    tpu.vector_store %arg16[%c0_231, %c0_232], %548 {strides = array<i32>} : memref<64x128xf32, #tpu.memory_space<vmem>>, vector<40x128xf32>,
    %c0_233 = arith.constant 0 : index
    %c0_234 = arith.constant 0 : index
    %550 = vector.load %arg11[%c0_233, %c0_234] : memref<32x128xf32, #tpu.memory_space<vmem>>, vector<32x128xf32>
    %c0_i32_235 = arith.constant 0 : i32
    %c8_i32_236 = arith.constant 8 : i32
    %551 = arith.muli %c0_i32_235, %c8_i32_236 : i32
    %552 = tpu.assume_multiple %551, 8 : i32
    %553 = arith.index_cast %552 : i32 to index
    %c0_237 = arith.constant 0 : index
    %554 = vector.load %arg16[%553, %c0_237] : memref<64x128xf32, #tpu.memory_space<vmem>>, vector<8x128xf32>
    %cst_238 = arith.constant dense<0.000000e+00> : vector<8x128xf32>
    %555 = tpu.matmul %423, %550, %cst_238 {dimension_numbers = #tpu.dot_dimension_numbers<[1], [0], [0], [1], [0, 0, 1, 1], [], []>} : vector<8x32xf32>, vector<32x128xf32>, vector<8x128xf32> -> vector<8x128xf32>
    %556 = arith.addf %554, %555 : vector<8x128xf32>
    %557 = arith.negf %556 : vector<8x128xf32>
    %558 = math.exp %557 : vector<8x128xf32>
    %cst_239 = arith.constant 1.000000e+00 : f32
    %559 = vector.broadcast %cst_239 : f32 to vector<8x128xf32>
    %560 = arith.addf %559, %558 : vector<8x128xf32>
    %561 = arith.divf %559, %560 : vector<8x128xf32>
    %562 = math.tanh %556 : vector<8x128xf32>
    %563 = arith.select %5, %562, %561 : vector<8x128xi1>, vector<8x128xf32>
    %c64_i32_240 = arith.constant 64 : i32
    %564 = tpu.dynamic_rotate %563 by %c64_i32_240 dim 1 : vector<8x128xf32>, i32 -> vector<8x128xf32>
    %565 = arith.mulf %563, %564 : vector<8x128xf32>
    %c32_i32_241 = arith.constant 32 : i32
    %566 = tpu.dynamic_rotate %419 by %c32_i32_241 dim 1 : vector<8x128xf32>, i32 -> vector<8x128xf32>
    %567 = arith.mulf %563, %566 : vector<8x128xf32>
    %c96_i32_242 = arith.constant 96 : i32
    %568 = tpu.dynamic_rotate %567 by %c96_i32_242 dim 1 : vector<8x128xf32>, i32 -> vector<8x128xf32>
    %569 = arith.addf %565, %568 : vector<8x128xf32>
    %c32_i32_243 = arith.constant 32 : i32
    %570 = tpu.dynamic_rotate %563 by %c32_i32_243 dim 1 : vector<8x128xf32>, i32 -> vector<8x128xf32>
    %571 = math.tanh %569 : vector<8x128xf32>
    %572 = arith.mulf %570, %571 : vector<8x128xf32>
    %573 = vector.extract_strided_slice %572 {offsets = [0, 0], sizes = [8, 32], strides = [1, 1]} : vector<8x128xf32> to vector<8x32xf32>
    %c8_i32_244 = arith.constant 8 : i32
    %574 = arith.muli %c0_i32_235, %c8_i32_244 : i32
    %575 = tpu.assume_multiple %574, 8 : i32
    %576 = arith.index_cast %575 : i32 to index
    %c0_245 = arith.constant 0 : index
    %577 = vector.load %arg17[%576, %c0_245] : memref<64x32xf32, #tpu.memory_space<vmem>>, vector<8x32xf32>
    tpu.vector_store %arg17[%576, %c0_245], %573 {strides = array<i32>} : memref<64x32xf32, #tpu.memory_space<vmem>>, vector<8x32xf32>,
    %c1_i32_246 = arith.constant 1 : i32
    %c8_i32_247 = arith.constant 8 : i32
    %578 = arith.muli %c1_i32_246, %c8_i32_247 : i32
    %579 = tpu.assume_multiple %578, 8 : i32
    %580 = arith.index_cast %579 : i32 to index
    %c0_248 = arith.constant 0 : index
    %581 = vector.load %arg16[%580, %c0_248] : memref<64x128xf32, #tpu.memory_space<vmem>>, vector<8x128xf32>
    %cst_249 = arith.constant dense<0.000000e+00> : vector<8x128xf32>
    %582 = tpu.matmul %573, %550, %cst_249 {dimension_numbers = #tpu.dot_dimension_numbers<[1], [0], [0], [1], [0, 0, 1, 1], [], []>} : vector<8x32xf32>, vector<32x128xf32>, vector<8x128xf32> -> vector<8x128xf32>
    %583 = arith.addf %581, %582 : vector<8x128xf32>
    %584 = arith.negf %583 : vector<8x128xf32>
    %585 = math.exp %584 : vector<8x128xf32>
    %cst_250 = arith.constant 1.000000e+00 : f32
    %586 = vector.broadcast %cst_250 : f32 to vector<8x128xf32>
    %587 = arith.addf %586, %585 : vector<8x128xf32>
    %588 = arith.divf %586, %587 : vector<8x128xf32>
    %589 = math.tanh %583 : vector<8x128xf32>
    %590 = arith.select %5, %589, %588 : vector<8x128xi1>, vector<8x128xf32>
    %c64_i32_251 = arith.constant 64 : i32
    %591 = tpu.dynamic_rotate %590 by %c64_i32_251 dim 1 : vector<8x128xf32>, i32 -> vector<8x128xf32>
    %592 = arith.mulf %590, %591 : vector<8x128xf32>
    %c32_i32_252 = arith.constant 32 : i32
    %593 = tpu.dynamic_rotate %569 by %c32_i32_252 dim 1 : vector<8x128xf32>, i32 -> vector<8x128xf32>
    %594 = arith.mulf %590, %593 : vector<8x128xf32>
    %c96_i32_253 = arith.constant 96 : i32
    %595 = tpu.dynamic_rotate %594 by %c96_i32_253 dim 1 : vector<8x128xf32>, i32 -> vector<8x128xf32>
    %596 = arith.addf %592, %595 : vector<8x128xf32>
    %c32_i32_254 = arith.constant 32 : i32
    %597 = tpu.dynamic_rotate %590 by %c32_i32_254 dim 1 : vector<8x128xf32>, i32 -> vector<8x128xf32>
    %598 = math.tanh %596 : vector<8x128xf32>
    %599 = arith.mulf %597, %598 : vector<8x128xf32>
    %600 = vector.extract_strided_slice %599 {offsets = [0, 0], sizes = [8, 32], strides = [1, 1]} : vector<8x128xf32> to vector<8x32xf32>
    %c8_i32_255 = arith.constant 8 : i32
    %601 = arith.muli %c1_i32_246, %c8_i32_255 : i32
    %602 = tpu.assume_multiple %601, 8 : i32
    %603 = arith.index_cast %602 : i32 to index
    %c0_256 = arith.constant 0 : index
    %604 = vector.load %arg17[%603, %c0_256] : memref<64x32xf32, #tpu.memory_space<vmem>>, vector<8x32xf32>
    tpu.vector_store %arg17[%603, %c0_256], %600 {strides = array<i32>} : memref<64x32xf32, #tpu.memory_space<vmem>>, vector<8x32xf32>,
    %c2_i32_257 = arith.constant 2 : i32
    %c8_i32_258 = arith.constant 8 : i32
    %605 = arith.muli %c2_i32_257, %c8_i32_258 : i32
    %606 = tpu.assume_multiple %605, 8 : i32
    %607 = arith.index_cast %606 : i32 to index
    %c0_259 = arith.constant 0 : index
    %608 = vector.load %arg16[%607, %c0_259] : memref<64x128xf32, #tpu.memory_space<vmem>>, vector<8x128xf32>
    %cst_260 = arith.constant dense<0.000000e+00> : vector<8x128xf32>
    %609 = tpu.matmul %600, %550, %cst_260 {dimension_numbers = #tpu.dot_dimension_numbers<[1], [0], [0], [1], [0, 0, 1, 1], [], []>} : vector<8x32xf32>, vector<32x128xf32>, vector<8x128xf32> -> vector<8x128xf32>
    %610 = arith.addf %608, %609 : vector<8x128xf32>
    %611 = arith.negf %610 : vector<8x128xf32>
    %612 = math.exp %611 : vector<8x128xf32>
    %cst_261 = arith.constant 1.000000e+00 : f32
    %613 = vector.broadcast %cst_261 : f32 to vector<8x128xf32>
    %614 = arith.addf %613, %612 : vector<8x128xf32>
    %615 = arith.divf %613, %614 : vector<8x128xf32>
    %616 = math.tanh %610 : vector<8x128xf32>
    %617 = arith.select %5, %616, %615 : vector<8x128xi1>, vector<8x128xf32>
    %c64_i32_262 = arith.constant 64 : i32
    %618 = tpu.dynamic_rotate %617 by %c64_i32_262 dim 1 : vector<8x128xf32>, i32 -> vector<8x128xf32>
    %619 = arith.mulf %617, %618 : vector<8x128xf32>
    %c32_i32_263 = arith.constant 32 : i32
    %620 = tpu.dynamic_rotate %596 by %c32_i32_263 dim 1 : vector<8x128xf32>, i32 -> vector<8x128xf32>
    %621 = arith.mulf %617, %620 : vector<8x128xf32>
    %c96_i32_264 = arith.constant 96 : i32
    %622 = tpu.dynamic_rotate %621 by %c96_i32_264 dim 1 : vector<8x128xf32>, i32 -> vector<8x128xf32>
    %623 = arith.addf %619, %622 : vector<8x128xf32>
    %c32_i32_265 = arith.constant 32 : i32
    %624 = tpu.dynamic_rotate %617 by %c32_i32_265 dim 1 : vector<8x128xf32>, i32 -> vector<8x128xf32>
    %625 = math.tanh %623 : vector<8x128xf32>
    %626 = arith.mulf %624, %625 : vector<8x128xf32>
    %627 = vector.extract_strided_slice %626 {offsets = [0, 0], sizes = [8, 32], strides = [1, 1]} : vector<8x128xf32> to vector<8x32xf32>
    %c8_i32_266 = arith.constant 8 : i32
    %628 = arith.muli %c2_i32_257, %c8_i32_266 : i32
    %629 = tpu.assume_multiple %628, 8 : i32
    %630 = arith.index_cast %629 : i32 to index
    %c0_267 = arith.constant 0 : index
    %631 = vector.load %arg17[%630, %c0_267] : memref<64x32xf32, #tpu.memory_space<vmem>>, vector<8x32xf32>
    tpu.vector_store %arg17[%630, %c0_267], %627 {strides = array<i32>} : memref<64x32xf32, #tpu.memory_space<vmem>>, vector<8x32xf32>,
    %c3_i32_268 = arith.constant 3 : i32
    %c8_i32_269 = arith.constant 8 : i32
    %632 = arith.muli %c3_i32_268, %c8_i32_269 : i32
    %633 = tpu.assume_multiple %632, 8 : i32
    %634 = arith.index_cast %633 : i32 to index
    %c0_270 = arith.constant 0 : index
    %635 = vector.load %arg16[%634, %c0_270] : memref<64x128xf32, #tpu.memory_space<vmem>>, vector<8x128xf32>
    %cst_271 = arith.constant dense<0.000000e+00> : vector<8x128xf32>
    %636 = tpu.matmul %627, %550, %cst_271 {dimension_numbers = #tpu.dot_dimension_numbers<[1], [0], [0], [1], [0, 0, 1, 1], [], []>} : vector<8x32xf32>, vector<32x128xf32>, vector<8x128xf32> -> vector<8x128xf32>
    %637 = arith.addf %635, %636 : vector<8x128xf32>
    %638 = arith.negf %637 : vector<8x128xf32>
    %639 = math.exp %638 : vector<8x128xf32>
    %cst_272 = arith.constant 1.000000e+00 : f32
    %640 = vector.broadcast %cst_272 : f32 to vector<8x128xf32>
    %641 = arith.addf %640, %639 : vector<8x128xf32>
    %642 = arith.divf %640, %641 : vector<8x128xf32>
    %643 = math.tanh %637 : vector<8x128xf32>
    %644 = arith.select %5, %643, %642 : vector<8x128xi1>, vector<8x128xf32>
    %c64_i32_273 = arith.constant 64 : i32
    %645 = tpu.dynamic_rotate %644 by %c64_i32_273 dim 1 : vector<8x128xf32>, i32 -> vector<8x128xf32>
    %646 = arith.mulf %644, %645 : vector<8x128xf32>
    %c32_i32_274 = arith.constant 32 : i32
    %647 = tpu.dynamic_rotate %623 by %c32_i32_274 dim 1 : vector<8x128xf32>, i32 -> vector<8x128xf32>
    %648 = arith.mulf %644, %647 : vector<8x128xf32>
    %c96_i32_275 = arith.constant 96 : i32
    %649 = tpu.dynamic_rotate %648 by %c96_i32_275 dim 1 : vector<8x128xf32>, i32 -> vector<8x128xf32>
    %650 = arith.addf %646, %649 : vector<8x128xf32>
    %c32_i32_276 = arith.constant 32 : i32
    %651 = tpu.dynamic_rotate %644 by %c32_i32_276 dim 1 : vector<8x128xf32>, i32 -> vector<8x128xf32>
    %652 = math.tanh %650 : vector<8x128xf32>
    %653 = arith.mulf %651, %652 : vector<8x128xf32>
    %654 = vector.extract_strided_slice %653 {offsets = [0, 0], sizes = [8, 32], strides = [1, 1]} : vector<8x128xf32> to vector<8x32xf32>
    %c8_i32_277 = arith.constant 8 : i32
    %655 = arith.muli %c3_i32_268, %c8_i32_277 : i32
    %656 = tpu.assume_multiple %655, 8 : i32
    %657 = arith.index_cast %656 : i32 to index
    %c0_278 = arith.constant 0 : index
    %658 = vector.load %arg17[%657, %c0_278] : memref<64x32xf32, #tpu.memory_space<vmem>>, vector<8x32xf32>
    tpu.vector_store %arg17[%657, %c0_278], %654 {strides = array<i32>} : memref<64x32xf32, #tpu.memory_space<vmem>>, vector<8x32xf32>,
    %c4_i32_279 = arith.constant 4 : i32
    %c8_i32_280 = arith.constant 8 : i32
    %659 = arith.muli %c4_i32_279, %c8_i32_280 : i32
    %660 = tpu.assume_multiple %659, 8 : i32
    %661 = arith.index_cast %660 : i32 to index
    %c0_281 = arith.constant 0 : index
    %662 = vector.load %arg16[%661, %c0_281] : memref<64x128xf32, #tpu.memory_space<vmem>>, vector<8x128xf32>
    %cst_282 = arith.constant dense<0.000000e+00> : vector<8x128xf32>
    %663 = tpu.matmul %654, %550, %cst_282 {dimension_numbers = #tpu.dot_dimension_numbers<[1], [0], [0], [1], [0, 0, 1, 1], [], []>} : vector<8x32xf32>, vector<32x128xf32>, vector<8x128xf32> -> vector<8x128xf32>
    %664 = arith.addf %662, %663 : vector<8x128xf32>
    %665 = arith.negf %664 : vector<8x128xf32>
    %666 = math.exp %665 : vector<8x128xf32>
    %cst_283 = arith.constant 1.000000e+00 : f32
    %667 = vector.broadcast %cst_283 : f32 to vector<8x128xf32>
    %668 = arith.addf %667, %666 : vector<8x128xf32>
    %669 = arith.divf %667, %668 : vector<8x128xf32>
    %670 = math.tanh %664 : vector<8x128xf32>
    %671 = arith.select %5, %670, %669 : vector<8x128xi1>, vector<8x128xf32>
    %c64_i32_284 = arith.constant 64 : i32
    %672 = tpu.dynamic_rotate %671 by %c64_i32_284 dim 1 : vector<8x128xf32>, i32 -> vector<8x128xf32>
    %673 = arith.mulf %671, %672 : vector<8x128xf32>
    %c32_i32_285 = arith.constant 32 : i32
    %674 = tpu.dynamic_rotate %650 by %c32_i32_285 dim 1 : vector<8x128xf32>, i32 -> vector<8x128xf32>
    %675 = arith.mulf %671, %674 : vector<8x128xf32>
    %c96_i32_286 = arith.constant 96 : i32
    %676 = tpu.dynamic_rotate %675 by %c96_i32_286 dim 1 : vector<8x128xf32>, i32 -> vector<8x128xf32>
    %677 = arith.addf %673, %676 : vector<8x128xf32>
    %c32_i32_287 = arith.constant 32 : i32
    %678 = tpu.dynamic_rotate %671 by %c32_i32_287 dim 1 : vector<8x128xf32>, i32 -> vector<8x128xf32>
    %679 = math.tanh %677 : vector<8x128xf32>
    %680 = arith.mulf %678, %679 : vector<8x128xf32>
    %681 = vector.extract_strided_slice %680 {offsets = [0, 0], sizes = [8, 32], strides = [1, 1]} : vector<8x128xf32> to vector<8x32xf32>
    %c8_i32_288 = arith.constant 8 : i32
    %682 = arith.muli %c4_i32_279, %c8_i32_288 : i32
    %683 = tpu.assume_multiple %682, 8 : i32
    %684 = arith.index_cast %683 : i32 to index
    %c0_289 = arith.constant 0 : index
    %685 = vector.load %arg17[%684, %c0_289] : memref<64x32xf32, #tpu.memory_space<vmem>>, vector<8x32xf32>
    tpu.vector_store %arg17[%684, %c0_289], %681 {strides = array<i32>} : memref<64x32xf32, #tpu.memory_space<vmem>>, vector<8x32xf32>,
    %c5_i32_290 = arith.constant 5 : i32
    %c0_291 = arith.constant 0 : index
    %c0_292 = arith.constant 0 : index
    %686 = vector.load %arg17[%c0_291, %c0_292] : memref<64x32xf32, #tpu.memory_space<vmem>>, vector<40x32xf32>
    %c0_293 = arith.constant 0 : index
    %c0_294 = arith.constant 0 : index
    %687 = vector.load %arg13[%c0_293, %c0_294] : memref<32x128xf32, #tpu.memory_space<vmem>>, vector<32x128xf32>
    %cst_295 = arith.constant dense<0.000000e+00> : vector<40x128xf32>
    %688 = tpu.matmul %686, %687, %cst_295 {dimension_numbers = #tpu.dot_dimension_numbers<[1], [0], [0], [1], [0, 0, 1, 1], [], []>} : vector<40x32xf32>, vector<32x128xf32>, vector<40x128xf32> -> vector<40x128xf32>
    %c0_296 = arith.constant 0 : index
    %c0_297 = arith.constant 0 : index
    %689 = vector.load %arg14[%c0_296, %c0_297] : memref<1x128xf32, #tpu.memory_space<vmem>>, vector<1x128xf32>
    %690 = vector.broadcast %689 : vector<1x128xf32> to vector<40x128xf32>
    %691 = arith.addf %688, %690 : vector<40x128xf32>
    %c0_298 = arith.constant 0 : index
    %c0_299 = arith.constant 0 : index
    %692 = vector.load %arg15[%c0_298, %c0_299] : memref<40x128xf32, #tpu.memory_space<vmem>>, vector<40x128xf32>
    tpu.vector_store %arg15[%c0_298, %c0_299], %691 {strides = array<i32>} : memref<40x128xf32, #tpu.memory_space<vmem>>, vector<40x128xf32>,
    return
  }
  func.func @transform_0(%arg0: i32) -> (i32, i32) {
    %c0_i32 = arith.constant 0 : i32
    %c0_i32_0 = arith.constant 0 : i32
    %c0_i32_1 = arith.constant 0 : i32
    return %c0_i32, %c0_i32_0 : i32, i32
  }
  func.func @transform_1(%arg0: i32) -> (i32, i32) {
    %c0_i32 = arith.constant 0 : i32
    %c0_i32_0 = arith.constant 0 : i32
    %c0_i32_1 = arith.constant 0 : i32
    return %c0_i32, %c0_i32_0 : i32, i32
  }
  func.func @transform_2(%arg0: i32) -> (i32, i32) {
    %c0_i32 = arith.constant 0 : i32
    %c0_i32_0 = arith.constant 0 : i32
    %c0_i32_1 = arith.constant 0 : i32
    return %c0_i32, %c0_i32_0 : i32, i32
  }
  func.func @transform_3(%arg0: i32) -> (i32, i32) {
    %c0_i32 = arith.constant 0 : i32
    %c0_i32_0 = arith.constant 0 : i32
    %c0_i32_1 = arith.constant 0 : i32
    return %c0_i32, %c0_i32_0 : i32, i32
  }
  func.func @transform_4(%arg0: i32) -> (i32, i32) {
    %c0_i32 = arith.constant 0 : i32
    %c0_i32_0 = arith.constant 0 : i32
    %c0_i32_1 = arith.constant 0 : i32
    return %c0_i32, %c0_i32_0 : i32, i32
  }
  func.func @transform_5(%arg0: i32) -> (i32, i32) {
    %c0_i32 = arith.constant 0 : i32
    %c0_i32_0 = arith.constant 0 : i32
    %c0_i32_1 = arith.constant 0 : i32
    return %c0_i32, %c0_i32_0 : i32, i32
  }
  func.func @transform_6(%arg0: i32) -> (i32, i32) {
    %c0_i32 = arith.constant 0 : i32
    %c0_i32_0 = arith.constant 0 : i32
    %c0_i32_1 = arith.constant 0 : i32
    return %c0_i32, %c0_i32_0 : i32, i32
  }
  func.func @transform_7(%arg0: i32) -> (i32, i32) {
    %c0_i32 = arith.constant 0 : i32
    %c0_i32_0 = arith.constant 0 : i32
    %c0_i32_1 = arith.constant 0 : i32
    return %c0_i32, %c0_i32_0 : i32, i32
  }
  func.func @transform_8(%arg0: i32) -> (i32, i32) {
    %c0_i32 = arith.constant 0 : i32
    %c0_i32_0 = arith.constant 0 : i32
    %c0_i32_1 = arith.constant 0 : i32
    return %c0_i32, %c0_i32_0 : i32, i32
  }
  func.func @transform_9(%arg0: i32) -> (i32, i32) {
    %c0_i32 = arith.constant 0 : i32
    %c0_i32_0 = arith.constant 0 : i32
    %c0_i32_1 = arith.constant 0 : i32
    return %c0_i32, %c0_i32_0 : i32, i32
  }
  func.func @transform_10(%arg0: i32) -> (i32, i32) {
    %c0_i32 = arith.constant 0 : i32
    %c0_i32_0 = arith.constant 0 : i32
    %c0_i32_1 = arith.constant 0 : i32
    return %c0_i32, %c0_i32_0 : i32, i32
  }
  func.func @transform_11(%arg0: i32) -> (i32, i32) {
    %c0_i32 = arith.constant 0 : i32
    %c0_i32_0 = arith.constant 0 : i32
    %c0_i32_1 = arith.constant 0 : i32
    return %c0_i32, %c0_i32_0 : i32, i32
  }
  func.func @transform_12(%arg0: i32) -> (i32, i32) {
    %c0_i32 = arith.constant 0 : i32
    %c0_i32_0 = arith.constant 0 : i32
    %c0_i32_1 = arith.constant 0 : i32
    return %c0_i32, %c0_i32_0 : i32, i32
  }
  func.func @transform_13(%arg0: i32) -> (i32, i32) {
    %c0_i32 = arith.constant 0 : i32
    %c0_i32_0 = arith.constant 0 : i32
    %c0_i32_1 = arith.constant 0 : i32
    return %c0_i32, %c0_i32_0 : i32, i32
  }
  func.func @transform_14(%arg0: i32) -> (i32, i32) {
    %c0_i32 = arith.constant 0 : i32
    %c0_i32_0 = arith.constant 0 : i32
    %c0_i32_1 = arith.constant 0 : i32
    return %c0_i32, %c0_i32_0 : i32, i32
  }
}

</mosaic_0001>

<llo_original>
// kernel: tpu_custom_call.1
$region0: #{tpu_custom_call.1}
  #allocation0 [shape = 'u32[]', space=smem, size = 0x4, offset = 0x4, fixed_abs, tag = 'smem constant byte address 0x4 - core index']
  #allocation1 [shape = 'u32[144,128]{1,0:T(1,128)}', space=vmem, size = 0x12000, scoped, tag = 'internal scratch']
  #allocation2 [shape = 'f32[64,128]{1,0:T(8,128)}', space=vmem, size = 0x8000, scoped, tag = 'scratch operand']
  #allocation3 [shape = 'f32[64,32]{1,0:T(8,128)}', space=vmem, size = 0x8000, scoped, tag = 'scratch operand']
  %s0 = inlined_call_operand.vmem [shape: f32[64,8], index: 0, kind: input, shape index: {}]
  %s1 = inlined_call_operand.hbm [shape: f32[8,128], index: 1, kind: input, shape index: {}]
  %s2 = inlined_call_operand.vmem [shape: f32[32,128], index: 2, kind: input, shape index: {}]
  %s3 = inlined_call_operand.vmem [shape: f32[1,128], index: 3, kind: input, shape index: {}]
  %s4 = inlined_call_operand.vmem [shape: f32[32,128], index: 4, kind: input, shape index: {}]
  %s5 = inlined_call_operand.hbm [shape: f32[32,128], index: 5, kind: input, shape index: {}]
  %s6 = inlined_call_operand.vmem [shape: f32[1,128], index: 6, kind: input, shape index: {}]
  %s7 = inlined_call_operand.vmem [shape: f32[32,128], index: 7, kind: input, shape index: {}]
  %s8 = inlined_call_operand.vmem [shape: f32[1,128], index: 8, kind: input, shape index: {}]
  %s9 = inlined_call_operand.hbm [shape: f32[32,128], index: 9, kind: input, shape index: {}]
  %s10 = inlined_call_operand.hbm [shape: f32[32,128], index: 10, kind: input, shape index: {}]
  %s11 = inlined_call_operand.vmem [shape: f32[1,128], index: 11, kind: input, shape index: {}]
  %s12 = inlined_call_operand.hbm [shape: f32[32,128], index: 12, kind: input, shape index: {}]
  %s13 = inlined_call_operand.vmem [shape: f32[1,128], index: 13, kind: input, shape index: {}]
  %s14 = inlined_call_operand.hbm [shape: f32[40,128], index: 14, kind: output, shape index: {}]
  %s15 = sld [smem:[#allocation0]]
  $region86: #{tpu_custom_call.1} parent=0
    _
  %s17 = ssub.s32 1, %s15
  %s18 = scalar_select 0, %s17, %s15
  $region1: #{tpu_custom_call.1} parent=0
    #allocation4 [shape = 'u8[4096]{0}', space=vmem, size = 0x1000, scoped, tag = 'input window, operand 1, single buffered']
    #allocation5 [shape = 's32[1]{0}', space=sflag, size = 0x4, scoped, tag = 'scoped memory for tpu_custom_call.1']
    #allocation6 [shape = 's32[1]{0}', space=sflag, size = 0x4, scoped, tag = 'scoped memory for tpu_custom_call.1']
    #allocation7 [shape = 'u8[16384]{0}', space=vmem, size = 0x4000, scoped, tag = 'input window, operand 5, single buffered']
    #allocation8 [shape = 's32[1]{0}', space=sflag, size = 0x4, scoped, tag = 'scoped memory for tpu_custom_call.1']
    #allocation9 [shape = 'u8[16384]{0}', space=vmem, size = 0x4000, scoped, tag = 'input window, operand 9, single buffered']
    #allocation10 [shape = 'u8[16384]{0}', space=vmem, size = 0x4000, scoped, tag = 'input window, operand 10, single buffered']
    #allocation11 [shape = 's32[1]{0}', space=sflag, size = 0x4, scoped, tag = 'scoped memory for tpu_custom_call.1']
    #allocation12 [shape = 'u8[16384]{0}', space=vmem, size = 0x4000, scoped, tag = 'input window, operand 12, single buffered']
    #allocation13 [shape = 'u8[20480]{0}', space=vmem, size = 0x5000, scoped, tag = 'output window, operand 0, single buffered']
    %19 = vsyncpa [#allocation5], 0
    %20 = vsyncpa [#allocation8], 0
    %21 = vsyncpa [#allocation11], 0
    %22 = vsyncpa [#allocation6], 0
    // Predicated region
    $region2: #{tpu_custom_call.1} parent=1 // pred_check
      _
    $region3: #{tpu_custom_call.1} parent=1 // pred_check_branch
      %24 = sbr.rel (0) target = $region5
    $region4: #{tpu_custom_call.1} parent=1 // pred_region
      _
    $region5: #{tpu_custom_call.1} parent=1 // pred_fallthru
      _
    // Predicated region
    $region6: #{tpu_custom_call.1} parent=1 // pred_check
      _
    $region7: #{tpu_custom_call.1} parent=1 // pred_check_branch
      %26 = sbr.rel (0) target = $region9
    $region8: #{tpu_custom_call.1} parent=1 // pred_region
      %s28 = ssub.s32 128, 128
      %29 = vsyncadd [#allocation5], %s28
      %s31 = sshll.u32 [#allocation4], 4
      %s32 = int_to_ptr.vmem [resolvable:$true] %s31
      %34 = dma.hbm_to_vmem [thread:$0]  %s1, 128, %s32, [#allocation5]
    $region9: #{tpu_custom_call.1} parent=1 // pred_fallthru
      _
    // Predicated region
    $region10: #{tpu_custom_call.1} parent=1 // pred_check
      _
    $region11: #{tpu_custom_call.1} parent=1 // pred_check_branch
      %36 = sbr.rel (0) target = $region13
    $region12: #{tpu_custom_call.1} parent=1 // pred_region
      _
    $region13: #{tpu_custom_call.1} parent=1 // pred_fallthru
      _
    // Predicated region
    $region14: #{tpu_custom_call.1} parent=1 // pred_check
      _
    $region15: #{tpu_custom_call.1} parent=1 // pred_check_branch
      %38 = sbr.rel (0) target = $region17
    $region16: #{tpu_custom_call.1} parent=1 // pred_region
      _
    $region17: #{tpu_custom_call.1} parent=1 // pred_fallthru
      _
    // Predicated region
    $region18: #{tpu_custom_call.1} parent=1 // pred_check
      _
    $region19: #{tpu_custom_call.1} parent=1 // pred_check_branch
      %40 = sbr.rel (0) target = $region21
    $region20: #{tpu_custom_call.1} parent=1 // pred_region
      _
    $region21: #{tpu_custom_call.1} parent=1 // pred_fallthru
      _
    // Predicated region
    $region22: #{tpu_custom_call.1} parent=1 // pred_check
      _
    $region23: #{tpu_custom_call.1} parent=1 // pred_check_branch
      %42 = sbr.rel (0) target = $region25
    $region24: #{tpu_custom_call.1} parent=1 // pred_region
      %s44 = ssub.s32 512, 512
      %45 = vsyncadd [#allocation8], %s44
      %s46 = sshll.u32 [#allocation7], 4
      %s47 = int_to_ptr.vmem [resolvable:$true] %s46
      %52 = dma.hbm_to_vmem [thread:$0]  %s5, 512, %s47, [#allocation8], 128, 128, 8
    $region25: #{tpu_custom_call.1} parent=1 // pred_fallthru
      _
    // Predicated region
    $region26: #{tpu_custom_call.1} parent=1 // pred_check
      _
    $region27: #{tpu_custom_call.1} parent=1 // pred_check_branch
      %54 = sbr.rel (0) target = $region29
    $region28: #{tpu_custom_call.1} parent=1 // pred_region
      _
    $region29: #{tpu_custom_call.1} parent=1 // pred_fallthru
      _
    // Predicated region
    $region30: #{tpu_custom_call.1} parent=1 // pred_check
      _
    $region31: #{tpu_custom_call.1} parent=1 // pred_check_branch
      %56 = sbr.rel (0) target = $region33
    $region32: #{tpu_custom_call.1} parent=1 // pred_region
      _
    $region33: #{tpu_custom_call.1} parent=1 // pred_fallthru
      _
    // Predicated region
    $region34: #{tpu_custom_call.1} parent=1 // pred_check
      _
    $region35: #{tpu_custom_call.1} parent=1 // pred_check_branch
      %58 = sbr.rel (0) target = $region37
    $region36: #{tpu_custom_call.1} parent=1 // pred_region
      _
    $region37: #{tpu_custom_call.1} parent=1 // pred_fallthru
      _
    // Predicated region
    $region38: #{tpu_custom_call.1} parent=1 // pred_check
      _
    $region39: #{tpu_custom_call.1} parent=1 // pred_check_branch
      %60 = sbr.rel (0) target = $region41
    $region40: #{tpu_custom_call.1} parent=1 // pred_region
      %s62 = ssub.s32 512, 512
      %63 = vsyncadd [#allocation8], %s62
      %s64 = sshll.u32 [#allocation9], 4
      %s65 = int_to_ptr.vmem [resolvable:$true] %s64
      %70 = dma.hbm_to_vmem [thread:$0]  %s9, 512, %s65, [#allocation8], 128, 128, 8
    $region41: #{tpu_custom_call.1} parent=1 // pred_fallthru
      _
    // Predicated region
    $region42: #{tpu_custom_call.1} parent=1 // pred_check
      _
    $region43: #{tpu_custom_call.1} parent=1 // pred_check_branch
      %72 = sbr.rel (0) target = $region45
    $region44: #{tpu_custom_call.1} parent=1 // pred_region
      %s74 = ssub.s32 512, 512
      %75 = vsyncadd [#allocation11], %s74
      %s76 = sshll.u32 [#allocation10], 4
      %s77 = int_to_ptr.vmem [resolvable:$true] %s76
      %82 = dma.hbm_to_vmem [thread:$0]  %s10, 512, %s77, [#allocation11], 128, 128, 8
    $region45: #{tpu_custom_call.1} parent=1 // pred_fallthru
      _
    // Predicated region
    $region46: #{tpu_custom_call.1} parent=1 // pred_check
      _
    $region47: #{tpu_custom_call.1} parent=1 // pred_check_branch
      %84 = sbr.rel (0) target = $region49
    $region48: #{tpu_custom_call.1} parent=1 // pred_region
      _
    $region49: #{tpu_custom_call.1} parent=1 // pred_fallthru
      _
    // Predicated region
    $region50: #{tpu_custom_call.1} parent=1 // pred_check
      _
    $region51: #{tpu_custom_call.1} parent=1 // pred_check_branch
      %86 = sbr.rel (0) target = $region53
    $region52: #{tpu_custom_call.1} parent=1 // pred_region
      %s88 = ssub.s32 512, 512
      %89 = vsyncadd [#allocation11], %s88
      %s90 = sshll.u32 [#allocation12], 4
      %s91 = int_to_ptr.vmem [resolvable:$true] %s90
      %96 = dma.hbm_to_vmem [thread:$0]  %s12, 512, %s91, [#allocation11], 128, 128, 8
    $region53: #{tpu_custom_call.1} parent=1 // pred_fallthru
      _
    // Predicated region
    $region54: #{tpu_custom_call.1} parent=1 // pred_check
      _
    $region55: #{tpu_custom_call.1} parent=1 // pred_check_branch
      %98 = sbr.rel (0) target = $region57
    $region56: #{tpu_custom_call.1} parent=1 // pred_region
      _
    $region57: #{tpu_custom_call.1} parent=1 // pred_fallthru
      _
    // Predicated region
    $region58: #{tpu_custom_call.1} parent=1 // pred_check
      _
    $region59: #{tpu_custom_call.1} parent=1 // pred_check_branch
      %100 = sbr.rel (0) target = $region61
    $region60: #{tpu_custom_call.1} parent=1 // pred_region
      %101 = dma.done [#allocation5], 128
    $region61: #{tpu_custom_call.1} parent=1 // pred_fallthru
      _
    // Predicated region
    $region62: #{tpu_custom_call.1} parent=1 // pred_check
      _
    $region63: #{tpu_custom_call.1} parent=1 // pred_check_branch
      %103 = sbr.rel (0) target = $region65
    $region64: #{tpu_custom_call.1} parent=1 // pred_region
      %104 = dma.done [#allocation8], 512
    $region65: #{tpu_custom_call.1} parent=1 // pred_fallthru
      _
    // Predicated region
    $region66: #{tpu_custom_call.1} parent=1 // pred_check
      _
    $region67: #{tpu_custom_call.1} parent=1 // pred_check_branch
      %106 = sbr.rel (0) target = $region69
    $region68: #{tpu_custom_call.1} parent=1 // pred_region
      %107 = dma.done [#allocation8], 512
    $region69: #{tpu_custom_call.1} parent=1 // pred_fallthru
      _
    // Predicated region
    $region70: #{tpu_custom_call.1} parent=1 // pred_check
      _
    $region71: #{tpu_custom_call.1} parent=1 // pred_check_branch
      %109 = sbr.rel (0) target = $region73
    $region72: #{tpu_custom_call.1} parent=1 // pred_region
      %110 = dma.done [#allocation11], 512
    $region73: #{tpu_custom_call.1} parent=1 // pred_fallthru
      _
    // Predicated region
    $region74: #{tpu_custom_call.1} parent=1 // pred_check
      _
    $region75: #{tpu_custom_call.1} parent=1 // pred_check_branch
      %112 = sbr.rel (0) target = $region77
    $region76: #{tpu_custom_call.1} parent=1 // pred_region
      %113 = dma.done [#allocation11], 512
    $region77: #{tpu_custom_call.1} parent=1 // pred_fallthru
      _
    %v114 = vlaneseq
    %v115 = vand.u32 %v114, 127
    %vm116 = vcmp.ge.s32.totalorder %v115, 64
    %vm117 = vcmp.lt.s32.totalorder %v115, 96
    %vm118 = vmand %vm116, %vm117
    %v119 = vld [vmem:[%s0] sm:$0xff]
    %v120 = vld [vmem:[%s0 + $0x8] sm:$0xff]
    %v121 = vld [vmem:[%s0 + $0x10] sm:$0xff]
    %v122 = vld [vmem:[%s0 + $0x18] sm:$0xff]
    %v123 = vld [vmem:[%s0 + $0x20] sm:$0xff]
    %v124 = vld [vmem:[%s0 + $0x28] sm:$0xff]
    %v125 = vld [vmem:[%s0 + $0x30] sm:$0xff]
    %v126 = vld [vmem:[%s0 + $0x38] sm:$0xff]
    %v127 = vld [vmem:[#allocation4] sm:$0xff]
    %v128 = vld [vmem:[%s3] sm:$0x1]
    %v130 = vlaneseq
    %v131 = vshrl.u32 %v130, 7
    %v132 = vsub.s32 0, %v131
    %v133 = vrot.slane %v128, %v132
    %vm135 = vcmask 64512
    %v137 = vsel %vm135, %v119, 0
    %v140 = vsel %vm135, %v120, 0
    %v143 = vsel %vm135, %v121, 0
    %v146 = vsel %vm135, %v122, 0
    %v149 = vsel %vm135, %v123, 0
    %v152 = vsel %vm135, %v124, 0
    %v155 = vsel %vm135, %v125, 0
    %v158 = vsel %vm135, %v126, 0
    %160 = vmatprep.subr.mxu0 0.0
    %161 = vmatpush1.msra.mxu0 %v127
    %162 = vmatprep.subr.mxu0 0.0
    %163 = vmatpush1.msra.mxu0 0.0
    %164 = vmatprep.subr.mxu0 0.0
    %165 = vmatpush1.msra.mxu0 0.0
    %166 = vmatprep.subr.mxu0 0.0
    %167 = vmatpush1.msra.mxu0 0.0
    %168 = vmatprep.subr.mxu0 0.0
    %169 = vmatpush1.msra.mxu0 0.0
    %170 = vmatprep.subr.mxu0 0.0
    %171 = vmatpush1.msra.mxu0 0.0
    %172 = vmatprep.subr.mxu0 0.0
    %173 = vmatpush1.msra.mxu0 0.0
    %174 = vmatprep.subr.mxu0 0.0
    %175 = vmatpush1.msra.mxu0 0.0
    %176 = vmatprep.subr.mxu0 0.0
    %177 = vmatpush1.msra.mxu0 0.0
    %178 = vmatprep.subr.mxu0 0.0
    %179 = vmatpush1.msra.mxu0 0.0
    %180 = vmatprep.subr.mxu0 0.0
    %181 = vmatpush1.msra.mxu0 0.0
    %182 = vmatprep.subr.mxu0 0.0
    %183 = vmatpush1.msra.mxu0 0.0
    %184 = vmatprep.subr.mxu0 0.0
    %185 = vmatpush1.msra.mxu0 0.0
    %186 = vmatprep.subr.mxu0 0.0
    %187 = vmatpush1.msra.mxu0 0.0
    %188 = vmatprep.subr.mxu0 0.0
    %189 = vmatpush1.msra.mxu0 0.0
    %190 = vmatprep.subr.mxu0 0.0
    %191 = vmatpush1.msra.mxu0 0.0
    %192 = vmatprep.subr.mxu0 0.0
    %193 = vmatpush1.msra.mxu0 0.0
    %194 = vmatprep.subr.mxu0 0.0
    %195 = vmatpush1.msra.mxu0 0.0
    %196 = vmatprep.subr.mxu0 0.0
    %197 = vmatpush1.msra.mxu0 0.0
    %198 = vmatprep.subr.mxu0 0.0
    %199 = vmatpush1.msra.mxu0 0.0
    %200 = vmatprep.subr.mxu0 0.0
    %201 = vmatpush1.msra.mxu0 0.0
    %202 = vmatprep.subr.mxu0 0.0
    %203 = vmatpush1.msra.mxu0 0.0
    %204 = vmatprep.subr.mxu0 0.0
    %205 = vmatpush1.msra.mxu0 0.0
    %206 = vmatprep.subr.mxu0 0.0
    %207 = vmatpush1.msra.mxu0 0.0
    %208 = vmatprep.subr.mxu0 0.0
    %209 = vmatpush1.msra.mxu0 0.0
    %210 = vmatprep.subr.mxu0 0.0
    %211 = vmatpush1.msra.mxu0 0.0
    %212 = vmatprep.subr.mxu0 0.0
    %213 = vmatpush1.msra.mxu0 0.0
    %214 = vmatprep.subr.mxu0 0.0
    %215 = vmatpush1.msra.mxu0 0.0
    %216 = vmatprep.subr.mxu0 0.0
    %217 = vmatpush1.msra.mxu0 0.0
    %218 = vmatprep.subr.mxu0 0.0
    %219 = vmatpush1.msra.mxu0 0.0
    %220 = vmatprep.subr.mxu0 0.0
    %221 = vmatpush1.msra.mxu0 0.0
    %222 = vmatprep.subr.mxu0 0.0
    %223 = vmatpush1.msra.mxu0 0.0
    %224 = vmatprep.mubr.f32.mxu0 0.0
    %225 = vmatmul.mubr.f32.gmra.mrb[0].mxu0 %v137
    %v226 = vpop.f32.mrb[0].mxu0
    %v227 = vadd.f32 %v133, %v226
    %v228 = vpop.f32.mrb[0].mxu0
    %229 = vmatprep.mubr.f32.mxu0 0.0
    %230 = vmatmul.mubr.f32.gmra.mrb[0].mxu0 %v140
    %v231 = vpop.f32.mrb[0].mxu0
    %v232 = vadd.f32 %v133, %v231
    %v233 = vpop.f32.mrb[0].mxu0
    %234 = vmatprep.mubr.f32.mxu0 0.0
    %235 = vmatmul.mubr.f32.gmra.mrb[0].mxu0 %v143
    %v236 = vpop.f32.mrb[0].mxu0
    %v237 = vadd.f32 %v133, %v236
    %v238 = vpop.f32.mrb[0].mxu0
    %239 = vmatprep.mubr.f32.mxu0 0.0
    %240 = vmatmul.mubr.f32.gmra.mrb[0].mxu0 %v146
    %v241 = vpop.f32.mrb[0].mxu0
    %v242 = vadd.f32 %v133, %v241
    %v243 = vpop.f32.mrb[0].mxu0
    %244 = vmatprep.mubr.f32.mxu0 0.0
    %245 = vmatmul.mubr.f32.gmra.mrb[0].mxu0 %v149
    %v246 = vpop.f32.mrb[0].mxu0
    %v247 = vadd.f32 %v133, %v246
    %v248 = vpop.f32.mrb[0].mxu0
    %249 = vmatprep.mubr.f32.mxu0 0.0
    %250 = vmatmul.mubr.f32.gmra.mrb[0].mxu0 %v152
    %v251 = vpop.f32.mrb[0].mxu0
    %v252 = vadd.f32 %v133, %v251
    %v253 = vpop.f32.mrb[0].mxu0
    %254 = vmatprep.mubr.f32.mxu0 0.0
    %255 = vmatmul.mubr.f32.gmra.mrb[0].mxu0 %v155
    %v256 = vpop.f32.mrb[0].mxu0
    %v257 = vadd.f32 %v133, %v256
    %v258 = vpop.f32.mrb[0].mxu0
    %259 = vmatprep.mubr.f32.mxu0 0.0
    %260 = vmatmul.mubr.f32.gmra.mrb[0].mxu0 %v158
    %v261 = vpop.f32.mrb[0].mxu0
    %v262 = vadd.f32 %v133, %v261
    %v263 = vpop.f32.mrb[0].mxu0
    %264 = vdwg.mxu0
    %265 = vst [vmem:[#allocation2] sm:$0xff] %v227
    %266 = vst [vmem:[#allocation2 + $0x8] sm:$0xff] %v232
    %267 = vst [vmem:[#allocation2 + $0x10] sm:$0xff] %v237
    %268 = vst [vmem:[#allocation2 + $0x18] sm:$0xff] %v242
    %269 = vst [vmem:[#allocation2 + $0x20] sm:$0xff] %v247
    %270 = vst [vmem:[#allocation2 + $0x28] sm:$0xff] %v252
    %271 = vst [vmem:[#allocation2 + $0x30] sm:$0xff] %v257
    %272 = vst [vmem:[#allocation2 + $0x38] sm:$0xff] %v262
    %v273 = vld [vmem:[%s2] sm:$0xff]
    %v274 = vld [vmem:[%s2 + $0x8] sm:$0xff]
    %v275 = vld [vmem:[%s2 + $0x10] sm:$0xff]
    %v276 = vld [vmem:[%s2 + $0x18] sm:$0xff]
    %v277 = vld [vmem:[#allocation2] sm:$0xff]
    %vm278 = vcmask 261120
    %v280 = vsel %vm278, 0.0, 0
    %282 = vmatprep.subr.mxu0 0.0
    %283 = vmatpush1.msra.mxu0 %v273
    %284 = vmatprep.subr.mxu0 0.0
    %285 = vmatpush1.msra.mxu0 %v274
    %286 = vmatprep.subr.mxu0 0.0
    %287 = vmatpush1.msra.mxu0 %v275
    %288 = vmatprep.subr.mxu0 0.0
    %289 = vmatpush1.msra.mxu0 %v276
    %290 = vmatprep.subr.mxu0 0.0
    %291 = vmatpush1.msra.mxu0 0.0
    %292 = vmatprep.subr.mxu0 0.0
    %293 = vmatpush1.msra.mxu0 0.0
    %294 = vmatprep.subr.mxu0 0.0
    %295 = vmatpush1.msra.mxu0 0.0
    %296 = vmatprep.subr.mxu0 0.0
    %297 = vmatpush1.msra.mxu0 0.0
    %298 = vmatprep.subr.mxu0 0.0
    %299 = vmatpush1.msra.mxu0 0.0
    %300 = vmatprep.subr.mxu0 0.0
    %301 = vmatpush1.msra.mxu0 0.0
    %302 = vmatprep.subr.mxu0 0.0
    %303 = vmatpush1.msra.mxu0 0.0
    %304 = vmatprep.subr.mxu0 0.0
    %305 = vmatpush1.msra.mxu0 0.0
    %306 = vmatprep.subr.mxu0 0.0
    %307 = vmatpush1.msra.mxu0 0.0
    %308 = vmatprep.subr.mxu0 0.0
    %309 = vmatpush1.msra.mxu0 0.0
    %310 = vmatprep.subr.mxu0 0.0
    %311 = vmatpush1.msra.mxu0 0.0
    %312 = vmatprep.subr.mxu0 0.0
    %313 = vmatpush1.msra.mxu0 0.0
    %314 = vmatprep.subr.mxu0 0.0
    %315 = vmatpush1.msra.mxu0 0.0
    %316 = vmatprep.subr.mxu0 0.0
    %317 = vmatpush1.msra.mxu0 0.0
    %318 = vmatprep.subr.mxu0 0.0
    %319 = vmatpush1.msra.mxu0 0.0
    %320 = vmatprep.subr.mxu0 0.0
    %321 = vmatpush1.msra.mxu0 0.0
    %322 = vmatprep.subr.mxu0 0.0
    %323 = vmatpush1.msra.mxu0 0.0
    %324 = vmatprep.subr.mxu0 0.0
    %325 = vmatpush1.msra.mxu0 0.0
    %326 = vmatprep.subr.mxu0 0.0
    %327 = vmatpush1.msra.mxu0 0.0
    %328 = vmatprep.subr.mxu0 0.0
    %329 = vmatpush1.msra.mxu0 0.0
    %330 = vmatprep.subr.mxu0 0.0
    %331 = vmatpush1.msra.mxu0 0.0
    %332 = vmatprep.subr.mxu0 0.0
    %333 = vmatpush1.msra.mxu0 0.0
    %334 = vmatprep.subr.mxu0 0.0
    %335 = vmatpush1.msra.mxu0 0.0
    %336 = vmatprep.subr.mxu0 0.0
    %337 = vmatpush1.msra.mxu0 0.0
    %338 = vmatprep.subr.mxu0 0.0
    %339 = vmatpush1.msra.mxu0 0.0
    %340 = vmatprep.subr.mxu0 0.0
    %341 = vmatpush1.msra.mxu0 0.0
    %342 = vmatprep.subr.mxu0 0.0
    %343 = vmatpush1.msra.mxu0 0.0
    %344 = vmatprep.subr.mxu0 0.0
    %345 = vmatpush1.msra.mxu0 0.0
    %346 = vmatprep.mubr.f32.mxu0 0.0
    %347 = vmatmul.mubr.f32.gmra.mrb[0].mxu0 %v280
    %v348 = vpop.f32.mrb[0].mxu0
    %v349 = vadd.f32 0.0, %v348
    %v350 = vpop.f32.mrb[0].mxu0
    %351 = vdwg.mxu0
    %v352 = vadd.f32 %v277, %v349
    %v353 = vxor.u32 %v352, 2147483648
    %v354 = vmul.f32 %v353, 1.442695
    %v355 = vpow.pop %v354
    %v356 = vadd.f32 %v355, 1.0
    %v357 = vrcp.pop %v356
    %v358 = vmul.f32 1.0, %v357
    %v359 = vtanh.pop %v352
    %v360 = vsel %vm118, %v359, %v358
    %361 = vrot.lane.b32.xlu0 %v360, 64
    %v362 = vpop.permute.xlu0 %361
    %v363 = vmul.f32 %v360, %v362
    %364 = vrot.lane.b32.xlu0 0.0, 32
    %v365 = vpop.permute.xlu0 %364
    %v366 = vmul.f32 %v360, %v365
    %367 = vrot.lane.b32.xlu0 %v366, 96
    %v368 = vpop.permute.xlu0 %367
    %v369 = vadd.f32 %v363, %v368
    %370 = vrot.lane.b32.xlu0 %v360, 32
    %v371 = vpop.permute.xlu0 %370
    %v372 = vtanh.pop %v369
    %v373 = vmul.f32 %v371, %v372
    %374 = vst.msk [vmem:[#allocation3] sm:$0xff] %vm278, %v373
    %s375 = scalar_lea.vmem [#allocation2], 8
    %v376 = vld [vmem:[%s375] sm:$0xff]
    %v378 = vsel %vm278, %v373, 0
    %380 = vmatprep.subr.mxu0 0.0
    %381 = vmatpush1.msra.mxu0 %v273
    %382 = vmatprep.subr.mxu0 0.0
    %383 = vmatpush1.msra.mxu0 %v274
    %384 = vmatprep.subr.mxu0 0.0
    %385 = vmatpush1.msra.mxu0 %v275
    %386 = vmatprep.subr.mxu0 0.0
    %387 = vmatpush1.msra.mxu0 %v276
    %388 = vmatprep.subr.mxu0 0.0
    %389 = vmatpush1.msra.mxu0 0.0
    %390 = vmatprep.subr.mxu0 0.0
    %391 = vmatpush1.msra.mxu0 0.0
    %392 = vmatprep.subr.mxu0 0.0
    %393 = vmatpush1.msra.mxu0 0.0
    %394 = vmatprep.subr.mxu0 0.0
    %395 = vmatpush1.msra.mxu0 0.0
    %396 = vmatprep.subr.mxu0 0.0
    %397 = vmatpush1.msra.mxu0 0.0
    %398 = vmatprep.subr.mxu0 0.0
    %399 = vmatpush1.msra.mxu0 0.0
    %400 = vmatprep.subr.mxu0 0.0
    %401 = vmatpush1.msra.mxu0 0.0
    %402 = vmatprep.subr.mxu0 0.0
    %403 = vmatpush1.msra.mxu0 0.0
    %404 = vmatprep.subr.mxu0 0.0
    %405 = vmatpush1.msra.mxu0 0.0
    %406 = vmatprep.subr.mxu0 0.0
    %407 = vmatpush1.msra.mxu0 0.0
    %408 = vmatprep.subr.mxu0 0.0
    %409 = vmatpush1.msra.mxu0 0.0
    %410 = vmatprep.subr.mxu0 0.0
    %411 = vmatpush1.msra.mxu0 0.0
    %412 = vmatprep.subr.mxu0 0.0
    %413 = vmatpush1.msra.mxu0 0.0
    %414 = vmatprep.subr.mxu0 0.0
    %415 = vmatpush1.msra.mxu0 0.0
    %416 = vmatprep.subr.mxu0 0.0
    %417 = vmatpush1.msra.mxu0 0.0
    %418 = vmatprep.subr.mxu0 0.0
    %419 = vmatpush1.msra.mxu0 0.0
    %420 = vmatprep.subr.mxu0 0.0
    %421 = vmatpush1.msra.mxu0 0.0
    %422 = vmatprep.subr.mxu0 0.0
    %423 = vmatpush1.msra.mxu0 0.0
    %424 = vmatprep.subr.mxu0 0.0
    %425 = vmatpush1.msra.mxu0 0.0
    %426 = vmatprep.subr.mxu0 0.0
    %427 = vmatpush1.msra.mxu0 0.0
    %428 = vmatprep.subr.mxu0 0.0
    %429 = vmatpush1.msra.mxu0 0.0
    %430 = vmatprep.subr.mxu0 0.0
    %431 = vmatpush1.msra.mxu0 0.0
    %432 = vmatprep.subr.mxu0 0.0
    %433 = vmatpush1.msra.mxu0 0.0
    %434 = vmatprep.subr.mxu0 0.0
    %435 = vmatpush1.msra.mxu0 0.0
    %436 = vmatprep.subr.mxu0 0.0
    %437 = vmatpush1.msra.mxu0 0.0
    %438 = vmatprep.subr.mxu0 0.0
    %439 = vmatpush1.msra.mxu0 0.0
    %440 = vmatprep.subr.mxu0 0.0
    %441 = vmatpush1.msra.mxu0 0.0
    %442 = vmatprep.subr.mxu0 0.0
    %443 = vmatpush1.msra.mxu0 0.0
    %444 = vmatprep.mubr.f32.mxu0 0.0
    %445 = vmatmul.mubr.f32.gmra.mrb[0].mxu0 %v378
    %v446 = vpop.f32.mrb[0].mxu0
    %v447 = vadd.f32 0.0, %v446
    %v448 = vpop.f32.mrb[0].mxu0
    %449 = vdwg.mxu0
    %v450 = vadd.f32 %v376, %v447
    %v451 = vxor.u32 %v450, 2147483648
    %v452 = vmul.f32 %v451, 1.442695
    %v453 = vpow.pop %v452
    %v454 = vadd.f32 %v453, 1.0
    %v455 = vrcp.pop %v454
    %v456 = vmul.f32 1.0, %v455
    %v457 = vtanh.pop %v450
    %v458 = vsel %vm118, %v457, %v456
    %459 = vrot.lane.b32.xlu0 %v458, 64
    %v460 = vpop.permute.xlu0 %459
    %v461 = vmul.f32 %v458, %v460
    %462 = vrot.lane.b32.xlu0 %v369, 32
    %v463 = vpop.permute.xlu0 %462
    %v464 = vmul.f32 %v458, %v463
    %465 = vrot.lane.b32.xlu0 %v464, 96
    %v466 = vpop.permute.xlu0 %465
    %v467 = vadd.f32 %v461, %v466
    %468 = vrot.lane.b32.xlu0 %v458, 32
    %v469 = vpop.permute.xlu0 %468
    %v470 = vtanh.pop %v467
    %v471 = vmul.f32 %v469, %v470
    %s472 = scalar_lea.vmem [#allocation3], 8
    %473 = vst.msk [vmem:[%s472] sm:$0xff] %vm278, %v471
    %s474 = scalar_lea.vmem [#allocation2], 16
    %v475 = vld [vmem:[%s474] sm:$0xff]
    %v477 = vsel %vm278, %v471, 0
    %479 = vmatprep.subr.mxu0 0.0
    %480 = vmatpush1.msra.mxu0 %v273
    %481 = vmatprep.subr.mxu0 0.0
    %482 = vmatpush1.msra.mxu0 %v274
    %483 = vmatprep.subr.mxu0 0.0
    %484 = vmatpush1.msra.mxu0 %v275
    %485 = vmatprep.subr.mxu0 0.0
    %486 = vmatpush1.msra.mxu0 %v276
    %487 = vmatprep.subr.mxu0 0.0
    %488 = vmatpush1.msra.mxu0 0.0
    %489 = vmatprep.subr.mxu0 0.0
    %490 = vmatpush1.msra.mxu0 0.0
    %491 = vmatprep.subr.mxu0 0.0
    %492 = vmatpush1.msra.mxu0 0.0
    %493 = vmatprep.subr.mxu0 0.0
    %494 = vmatpush1.msra.mxu0 0.0
    %495 = vmatprep.subr.mxu0 0.0
    %496 = vmatpush1.msra.mxu0 0.0
    %497 = vmatprep.subr.mxu0 0.0
    %498 = vmatpush1.msra.mxu0 0.0
    %499 = vmatprep.subr.mxu0 0.0
    %500 = vmatpush1.msra.mxu0 0.0
    %501 = vmatprep.subr.mxu0 0.0
    %502 = vmatpush1.msra.mxu0 0.0
    %503 = vmatprep.subr.mxu0 0.0
    %504 = vmatpush1.msra.mxu0 0.0
    %505 = vmatprep.subr.mxu0 0.0
    %506 = vmatpush1.msra.mxu0 0.0
    %507 = vmatprep.subr.mxu0 0.0
    %508 = vmatpush1.msra.mxu0 0.0
    %509 = vmatprep.subr.mxu0 0.0
    %510 = vmatpush1.msra.mxu0 0.0
    %511 = vmatprep.subr.mxu0 0.0
    %512 = vmatpush1.msra.mxu0 0.0
    %513 = vmatprep.subr.mxu0 0.0
    %514 = vmatpush1.msra.mxu0 0.0
    %515 = vmatprep.subr.mxu0 0.0
    %516 = vmatpush1.msra.mxu0 0.0
    %517 = vmatprep.subr.mxu0 0.0
    %518 = vmatpush1.msra.mxu0 0.0
    %519 = vmatprep.subr.mxu0 0.0
    %520 = vmatpush1.msra.mxu0 0.0
    %521 = vmatprep.subr.mxu0 0.0
    %522 = vmatpush1.msra.mxu0 0.0
    %523 = vmatprep.subr.mxu0 0.0
    %524 = vmatpush1.msra.mxu0 0.0
    %525 = vmatprep.subr.mxu0 0.0
    %526 = vmatpush1.msra.mxu0 0.0
    %527 = vmatprep.subr.mxu0 0.0
    %528 = vmatpush1.msra.mxu0 0.0
    %529 = vmatprep.subr.mxu0 0.0
    %530 = vmatpush1.msra.mxu0 0.0
    %531 = vmatprep.subr.mxu0 0.0
    %532 = vmatpush1.msra.mxu0 0.0
    %533 = vmatprep.subr.mxu0 0.0
    %534 = vmatpush1.msra.mxu0 0.0
    %535 = vmatprep.subr.mxu0 0.0
    %536 = vmatpush1.msra.mxu0 0.0
    %537 = vmatprep.subr.mxu0 0.0
    %538 = vmatpush1.msra.mxu0 0.0
    %539 = vmatprep.subr.mxu0 0.0
    %540 = vmatpush1.msra.mxu0 0.0
    %541 = vmatprep.subr.mxu0 0.0
    %542 = vmatpush1.msra.mxu0 0.0
    %543 = vmatprep.mubr.f32.mxu0 0.0
    %544 = vmatmul.mubr.f32.gmra.mrb[0].mxu0 %v477
    %v545 = vpop.f32.mrb[0].mxu0
    %v546 = vadd.f32 0.0, %v545
    %v547 = vpop.f32.mrb[0].mxu0
    %548 = vdwg.mxu0
    %v549 = vadd.f32 %v475, %v546
    %v550 = vxor.u32 %v549, 2147483648
    %v551 = vmul.f32 %v550, 1.442695
    %v552 = vpow.pop %v551
    %v553 = vadd.f32 %v552, 1.0
    %v554 = vrcp.pop %v553
    %v555 = vmul.f32 1.0, %v554
    %v556 = vtanh.pop %v549
    %v557 = vsel %vm118, %v556, %v555
    %558 = vrot.lane.b32.xlu0 %v557, 64
    %v559 = vpop.permute.xlu0 %558
    %v560 = vmul.f32 %v557, %v559
    %561 = vrot.lane.b32.xlu0 %v467, 32
    %v562 = vpop.permute.xlu0 %561
    %v563 = vmul.f32 %v557, %v562
    %564 = vrot.lane.b32.xlu0 %v563, 96
    %v565 = vpop.permute.xlu0 %564
    %v566 = vadd.f32 %v560, %v565
    %567 = vrot.lane.b32.xlu0 %v557, 32
    %v568 = vpop.permute.xlu0 %567
    %v569 = vtanh.pop %v566
    %v570 = vmul.f32 %v568, %v569
    %s571 = scalar_lea.vmem [#allocation3], 16
    %572 = vst.msk [vmem:[%s571] sm:$0xff] %vm278, %v570
    %s573 = scalar_lea.vmem [#allocation2], 24
    %v574 = vld [vmem:[%s573] sm:$0xff]
    %v576 = vsel %vm278, %v570, 0
    %578 = vmatprep.subr.mxu0 0.0
    %579 = vmatpush1.msra.mxu0 %v273
    %580 = vmatprep.subr.mxu0 0.0
    %581 = vmatpush1.msra.mxu0 %v274
    %582 = vmatprep.subr.mxu0 0.0
    %583 = vmatpush1.msra.mxu0 %v275
    %584 = vmatprep.subr.mxu0 0.0
    %585 = vmatpush1.msra.mxu0 %v276
    %586 = vmatprep.subr.mxu0 0.0
    %587 = vmatpush1.msra.mxu0 0.0
    %588 = vmatprep.subr.mxu0 0.0
    %589 = vmatpush1.msra.mxu0 0.0
    %590 = vmatprep.subr.mxu0 0.0
    %591 = vmatpush1.msra.mxu0 0.0
    %592 = vmatprep.subr.mxu0 0.0
    %593 = vmatpush1.msra.mxu0 0.0
    %594 = vmatprep.subr.mxu0 0.0
    %595 = vmatpush1.msra.mxu0 0.0
    %596 = vmatprep.subr.mxu0 0.0
    %597 = vmatpush1.msra.mxu0 0.0
    %598 = vmatprep.subr.mxu0 0.0
    %599 = vmatpush1.msra.mxu0 0.0
    %600 = vmatprep.subr.mxu0 0.0
    %601 = vmatpush1.msra.mxu0 0.0
    %602 = vmatprep.subr.mxu0 0.0
    %603 = vmatpush1.msra.mxu0 0.0
    %604 = vmatprep.subr.mxu0 0.0
    %605 = vmatpush1.msra.mxu0 0.0
    %606 = vmatprep.subr.mxu0 0.0
    %607 = vmatpush1.msra.mxu0 0.0
    %608 = vmatprep.subr.mxu0 0.0
    %609 = vmatpush1.msra.mxu0 0.0
    %610 = vmatprep.subr.mxu0 0.0
    %611 = vmatpush1.msra.mxu0 0.0
    %612 = vmatprep.subr.mxu0 0.0
    %613 = vmatpush1.msra.mxu0 0.0
    %614 = vmatprep.subr.mxu0 0.0
    %615 = vmatpush1.msra.mxu0 0.0
    %616 = vmatprep.subr.mxu0 0.0
    %617 = vmatpush1.msra.mxu0 0.0
    %618 = vmatprep.subr.mxu0 0.0
    %619 = vmatpush1.msra.mxu0 0.0
    %620 = vmatprep.subr.mxu0 0.0
    %621 = vmatpush1.msra.mxu0 0.0
    %622 = vmatprep.subr.mxu0 0.0
    %623 = vmatpush1.msra.mxu0 0.0
    %624 = vmatprep.subr.mxu0 0.0
    %625 = vmatpush1.msra.mxu0 0.0
    %626 = vmatprep.subr.mxu0 0.0
    %627 = vmatpush1.msra.mxu0 0.0
    %628 = vmatprep.subr.mxu0 0.0
    %629 = vmatpush1.msra.mxu0 0.0
    %630 = vmatprep.subr.mxu0 0.0
    %631 = vmatpush1.msra.mxu0 0.0
    %632 = vmatprep.subr.mxu0 0.0
    %633 = vmatpush1.msra.mxu0 0.0
    %634 = vmatprep.subr.mxu0 0.0
    %635 = vmatpush1.msra.mxu0 0.0
    %636 = vmatprep.subr.mxu0 0.0
    %637 = vmatpush1.msra.mxu0 0.0
    %638 = vmatprep.subr.mxu0 0.0
    %639 = vmatpush1.msra.mxu0 0.0
    %640 = vmatprep.subr.mxu0 0.0
    %641 = vmatpush1.msra.mxu0 0.0
    %642 = vmatprep.mubr.f32.mxu0 0.0
    %643 = vmatmul.mubr.f32.gmra.mrb[0].mxu0 %v576
    %v644 = vpop.f32.mrb[0].mxu0
    %v645 = vadd.f32 0.0, %v644
    %v646 = vpop.f32.mrb[0].mxu0
    %647 = vdwg.mxu0
    %v648 = vadd.f32 %v574, %v645
    %v649 = vxor.u32 %v648, 2147483648
    %v650 = vmul.f32 %v649, 1.442695
    %v651 = vpow.pop %v650
    %v652 = vadd.f32 %v651, 1.0
    %v653 = vrcp.pop %v652
    %v654 = vmul.f32 1.0, %v653
    %v655 = vtanh.pop %v648
    %v656 = vsel %vm118, %v655, %v654
    %657 = vrot.lane.b32.xlu0 %v656, 64
    %v658 = vpop.permute.xlu0 %657
    %v659 = vmul.f32 %v656, %v658
    %660 = vrot.lane.b32.xlu0 %v566, 32
    %v661 = vpop.permute.xlu0 %660
    %v662 = vmul.f32 %v656, %v661
    %663 = vrot.lane.b32.xlu0 %v662, 96
    %v664 = vpop.permute.xlu0 %663
    %v665 = vadd.f32 %v659, %v664
    %666 = vrot.lane.b32.xlu0 %v656, 32
    %v667 = vpop.permute.xlu0 %666
    %v668 = vtanh.pop %v665
    %v669 = vmul.f32 %v667, %v668
    %s670 = scalar_lea.vmem [#allocation3], 24
    %671 = vst.msk [vmem:[%s670] sm:$0xff] %vm278, %v669
    %s672 = scalar_lea.vmem [#allocation2], 32
    %v673 = vld [vmem:[%s672] sm:$0xff]
    %v675 = vsel %vm278, %v669, 0
    %677 = vmatprep.subr.mxu0 0.0
    %678 = vmatpush1.msra.mxu0 %v273
    %679 = vmatprep.subr.mxu0 0.0
    %680 = vmatpush1.msra.mxu0 %v274
    %681 = vmatprep.subr.mxu0 0.0
    %682 = vmatpush1.msra.mxu0 %v275
    %683 = vmatprep.subr.mxu0 0.0
    %684 = vmatpush1.msra.mxu0 %v276
    %685 = vmatprep.subr.mxu0 0.0
    %686 = vmatpush1.msra.mxu0 0.0
    %687 = vmatprep.subr.mxu0 0.0
    %688 = vmatpush1.msra.mxu0 0.0
    %689 = vmatprep.subr.mxu0 0.0
    %690 = vmatpush1.msra.mxu0 0.0
    %691 = vmatprep.subr.mxu0 0.0
    %692 = vmatpush1.msra.mxu0 0.0
    %693 = vmatprep.subr.mxu0 0.0
    %694 = vmatpush1.msra.mxu0 0.0
    %695 = vmatprep.subr.mxu0 0.0
    %696 = vmatpush1.msra.mxu0 0.0
    %697 = vmatprep.subr.mxu0 0.0
    %698 = vmatpush1.msra.mxu0 0.0
    %699 = vmatprep.subr.mxu0 0.0
    %700 = vmatpush1.msra.mxu0 0.0
    %701 = vmatprep.subr.mxu0 0.0
    %702 = vmatpush1.msra.mxu0 0.0
    %703 = vmatprep.subr.mxu0 0.0
    %704 = vmatpush1.msra.mxu0 0.0
    %705 = vmatprep.subr.mxu0 0.0
    %706 = vmatpush1.msra.mxu0 0.0
    %707 = vmatprep.subr.mxu0 0.0
    %708 = vmatpush1.msra.mxu0 0.0
    %709 = vmatprep.subr.mxu0 0.0
    %710 = vmatpush1.msra.mxu0 0.0
    %711 = vmatprep.subr.mxu0 0.0
    %712 = vmatpush1.msra.mxu0 0.0
    %713 = vmatprep.subr.mxu0 0.0
    %714 = vmatpush1.msra.mxu0 0.0
    %715 = vmatprep.subr.mxu0 0.0
    %716 = vmatpush1.msra.mxu0 0.0
    %717 = vmatprep.subr.mxu0 0.0
    %718 = vmatpush1.msra.mxu0 0.0
    %719 = vmatprep.subr.mxu0 0.0
    %720 = vmatpush1.msra.mxu0 0.0
    %721 = vmatprep.subr.mxu0 0.0
    %722 = vmatpush1.msra.mxu0 0.0
    %723 = vmatprep.subr.mxu0 0.0
    %724 = vmatpush1.msra.mxu0 0.0
    %725 = vmatprep.subr.mxu0 0.0
    %726 = vmatpush1.msra.mxu0 0.0
    %727 = vmatprep.subr.mxu0 0.0
    %728 = vmatpush1.msra.mxu0 0.0
    %729 = vmatprep.subr.mxu0 0.0
    %730 = vmatpush1.msra.mxu0 0.0
    %731 = vmatprep.subr.mxu0 0.0
    %732 = vmatpush1.msra.mxu0 0.0
    %733 = vmatprep.subr.mxu0 0.0
    %734 = vmatpush1.msra.mxu0 0.0
    %735 = vmatprep.subr.mxu0 0.0
    %736 = vmatpush1.msra.mxu0 0.0
    %737 = vmatprep.subr.mxu0 0.0
    %738 = vmatpush1.msra.mxu0 0.0
    %739 = vmatprep.subr.mxu0 0.0
    %740 = vmatpush1.msra.mxu0 0.0
    %741 = vmatprep.mubr.f32.mxu0 0.0
    %742 = vmatmul.mubr.f32.gmra.mrb[0].mxu0 %v675
    %v743 = vpop.f32.mrb[0].mxu0
    %v744 = vadd.f32 0.0, %v743
    %v745 = vpop.f32.mrb[0].mxu0
    %746 = vdwg.mxu0
    %v747 = vadd.f32 %v673, %v744
    %v748 = vxor.u32 %v747, 2147483648
    %v749 = vmul.f32 %v748, 1.442695
    %v750 = vpow.pop %v749
    %v751 = vadd.f32 %v750, 1.0
    %v752 = vrcp.pop %v751
    %v753 = vmul.f32 1.0, %v752
    %v754 = vtanh.pop %v747
    %v755 = vsel %vm118, %v754, %v753
    %756 = vrot.lane.b32.xlu0 %v755, 64
    %v757 = vpop.permute.xlu0 %756
    %v758 = vmul.f32 %v755, %v757
    %759 = vrot.lane.b32.xlu0 %v665, 32
    %v760 = vpop.permute.xlu0 %759
    %v761 = vmul.f32 %v755, %v760
    %762 = vrot.lane.b32.xlu0 %v761, 96
    %v763 = vpop.permute.xlu0 %762
    %v764 = vadd.f32 %v758, %v763
    %765 = vrot.lane.b32.xlu0 %v755, 32
    %v766 = vpop.permute.xlu0 %765
    %v767 = vtanh.pop %v764
    %v768 = vmul.f32 %v766, %v767
    %s769 = scalar_lea.vmem [#allocation3], 32
    %770 = vst.msk [vmem:[%s769] sm:$0xff] %vm278, %v768
    %s771 = scalar_lea.vmem [#allocation2], 40
    %v772 = vld [vmem:[%s771] sm:$0xff]
    %v774 = vsel %vm278, %v768, 0
    %776 = vmatprep.subr.mxu0 0.0
    %777 = vmatpush1.msra.mxu0 %v273
    %778 = vmatprep.subr.mxu0 0.0
    %779 = vmatpush1.msra.mxu0 %v274
    %780 = vmatprep.subr.mxu0 0.0
    %781 = vmatpush1.msra.mxu0 %v275
    %782 = vmatprep.subr.mxu0 0.0
    %783 = vmatpush1.msra.mxu0 %v276
    %784 = vmatprep.subr.mxu0 0.0
    %785 = vmatpush1.msra.mxu0 0.0
    %786 = vmatprep.subr.mxu0 0.0
    %787 = vmatpush1.msra.mxu0 0.0
    %788 = vmatprep.subr.mxu0 0.0
    %789 = vmatpush1.msra.mxu0 0.0
    %790 = vmatprep.subr.mxu0 0.0
    %791 = vmatpush1.msra.mxu0 0.0
    %792 = vmatprep.subr.mxu0 0.0
    %793 = vmatpush1.msra.mxu0 0.0
    %794 = vmatprep.subr.mxu0 0.0
    %795 = vmatpush1.msra.mxu0 0.0
    %796 = vmatprep.subr.mxu0 0.0
    %797 = vmatpush1.msra.mxu0 0.0
    %798 = vmatprep.subr.mxu0 0.0
    %799 = vmatpush1.msra.mxu0 0.0
    %800 = vmatprep.subr.mxu0 0.0
    %801 = vmatpush1.msra.mxu0 0.0
    %802 = vmatprep.subr.mxu0 0.0
    %803 = vmatpush1.msra.mxu0 0.0
    %804 = vmatprep.subr.mxu0 0.0
    %805 = vmatpush1.msra.mxu0 0.0
    %806 = vmatprep.subr.mxu0 0.0
    %807 = vmatpush1.msra.mxu0 0.0
    %808 = vmatprep.subr.mxu0 0.0
    %809 = vmatpush1.msra.mxu0 0.0
    %810 = vmatprep.subr.mxu0 0.0
    %811 = vmatpush1.msra.mxu0 0.0
    %812 = vmatprep.subr.mxu0 0.0
    %813 = vmatpush1.msra.mxu0 0.0
    %814 = vmatprep.subr.mxu0 0.0
    %815 = vmatpush1.msra.mxu0 0.0
    %816 = vmatprep.subr.mxu0 0.0
    %817 = vmatpush1.msra.mxu0 0.0
    %818 = vmatprep.subr.mxu0 0.0
    %819 = vmatpush1.msra.mxu0 0.0
    %820 = vmatprep.subr.mxu0 0.0
    %821 = vmatpush1.msra.mxu0 0.0
    %822 = vmatprep.subr.mxu0 0.0
    %823 = vmatpush1.msra.mxu0 0.0
    %824 = vmatprep.subr.mxu0 0.0
    %825 = vmatpush1.msra.mxu0 0.0
    %826 = vmatprep.subr.mxu0 0.0
    %827 = vmatpush1.msra.mxu0 0.0
    %828 = vmatprep.subr.mxu0 0.0
    %829 = vmatpush1.msra.mxu0 0.0
    %830 = vmatprep.subr.mxu0 0.0
    %831 = vmatpush1.msra.mxu0 0.0
    %832 = vmatprep.subr.mxu0 0.0
    %833 = vmatpush1.msra.mxu0 0.0
    %834 = vmatprep.subr.mxu0 0.0
    %835 = vmatpush1.msra.mxu0 0.0
    %836 = vmatprep.subr.mxu0 0.0
    %837 = vmatpush1.msra.mxu0 0.0
    %838 = vmatprep.subr.mxu0 0.0
    %839 = vmatpush1.msra.mxu0 0.0
    %840 = vmatprep.mubr.f32.mxu0 0.0
    %841 = vmatmul.mubr.f32.gmra.mrb[0].mxu0 %v774
    %v842 = vpop.f32.mrb[0].mxu0
    %v843 = vadd.f32 0.0, %v842
    %v844 = vpop.f32.mrb[0].mxu0
    %845 = vdwg.mxu0
    %v846 = vadd.f32 %v772, %v843
    %v847 = vxor.u32 %v846, 2147483648
    %v848 = vmul.f32 %v847, 1.442695
    %v849 = vpow.pop %v848
    %v850 = vadd.f32 %v849, 1.0
    %v851 = vrcp.pop %v850
    %v852 = vmul.f32 1.0, %v851
    %v853 = vtanh.pop %v846
    %v854 = vsel %vm118, %v853, %v852
    %855 = vrot.lane.b32.xlu0 %v854, 64
    %v856 = vpop.permute.xlu0 %855
    %v857 = vmul.f32 %v854, %v856
    %858 = vrot.lane.b32.xlu0 %v764, 32
    %v859 = vpop.permute.xlu0 %858
    %v860 = vmul.f32 %v854, %v859
    %861 = vrot.lane.b32.xlu0 %v860, 96
    %v862 = vpop.permute.xlu0 %861
    %v863 = vadd.f32 %v857, %v862
    %864 = vrot.lane.b32.xlu0 %v854, 32
    %v865 = vpop.permute.xlu0 %864
    %v866 = vtanh.pop %v863
    %v867 = vmul.f32 %v865, %v866
    %s868 = scalar_lea.vmem [#allocation3], 40
    %869 = vst.msk [vmem:[%s868] sm:$0xff] %vm278, %v867
    %s870 = scalar_lea.vmem [#allocation2], 48
    %v871 = vld [vmem:[%s870] sm:$0xff]
    %v873 = vsel %vm278, %v867, 0
    %875 = vmatprep.subr.mxu0 0.0
    %876 = vmatpush1.msra.mxu0 %v273
    %877 = vmatprep.subr.mxu0 0.0
    %878 = vmatpush1.msra.mxu0 %v274
    %879 = vmatprep.subr.mxu0 0.0
    %880 = vmatpush1.msra.mxu0 %v275
    %881 = vmatprep.subr.mxu0 0.0
    %882 = vmatpush1.msra.mxu0 %v276
    %883 = vmatprep.subr.mxu0 0.0
    %884 = vmatpush1.msra.mxu0 0.0
    %885 = vmatprep.subr.mxu0 0.0
    %886 = vmatpush1.msra.mxu0 0.0
    %887 = vmatprep.subr.mxu0 0.0
    %888 = vmatpush1.msra.mxu0 0.0
    %889 = vmatprep.subr.mxu0 0.0
    %890 = vmatpush1.msra.mxu0 0.0
    %891 = vmatprep.subr.mxu0 0.0
    %892 = vmatpush1.msra.mxu0 0.0
    %893 = vmatprep.subr.mxu0 0.0
    %894 = vmatpush1.msra.mxu0 0.0
    %895 = vmatprep.subr.mxu0 0.0
    %896 = vmatpush1.msra.mxu0 0.0
    %897 = vmatprep.subr.mxu0 0.0
    %898 = vmatpush1.msra.mxu0 0.0
    %899 = vmatprep.subr.mxu0 0.0
    %900 = vmatpush1.msra.mxu0 0.0
    %901 = vmatprep.subr.mxu0 0.0
    %902 = vmatpush1.msra.mxu0 0.0
    %903 = vmatprep.subr.mxu0 0.0
    %904 = vmatpush1.msra.mxu0 0.0
    %905 = vmatprep.subr.mxu0 0.0
    %906 = vmatpush1.msra.mxu0 0.0
    %907 = vmatprep.subr.mxu0 0.0
    %908 = vmatpush1.msra.mxu0 0.0
    %909 = vmatprep.subr.mxu0 0.0
    %910 = vmatpush1.msra.mxu0 0.0
    %911 = vmatprep.subr.mxu0 0.0
    %912 = vmatpush1.msra.mxu0 0.0
    %913 = vmatprep.subr.mxu0 0.0
    %914 = vmatpush1.msra.mxu0 0.0
    %915 = vmatprep.subr.mxu0 0.0
    %916 = vmatpush1.msra.mxu0 0.0
    %917 = vmatprep.subr.mxu0 0.0
    %918 = vmatpush1.msra.mxu0 0.0
    %919 = vmatprep.subr.mxu0 0.0
    %920 = vmatpush1.msra.mxu0 0.0
    %921 = vmatprep.subr.mxu0 0.0
    %922 = vmatpush1.msra.mxu0 0.0
    %923 = vmatprep.subr.mxu0 0.0
    %924 = vmatpush1.msra.mxu0 0.0
    %925 = vmatprep.subr.mxu0 0.0
    %926 = vmatpush1.msra.mxu0 0.0
    %927 = vmatprep.subr.mxu0 0.0
    %928 = vmatpush1.msra.mxu0 0.0
    %929 = vmatprep.subr.mxu0 0.0
    %930 = vmatpush1.msra.mxu0 0.0
    %931 = vmatprep.subr.mxu0 0.0
    %932 = vmatpush1.msra.mxu0 0.0
    %933 = vmatprep.subr.mxu0 0.0
    %934 = vmatpush1.msra.mxu0 0.0
    %935 = vmatprep.subr.mxu0 0.0
    %936 = vmatpush1.msra.mxu0 0.0
    %937 = vmatprep.subr.mxu0 0.0
    %938 = vmatpush1.msra.mxu0 0.0
    %939 = vmatprep.mubr.f32.mxu0 0.0
    %940 = vmatmul.mubr.f32.gmra.mrb[0].mxu0 %v873
    %v941 = vpop.f32.mrb[0].mxu0
    %v942 = vadd.f32 0.0, %v941
    %v943 = vpop.f32.mrb[0].mxu0
    %944 = vdwg.mxu0
    %v945 = vadd.f32 %v871, %v942
    %v946 = vxor.u32 %v945, 2147483648
    %v947 = vmul.f32 %v946, 1.442695
    %v948 = vpow.pop %v947
    %v949 = vadd.f32 %v948, 1.0
    %v950 = vrcp.pop %v949
    %v951 = vmul.f32 1.0, %v950
    %v952 = vtanh.pop %v945
    %v953 = vsel %vm118, %v952, %v951
    %954 = vrot.lane.b32.xlu0 %v953, 64
    %v955 = vpop.permute.xlu0 %954
    %v956 = vmul.f32 %v953, %v955
    %957 = vrot.lane.b32.xlu0 %v863, 32
    %v958 = vpop.permute.xlu0 %957
    %v959 = vmul.f32 %v953, %v958
    %960 = vrot.lane.b32.xlu0 %v959, 96
    %v961 = vpop.permute.xlu0 %960
    %v962 = vadd.f32 %v956, %v961
    %963 = vrot.lane.b32.xlu0 %v953, 32
    %v964 = vpop.permute.xlu0 %963
    %v965 = vtanh.pop %v962
    %v966 = vmul.f32 %v964, %v965
    %s967 = scalar_lea.vmem [#allocation3], 48
    %968 = vst.msk [vmem:[%s967] sm:$0xff] %vm278, %v966
    %s969 = scalar_lea.vmem [#allocation2], 56
    %v970 = vld [vmem:[%s969] sm:$0xff]
    %v972 = vsel %vm278, %v966, 0
    %974 = vmatprep.subr.mxu0 0.0
    %975 = vmatpush1.msra.mxu0 %v273
    %976 = vmatprep.subr.mxu0 0.0
    %977 = vmatpush1.msra.mxu0 %v274
    %978 = vmatprep.subr.mxu0 0.0
    %979 = vmatpush1.msra.mxu0 %v275
    %980 = vmatprep.subr.mxu0 0.0
    %981 = vmatpush1.msra.mxu0 %v276
    %982 = vmatprep.subr.mxu0 0.0
    %983 = vmatpush1.msra.mxu0 0.0
    %984 = vmatprep.subr.mxu0 0.0
    %985 = vmatpush1.msra.mxu0 0.0
    %986 = vmatprep.subr.mxu0 0.0
    %987 = vmatpush1.msra.mxu0 0.0
    %988 = vmatprep.subr.mxu0 0.0
    %989 = vmatpush1.msra.mxu0 0.0
    %990 = vmatprep.subr.mxu0 0.0
    %991 = vmatpush1.msra.mxu0 0.0
    %992 = vmatprep.subr.mxu0 0.0
    %993 = vmatpush1.msra.mxu0 0.0
    %994 = vmatprep.subr.mxu0 0.0
    %995 = vmatpush1.msra.mxu0 0.0
    %996 = vmatprep.subr.mxu0 0.0
    %997 = vmatpush1.msra.mxu0 0.0
    %998 = vmatprep.subr.mxu0 0.0
    %999 = vmatpush1.msra.mxu0 0.0
    %1000 = vmatprep.subr.mxu0 0.0
    %1001 = vmatpush1.msra.mxu0 0.0
    %1002 = vmatprep.subr.mxu0 0.0
    %1003 = vmatpush1.msra.mxu0 0.0
    %1004 = vmatprep.subr.mxu0 0.0
    %1005 = vmatpush1.msra.mxu0 0.0
    %1006 = vmatprep.subr.mxu0 0.0
    %1007 = vmatpush1.msra.mxu0 0.0
    %1008 = vmatprep.subr.mxu0 0.0
    %1009 = vmatpush1.msra.mxu0 0.0
    %1010 = vmatprep.subr.mxu0 0.0
    %1011 = vmatpush1.msra.mxu0 0.0
    %1012 = vmatprep.subr.mxu0 0.0
    %1013 = vmatpush1.msra.mxu0 0.0
    %1014 = vmatprep.subr.mxu0 0.0
    %1015 = vmatpush1.msra.mxu0 0.0
    %1016 = vmatprep.subr.mxu0 0.0
    %1017 = vmatpush1.msra.mxu0 0.0
    %1018 = vmatprep.subr.mxu0 0.0
    %1019 = vmatpush1.msra.mxu0 0.0
    %1020 = vmatprep.subr.mxu0 0.0
    %1021 = vmatpush1.msra.mxu0 0.0
    %1022 = vmatprep.subr.mxu0 0.0
    %1023 = vmatpush1.msra.mxu0 0.0
    %1024 = vmatprep.subr.mxu0 0.0
    %1025 = vmatpush1.msra.mxu0 0.0
    %1026 = vmatprep.subr.mxu0 0.0
    %1027 = vmatpush1.msra.mxu0 0.0
    %1028 = vmatprep.subr.mxu0 0.0
    %1029 = vmatpush1.msra.mxu0 0.0
    %1030 = vmatprep.subr.mxu0 0.0
    %1031 = vmatpush1.msra.mxu0 0.0
    %1032 = vmatprep.subr.mxu0 0.0
    %1033 = vmatpush1.msra.mxu0 0.0
    %1034 = vmatprep.subr.mxu0 0.0
    %1035 = vmatpush1.msra.mxu0 0.0
    %1036 = vmatprep.subr.mxu0 0.0
    %1037 = vmatpush1.msra.mxu0 0.0
    %1038 = vmatprep.mubr.f32.mxu0 0.0
    %1039 = vmatmul.mubr.f32.gmra.mrb[0].mxu0 %v972
    %v1040 = vpop.f32.mrb[0].mxu0
    %v1041 = vadd.f32 0.0, %v1040
    %v1042 = vpop.f32.mrb[0].mxu0
    %1043 = vdwg.mxu0
    %v1044 = vadd.f32 %v970, %v1041
    %v1045 = vxor.u32 %v1044, 2147483648
    %v1046 = vmul.f32 %v1045, 1.442695
    %v1047 = vpow.pop %v1046
    %v1048 = vadd.f32 %v1047, 1.0
    %v1049 = vrcp.pop %v1048
    %v1050 = vmul.f32 1.0, %v1049
    %v1051 = vtanh.pop %v1044
    %v1052 = vsel %vm118, %v1051, %v1050
    %1053 = vrot.lane.b32.xlu0 %v1052, 64
    %v1054 = vpop.permute.xlu0 %1053
    %v1055 = vmul.f32 %v1052, %v1054
    %1056 = vrot.lane.b32.xlu0 %v962, 32
    %v1057 = vpop.permute.xlu0 %1056
    %v1058 = vmul.f32 %v1052, %v1057
    %1059 = vrot.lane.b32.xlu0 %v1058, 96
    %v1060 = vpop.permute.xlu0 %1059
    %v1061 = vadd.f32 %v1055, %v1060
    %1062 = vrot.lane.b32.xlu0 %v1052, 32
    %v1063 = vpop.permute.xlu0 %1062
    %v1064 = vtanh.pop %v1061
    %v1065 = vmul.f32 %v1063, %v1064
    %s1066 = scalar_lea.vmem [#allocation3], 56
    %1067 = vst.msk [vmem:[%s1066] sm:$0xff] %vm278, %v1065
    %v1068 = vld [vmem:[#allocation3] sm:$0xff]
    %v1069 = vld [vmem:[#allocation3 + $0x8] sm:$0xff]
    %v1070 = vld [vmem:[#allocation3 + $0x10] sm:$0xff]
    %v1071 = vld [vmem:[#allocation3 + $0x18] sm:$0xff]
    %v1072 = vld [vmem:[#allocation3 + $0x20] sm:$0xff]
    %v1073 = vld [vmem:[#allocation3 + $0x28] sm:$0xff]
    %v1074 = vld [vmem:[#allocation3 + $0x30] sm:$0xff]
    %v1075 = vld [vmem:[#allocation3 + $0x38] sm:$0xff]
    %v1076 = vld [vmem:[%s4] sm:$0xff]
    %v1077 = vld [vmem:[%s4 + $0x8] sm:$0xff]
    %v1078 = vld [vmem:[%s4 + $0x10] sm:$0xff]
    %v1079 = vld [vmem:[%s4 + $0x18] sm:$0xff]
    %v1080 = vld [vmem:[%s6] sm:$0x1]
    %v1082 = vlaneseq
    %v1083 = vshrl.u32 %v1082, 7
    %v1084 = vsub.s32 0, %v1083
    %v1085 = vrot.slane %v1080, %v1084
    %v1088 = vsel %vm278, %v1068, 0
    %v1091 = vsel %vm278, %v1069, 0
    %v1094 = vsel %vm278, %v1070, 0
    %v1097 = vsel %vm278, %v1071, 0
    %v1100 = vsel %vm278, %v1072, 0
    %v1103 = vsel %vm278, %v1073, 0
    %v1106 = vsel %vm278, %v1074, 0
    %v1109 = vsel %vm278, %v1075, 0
    %1111 = vmatprep.subr.mxu0 0.0
    %1112 = vmatpush1.msra.mxu0 %v1076
    %1113 = vmatprep.subr.mxu0 0.0
    %1114 = vmatpush1.msra.mxu0 %v1077
    %1115 = vmatprep.subr.mxu0 0.0
    %1116 = vmatpush1.msra.mxu0 %v1078
    %1117 = vmatprep.subr.mxu0 0.0
    %1118 = vmatpush1.msra.mxu0 %v1079
    %1119 = vmatprep.subr.mxu0 0.0
    %1120 = vmatpush1.msra.mxu0 0.0
    %1121 = vmatprep.subr.mxu0 0.0
    %1122 = vmatpush1.msra.mxu0 0.0
    %1123 = vmatprep.subr.mxu0 0.0
    %1124 = vmatpush1.msra.mxu0 0.0
    %1125 = vmatprep.subr.mxu0 0.0
    %1126 = vmatpush1.msra.mxu0 0.0
    %1127 = vmatprep.subr.mxu0 0.0
    %1128 = vmatpush1.msra.mxu0 0.0
    %1129 = vmatprep.subr.mxu0 0.0
    %1130 = vmatpush1.msra.mxu0 0.0
    %1131 = vmatprep.subr.mxu0 0.0
    %1132 = vmatpush1.msra.mxu0 0.0
    %1133 = vmatprep.subr.mxu0 0.0
    %1134 = vmatpush1.msra.mxu0 0.0
    %1135 = vmatprep.subr.mxu0 0.0
    %1136 = vmatpush1.msra.mxu0 0.0
    %1137 = vmatprep.subr.mxu0 0.0
    %1138 = vmatpush1.msra.mxu0 0.0
    %1139 = vmatprep.subr.mxu0 0.0
    %1140 = vmatpush1.msra.mxu0 0.0
    %1141 = vmatprep.subr.mxu0 0.0
    %1142 = vmatpush1.msra.mxu0 0.0
    %1143 = vmatprep.subr.mxu0 0.0
    %1144 = vmatpush1.msra.mxu0 0.0
    %1145 = vmatprep.subr.mxu0 0.0
    %1146 = vmatpush1.msra.mxu0 0.0
    %1147 = vmatprep.subr.mxu0 0.0
    %1148 = vmatpush1.msra.mxu0 0.0
    %1149 = vmatprep.subr.mxu0 0.0
    %1150 = vmatpush1.msra.mxu0 0.0
    %1151 = vmatprep.subr.mxu0 0.0
    %1152 = vmatpush1.msra.mxu0 0.0
    %1153 = vmatprep.subr.mxu0 0.0
    %1154 = vmatpush1.msra.mxu0 0.0
    %1155 = vmatprep.subr.mxu0 0.0
    %1156 = vmatpush1.msra.mxu0 0.0
    %1157 = vmatprep.subr.mxu0 0.0
    %1158 = vmatpush1.msra.mxu0 0.0
    %1159 = vmatprep.subr.mxu0 0.0
    %1160 = vmatpush1.msra.mxu0 0.0
    %1161 = vmatprep.subr.mxu0 0.0
    %1162 = vmatpush1.msra.mxu0 0.0
    %1163 = vmatprep.subr.mxu0 0.0
    %1164 = vmatpush1.msra.mxu0 0.0
    %1165 = vmatprep.subr.mxu0 0.0
    %1166 = vmatpush1.msra.mxu0 0.0
    %1167 = vmatprep.subr.mxu0 0.0
    %1168 = vmatpush1.msra.mxu0 0.0
    %1169 = vmatprep.subr.mxu0 0.0
    %1170 = vmatpush1.msra.mxu0 0.0
    %1171 = vmatprep.subr.mxu0 0.0
    %1172 = vmatpush1.msra.mxu0 0.0
    %1173 = vmatprep.subr.mxu0 0.0
    %1174 = vmatpush1.msra.mxu0 0.0
    %1175 = vmatprep.mubr.f32.mxu0 0.0
    %1176 = vmatmul.mubr.f32.gmra.mrb[0].mxu0 %v1088
    %v1177 = vpop.f32.mrb[0].mxu0
    %v1178 = vadd.f32 %v1085, %v1177
    %v1179 = vpop.f32.mrb[0].mxu0
    %1180 = vmatprep.mubr.f32.mxu0 0.0
    %1181 = vmatmul.mubr.f32.gmra.mrb[0].mxu0 %v1091
    %v1182 = vpop.f32.mrb[0].mxu0
    %v1183 = vadd.f32 %v1085, %v1182
    %v1184 = vpop.f32.mrb[0].mxu0
    %1185 = vmatprep.mubr.f32.mxu0 0.0
    %1186 = vmatmul.mubr.f32.gmra.mrb[0].mxu0 %v1094
    %v1187 = vpop.f32.mrb[0].mxu0
    %v1188 = vadd.f32 %v1085, %v1187
    %v1189 = vpop.f32.mrb[0].mxu0
    %1190 = vmatprep.mubr.f32.mxu0 0.0
    %1191 = vmatmul.mubr.f32.gmra.mrb[0].mxu0 %v1097
    %v1192 = vpop.f32.mrb[0].mxu0
    %v1193 = vadd.f32 %v1085, %v1192
    %v1194 = vpop.f32.mrb[0].mxu0
    %1195 = vmatprep.mubr.f32.mxu0 0.0
    %1196 = vmatmul.mubr.f32.gmra.mrb[0].mxu0 %v1100
    %v1197 = vpop.f32.mrb[0].mxu0
    %v1198 = vadd.f32 %v1085, %v1197
    %v1199 = vpop.f32.mrb[0].mxu0
    %1200 = vmatprep.mubr.f32.mxu0 0.0
    %1201 = vmatmul.mubr.f32.gmra.mrb[0].mxu0 %v1103
    %v1202 = vpop.f32.mrb[0].mxu0
    %v1203 = vadd.f32 %v1085, %v1202
    %v1204 = vpop.f32.mrb[0].mxu0
    %1205 = vmatprep.mubr.f32.mxu0 0.0
    %1206 = vmatmul.mubr.f32.gmra.mrb[0].mxu0 %v1106
    %v1207 = vpop.f32.mrb[0].mxu0
    %v1208 = vadd.f32 %v1085, %v1207
    %v1209 = vpop.f32.mrb[0].mxu0
    %1210 = vmatprep.mubr.f32.mxu0 0.0
    %1211 = vmatmul.mubr.f32.gmra.mrb[0].mxu0 %v1109
    %v1212 = vpop.f32.mrb[0].mxu0
    %v1213 = vadd.f32 %v1085, %v1212
    %v1214 = vpop.f32.mrb[0].mxu0
    %1215 = vdwg.mxu0
    %1216 = vst [vmem:[#allocation2] sm:$0xff] %v1178
    %1217 = vst [vmem:[#allocation2 + $0x8] sm:$0xff] %v1183
    %1218 = vst [vmem:[#allocation2 + $0x10] sm:$0xff] %v1188
    %1219 = vst [vmem:[#allocation2 + $0x18] sm:$0xff] %v1193
    %1220 = vst [vmem:[#allocation2 + $0x20] sm:$0xff] %v1198
    %1221 = vst [vmem:[#allocation2 + $0x28] sm:$0xff] %v1203
    %1222 = vst [vmem:[#allocation2 + $0x30] sm:$0xff] %v1208
    %1223 = vst [vmem:[#allocation2 + $0x38] sm:$0xff] %v1213
    %v1224 = vld [vmem:[#allocation7] sm:$0xff]
    %v1225 = vld [vmem:[#allocation7 + $0x8] sm:$0xff]
    %v1226 = vld [vmem:[#allocation7 + $0x10] sm:$0xff]
    %v1227 = vld [vmem:[#allocation7 + $0x18] sm:$0xff]
    %v1228 = vld [vmem:[#allocation2] sm:$0xff]
    %1229 = vmatprep.subr.mxu0 0.0
    %1230 = vmatpush1.msra.mxu0 %v1224
    %1231 = vmatprep.subr.mxu0 0.0
    %1232 = vmatpush1.msra.mxu0 %v1225
    %1233 = vmatprep.subr.mxu0 0.0
    %1234 = vmatpush1.msra.mxu0 %v1226
    %1235 = vmatprep.subr.mxu0 0.0
    %1236 = vmatpush1.msra.mxu0 %v1227
    %1237 = vmatprep.subr.mxu0 0.0
    %1238 = vmatpush1.msra.mxu0 0.0
    %1239 = vmatprep.subr.mxu0 0.0
    %1240 = vmatpush1.msra.mxu0 0.0
    %1241 = vmatprep.subr.mxu0 0.0
    %1242 = vmatpush1.msra.mxu0 0.0
    %1243 = vmatprep.subr.mxu0 0.0
    %1244 = vmatpush1.msra.mxu0 0.0
    %1245 = vmatprep.subr.mxu0 0.0
    %1246 = vmatpush1.msra.mxu0 0.0
    %1247 = vmatprep.subr.mxu0 0.0
    %1248 = vmatpush1.msra.mxu0 0.0
    %1249 = vmatprep.subr.mxu0 0.0
    %1250 = vmatpush1.msra.mxu0 0.0
    %1251 = vmatprep.subr.mxu0 0.0
    %1252 = vmatpush1.msra.mxu0 0.0
    %1253 = vmatprep.subr.mxu0 0.0
    %1254 = vmatpush1.msra.mxu0 0.0
    %1255 = vmatprep.subr.mxu0 0.0
    %1256 = vmatpush1.msra.mxu0 0.0
    %1257 = vmatprep.subr.mxu0 0.0
    %1258 = vmatpush1.msra.mxu0 0.0
    %1259 = vmatprep.subr.mxu0 0.0
    %1260 = vmatpush1.msra.mxu0 0.0
    %1261 = vmatprep.subr.mxu0 0.0
    %1262 = vmatpush1.msra.mxu0 0.0
    %1263 = vmatprep.subr.mxu0 0.0
    %1264 = vmatpush1.msra.mxu0 0.0
    %1265 = vmatprep.subr.mxu0 0.0
    %1266 = vmatpush1.msra.mxu0 0.0
    %1267 = vmatprep.subr.mxu0 0.0
    %1268 = vmatpush1.msra.mxu0 0.0
    %1269 = vmatprep.subr.mxu0 0.0
    %1270 = vmatpush1.msra.mxu0 0.0
    %1271 = vmatprep.subr.mxu0 0.0
    %1272 = vmatpush1.msra.mxu0 0.0
    %1273 = vmatprep.subr.mxu0 0.0
    %1274 = vmatpush1.msra.mxu0 0.0
    %1275 = vmatprep.subr.mxu0 0.0
    %1276 = vmatpush1.msra.mxu0 0.0
    %1277 = vmatprep.subr.mxu0 0.0
    %1278 = vmatpush1.msra.mxu0 0.0
    %1279 = vmatprep.subr.mxu0 0.0
    %1280 = vmatpush1.msra.mxu0 0.0
    %1281 = vmatprep.subr.mxu0 0.0
    %1282 = vmatpush1.msra.mxu0 0.0
    %1283 = vmatprep.subr.mxu0 0.0
    %1284 = vmatpush1.msra.mxu0 0.0
    %1285 = vmatprep.subr.mxu0 0.0
    %1286 = vmatpush1.msra.mxu0 0.0
    %1287 = vmatprep.subr.mxu0 0.0
    %1288 = vmatpush1.msra.mxu0 0.0
    %1289 = vmatprep.subr.mxu0 0.0
    %1290 = vmatpush1.msra.mxu0 0.0
    %1291 = vmatprep.subr.mxu0 0.0
    %1292 = vmatpush1.msra.mxu0 0.0
    %1293 = vmatprep.mubr.f32.mxu0 0.0
    %1294 = vmatmul.mubr.f32.gmra.mrb[0].mxu0 %v280
    %v1295 = vpop.f32.mrb[0].mxu0
    %v1296 = vadd.f32 0.0, %v1295
    %v1297 = vpop.f32.mrb[0].mxu0
    %1298 = vdwg.mxu0
    %v1299 = vadd.f32 %v1228, %v1296
    %v1300 = vxor.u32 %v1299, 2147483648
    %v1301 = vmul.f32 %v1300, 1.442695
    %v1302 = vpow.pop %v1301
    %v1303 = vadd.f32 %v1302, 1.0
    %v1304 = vrcp.pop %v1303
    %v1305 = vmul.f32 1.0, %v1304
    %v1306 = vtanh.pop %v1299
    %v1307 = vsel %vm118, %v1306, %v1305
    %1308 = vrot.lane.b32.xlu0 %v1307, 64
    %v1309 = vpop.permute.xlu0 %1308
    %v1310 = vmul.f32 %v1307, %v1309
    %v1311 = vmul.f32 %v1307, %v365
    %1312 = vrot.lane.b32.xlu0 %v1311, 96
    %v1313 = vpop.permute.xlu0 %1312
    %v1314 = vadd.f32 %v1310, %v1313
    %1315 = vrot.lane.b32.xlu0 %v1307, 32
    %v1316 = vpop.permute.xlu0 %1315
    %v1317 = vtanh.pop %v1314
    %v1318 = vmul.f32 %v1316, %v1317
    %v1319 = vld [vmem:[%s375] sm:$0xff]
    %v1321 = vsel %vm278, %v1318, 0
    %1323 = vmatprep.subr.mxu0 0.0
    %1324 = vmatpush1.msra.mxu0 %v1224
    %1325 = vmatprep.subr.mxu0 0.0
    %1326 = vmatpush1.msra.mxu0 %v1225
    %1327 = vmatprep.subr.mxu0 0.0
    %1328 = vmatpush1.msra.mxu0 %v1226
    %1329 = vmatprep.subr.mxu0 0.0
    %1330 = vmatpush1.msra.mxu0 %v1227
    %1331 = vmatprep.subr.mxu0 0.0
    %1332 = vmatpush1.msra.mxu0 0.0
    %1333 = vmatprep.subr.mxu0 0.0
    %1334 = vmatpush1.msra.mxu0 0.0
    %1335 = vmatprep.subr.mxu0 0.0
    %1336 = vmatpush1.msra.mxu0 0.0
    %1337 = vmatprep.subr.mxu0 0.0
    %1338 = vmatpush1.msra.mxu0 0.0
    %1339 = vmatprep.subr.mxu0 0.0
    %1340 = vmatpush1.msra.mxu0 0.0
    %1341 = vmatprep.subr.mxu0 0.0
    %1342 = vmatpush1.msra.mxu0 0.0
    %1343 = vmatprep.subr.mxu0 0.0
    %1344 = vmatpush1.msra.mxu0 0.0
    %1345 = vmatprep.subr.mxu0 0.0
    %1346 = vmatpush1.msra.mxu0 0.0
    %1347 = vmatprep.subr.mxu0 0.0
    %1348 = vmatpush1.msra.mxu0 0.0
    %1349 = vmatprep.subr.mxu0 0.0
    %1350 = vmatpush1.msra.mxu0 0.0
    %1351 = vmatprep.subr.mxu0 0.0
    %1352 = vmatpush1.msra.mxu0 0.0
    %1353 = vmatprep.subr.mxu0 0.0
    %1354 = vmatpush1.msra.mxu0 0.0
    %1355 = vmatprep.subr.mxu0 0.0
    %1356 = vmatpush1.msra.mxu0 0.0
    %1357 = vmatprep.subr.mxu0 0.0
    %1358 = vmatpush1.msra.mxu0 0.0
    %1359 = vmatprep.subr.mxu0 0.0
    %1360 = vmatpush1.msra.mxu0 0.0
    %1361 = vmatprep.subr.mxu0 0.0
    %1362 = vmatpush1.msra.mxu0 0.0
    %1363 = vmatprep.subr.mxu0 0.0
    %1364 = vmatpush1.msra.mxu0 0.0
    %1365 = vmatprep.subr.mxu0 0.0
    %1366 = vmatpush1.msra.mxu0 0.0
    %1367 = vmatprep.subr.mxu0 0.0
    %1368 = vmatpush1.msra.mxu0 0.0
    %1369 = vmatprep.subr.mxu0 0.0
    %1370 = vmatpush1.msra.mxu0 0.0
    %1371 = vmatprep.subr.mxu0 0.0
    %1372 = vmatpush1.msra.mxu0 0.0
    %1373 = vmatprep.subr.mxu0 0.0
    %1374 = vmatpush1.msra.mxu0 0.0
    %1375 = vmatprep.subr.mxu0 0.0
    %1376 = vmatpush1.msra.mxu0 0.0
    %1377 = vmatprep.subr.mxu0 0.0
    %1378 = vmatpush1.msra.mxu0 0.0
    %1379 = vmatprep.subr.mxu0 0.0
    %1380 = vmatpush1.msra.mxu0 0.0
    %1381 = vmatprep.subr.mxu0 0.0
    %1382 = vmatpush1.msra.mxu0 0.0
    %1383 = vmatprep.subr.mxu0 0.0
    %1384 = vmatpush1.msra.mxu0 0.0
    %1385 = vmatprep.subr.mxu0 0.0
    %1386 = vmatpush1.msra.mxu0 0.0
    %1387 = vmatprep.mubr.f32.mxu0 0.0
    %1388 = vmatmul.mubr.f32.gmra.mrb[0].mxu0 %v1321
    %v1389 = vpop.f32.mrb[0].mxu0
    %v1390 = vadd.f32 0.0, %v1389
    %v1391 = vpop.f32.mrb[0].mxu0
    %1392 = vdwg.mxu0
    %v1393 = vadd.f32 %v1319, %v1390
    %v1394 = vxor.u32 %v1393, 2147483648
    %v1395 = vmul.f32 %v1394, 1.442695
    %v1396 = vpow.pop %v1395
    %v1397 = vadd.f32 %v1396, 1.0
    %v1398 = vrcp.pop %v1397
    %v1399 = vmul.f32 1.0, %v1398
    %v1400 = vtanh.pop %v1393
    %v1401 = vsel %vm118, %v1400, %v1399
    %1402 = vrot.lane.b32.xlu0 %v1401, 64
    %v1403 = vpop.permute.xlu0 %1402
    %v1404 = vmul.f32 %v1401, %v1403
    %1405 = vrot.lane.b32.xlu0 %v1314, 32
    %v1406 = vpop.permute.xlu0 %1405
    %v1407 = vmul.f32 %v1401, %v1406
    %1408 = vrot.lane.b32.xlu0 %v1407, 96
    %v1409 = vpop.permute.xlu0 %1408
    %v1410 = vadd.f32 %v1404, %v1409
    %1411 = vrot.lane.b32.xlu0 %v1401, 32
    %v1412 = vpop.permute.xlu0 %1411
    %v1413 = vtanh.pop %v1410
    %v1414 = vmul.f32 %v1412, %v1413
    %v1415 = vld [vmem:[%s474] sm:$0xff]
    %v1417 = vsel %vm278, %v1414, 0
    %1419 = vmatprep.subr.mxu0 0.0
    %1420 = vmatpush1.msra.mxu0 %v1224
    %1421 = vmatprep.subr.mxu0 0.0
    %1422 = vmatpush1.msra.mxu0 %v1225
    %1423 = vmatprep.subr.mxu0 0.0
    %1424 = vmatpush1.msra.mxu0 %v1226
    %1425 = vmatprep.subr.mxu0 0.0
    %1426 = vmatpush1.msra.mxu0 %v1227
    %1427 = vmatprep.subr.mxu0 0.0
    %1428 = vmatpush1.msra.mxu0 0.0
    %1429 = vmatprep.subr.mxu0 0.0
    %1430 = vmatpush1.msra.mxu0 0.0
    %1431 = vmatprep.subr.mxu0 0.0
    %1432 = vmatpush1.msra.mxu0 0.0
    %1433 = vmatprep.subr.mxu0 0.0
    %1434 = vmatpush1.msra.mxu0 0.0
    %1435 = vmatprep.subr.mxu0 0.0
    %1436 = vmatpush1.msra.mxu0 0.0
    %1437 = vmatprep.subr.mxu0 0.0
    %1438 = vmatpush1.msra.mxu0 0.0
    %1439 = vmatprep.subr.mxu0 0.0
    %1440 = vmatpush1.msra.mxu0 0.0
    %1441 = vmatprep.subr.mxu0 0.0
    %1442 = vmatpush1.msra.mxu0 0.0
    %1443 = vmatprep.subr.mxu0 0.0
    %1444 = vmatpush1.msra.mxu0 0.0
    %1445 = vmatprep.subr.mxu0 0.0
    %1446 = vmatpush1.msra.mxu0 0.0
    %1447 = vmatprep.subr.mxu0 0.0
    %1448 = vmatpush1.msra.mxu0 0.0
    %1449 = vmatprep.subr.mxu0 0.0
    %1450 = vmatpush1.msra.mxu0 0.0
    %1451 = vmatprep.subr.mxu0 0.0
    %1452 = vmatpush1.msra.mxu0 0.0
    %1453 = vmatprep.subr.mxu0 0.0
    %1454 = vmatpush1.msra.mxu0 0.0
    %1455 = vmatprep.subr.mxu0 0.0
    %1456 = vmatpush1.msra.mxu0 0.0
    %1457 = vmatprep.subr.mxu0 0.0
    %1458 = vmatpush1.msra.mxu0 0.0
    %1459 = vmatprep.subr.mxu0 0.0
    %1460 = vmatpush1.msra.mxu0 0.0
    %1461 = vmatprep.subr.mxu0 0.0
    %1462 = vmatpush1.msra.mxu0 0.0
    %1463 = vmatprep.subr.mxu0 0.0
    %1464 = vmatpush1.msra.mxu0 0.0
    %1465 = vmatprep.subr.mxu0 0.0
    %1466 = vmatpush1.msra.mxu0 0.0
    %1467 = vmatprep.subr.mxu0 0.0
    %1468 = vmatpush1.msra.mxu0 0.0
    %1469 = vmatprep.subr.mxu0 0.0
    %1470 = vmatpush1.msra.mxu0 0.0
    %1471 = vmatprep.subr.mxu0 0.0
    %1472 = vmatpush1.msra.mxu0 0.0
    %1473 = vmatprep.subr.mxu0 0.0
    %1474 = vmatpush1.msra.mxu0 0.0
    %1475 = vmatprep.subr.mxu0 0.0
    %1476 = vmatpush1.msra.mxu0 0.0
    %1477 = vmatprep.subr.mxu0 0.0
    %1478 = vmatpush1.msra.mxu0 0.0
    %1479 = vmatprep.subr.mxu0 0.0
    %1480 = vmatpush1.msra.mxu0 0.0
    %1481 = vmatprep.subr.mxu0 0.0
    %1482 = vmatpush1.msra.mxu0 0.0
    %1483 = vmatprep.mubr.f32.mxu0 0.0
    %1484 = vmatmul.mubr.f32.gmra.mrb[0].mxu0 %v1417
    %v1485 = vpop.f32.mrb[0].mxu0
    %v1486 = vadd.f32 0.0, %v1485
    %v1487 = vpop.f32.mrb[0].mxu0
    %1488 = vdwg.mxu0
    %v1489 = vadd.f32 %v1415, %v1486
    %v1490 = vxor.u32 %v1489, 2147483648
    %v1491 = vmul.f32 %v1490, 1.442695
    %v1492 = vpow.pop %v1491
    %v1493 = vadd.f32 %v1492, 1.0
    %v1494 = vrcp.pop %v1493
    %v1495 = vmul.f32 1.0, %v1494
    %v1496 = vtanh.pop %v1489
    %v1497 = vsel %vm118, %v1496, %v1495
    %1498 = vrot.lane.b32.xlu0 %v1497, 64
    %v1499 = vpop.permute.xlu0 %1498
    %v1500 = vmul.f32 %v1497, %v1499
    %1501 = vrot.lane.b32.xlu0 %v1410, 32
    %v1502 = vpop.permute.xlu0 %1501
    %v1503 = vmul.f32 %v1497, %v1502
    %1504 = vrot.lane.b32.xlu0 %v1503, 96
    %v1505 = vpop.permute.xlu0 %1504
    %v1506 = vadd.f32 %v1500, %v1505
    %1507 = vrot.lane.b32.xlu0 %v1497, 32
    %v1508 = vpop.permute.xlu0 %1507
    %v1509 = vtanh.pop %v1506
    %v1510 = vmul.f32 %v1508, %v1509
    %v1511 = vld [vmem:[%s573] sm:$0xff]
    %v1513 = vsel %vm278, %v1510, 0
    %1515 = vmatprep.subr.mxu0 0.0
    %1516 = vmatpush1.msra.mxu0 %v1224
    %1517 = vmatprep.subr.mxu0 0.0
    %1518 = vmatpush1.msra.mxu0 %v1225
    %1519 = vmatprep.subr.mxu0 0.0
    %1520 = vmatpush1.msra.mxu0 %v1226
    %1521 = vmatprep.subr.mxu0 0.0
    %1522 = vmatpush1.msra.mxu0 %v1227
    %1523 = vmatprep.subr.mxu0 0.0
    %1524 = vmatpush1.msra.mxu0 0.0
    %1525 = vmatprep.subr.mxu0 0.0
    %1526 = vmatpush1.msra.mxu0 0.0
    %1527 = vmatprep.subr.mxu0 0.0
    %1528 = vmatpush1.msra.mxu0 0.0
    %1529 = vmatprep.subr.mxu0 0.0
    %1530 = vmatpush1.msra.mxu0 0.0
    %1531 = vmatprep.subr.mxu0 0.0
    %1532 = vmatpush1.msra.mxu0 0.0
    %1533 = vmatprep.subr.mxu0 0.0
    %1534 = vmatpush1.msra.mxu0 0.0
    %1535 = vmatprep.subr.mxu0 0.0
    %1536 = vmatpush1.msra.mxu0 0.0
    %1537 = vmatprep.subr.mxu0 0.0
    %1538 = vmatpush1.msra.mxu0 0.0
    %1539 = vmatprep.subr.mxu0 0.0
    %1540 = vmatpush1.msra.mxu0 0.0
    %1541 = vmatprep.subr.mxu0 0.0
    %1542 = vmatpush1.msra.mxu0 0.0
    %1543 = vmatprep.subr.mxu0 0.0
    %1544 = vmatpush1.msra.mxu0 0.0
    %1545 = vmatprep.subr.mxu0 0.0
    %1546 = vmatpush1.msra.mxu0 0.0
    %1547 = vmatprep.subr.mxu0 0.0
    %1548 = vmatpush1.msra.mxu0 0.0
    %1549 = vmatprep.subr.mxu0 0.0
    %1550 = vmatpush1.msra.mxu0 0.0
    %1551 = vmatprep.subr.mxu0 0.0
    %1552 = vmatpush1.msra.mxu0 0.0
    %1553 = vmatprep.subr.mxu0 0.0
    %1554 = vmatpush1.msra.mxu0 0.0
    %1555 = vmatprep.subr.mxu0 0.0
    %1556 = vmatpush1.msra.mxu0 0.0
    %1557 = vmatprep.subr.mxu0 0.0
    %1558 = vmatpush1.msra.mxu0 0.0
    %1559 = vmatprep.subr.mxu0 0.0
    %1560 = vmatpush1.msra.mxu0 0.0
    %1561 = vmatprep.subr.mxu0 0.0
    %1562 = vmatpush1.msra.mxu0 0.0
    %1563 = vmatprep.subr.mxu0 0.0
    %1564 = vmatpush1.msra.mxu0 0.0
    %1565 = vmatprep.subr.mxu0 0.0
    %1566 = vmatpush1.msra.mxu0 0.0
    %1567 = vmatprep.subr.mxu0 0.0
    %1568 = vmatpush1.msra.mxu0 0.0
    %1569 = vmatprep.subr.mxu0 0.0
    %1570 = vmatpush1.msra.mxu0 0.0
    %1571 = vmatprep.subr.mxu0 0.0
    %1572 = vmatpush1.msra.mxu0 0.0
    %1573 = vmatprep.subr.mxu0 0.0
    %1574 = vmatpush1.msra.mxu0 0.0
    %1575 = vmatprep.subr.mxu0 0.0
    %1576 = vmatpush1.msra.mxu0 0.0
    %1577 = vmatprep.subr.mxu0 0.0
    %1578 = vmatpush1.msra.mxu0 0.0
    %1579 = vmatprep.mubr.f32.mxu0 0.0
    %1580 = vmatmul.mubr.f32.gmra.mrb[0].mxu0 %v1513
    %v1581 = vpop.f32.mrb[0].mxu0
    %v1582 = vadd.f32 0.0, %v1581
    %v1583 = vpop.f32.mrb[0].mxu0
    %1584 = vdwg.mxu0
    %v1585 = vadd.f32 %v1511, %v1582
    %v1586 = vxor.u32 %v1585, 2147483648
    %v1587 = vmul.f32 %v1586, 1.442695
    %v1588 = vpow.pop %v1587
    %v1589 = vadd.f32 %v1588, 1.0
    %v1590 = vrcp.pop %v1589
    %v1591 = vmul.f32 1.0, %v1590
    %v1592 = vtanh.pop %v1585
    %v1593 = vsel %vm118, %v1592, %v1591
    %1594 = vrot.lane.b32.xlu0 %v1593, 64
    %v1595 = vpop.permute.xlu0 %1594
    %v1596 = vmul.f32 %v1593, %v1595
    %1597 = vrot.lane.b32.xlu0 %v1506, 32
    %v1598 = vpop.permute.xlu0 %1597
    %v1599 = vmul.f32 %v1593, %v1598
    %1600 = vrot.lane.b32.xlu0 %v1599, 96
    %v1601 = vpop.permute.xlu0 %1600
    %v1602 = vadd.f32 %v1596, %v1601
    %1603 = vrot.lane.b32.xlu0 %v1593, 32
    %v1604 = vpop.permute.xlu0 %1603
    %v1605 = vtanh.pop %v1602
    %v1606 = vmul.f32 %v1604, %v1605
    %v1607 = vld [vmem:[%s672] sm:$0xff]
    %v1609 = vsel %vm278, %v1606, 0
    %1611 = vmatprep.subr.mxu0 0.0
    %1612 = vmatpush1.msra.mxu0 %v1224
    %1613 = vmatprep.subr.mxu0 0.0
    %1614 = vmatpush1.msra.mxu0 %v1225
    %1615 = vmatprep.subr.mxu0 0.0
    %1616 = vmatpush1.msra.mxu0 %v1226
    %1617 = vmatprep.subr.mxu0 0.0
    %1618 = vmatpush1.msra.mxu0 %v1227
    %1619 = vmatprep.subr.mxu0 0.0
    %1620 = vmatpush1.msra.mxu0 0.0
    %1621 = vmatprep.subr.mxu0 0.0
    %1622 = vmatpush1.msra.mxu0 0.0
    %1623 = vmatprep.subr.mxu0 0.0
    %1624 = vmatpush1.msra.mxu0 0.0
    %1625 = vmatprep.subr.mxu0 0.0
    %1626 = vmatpush1.msra.mxu0 0.0
    %1627 = vmatprep.subr.mxu0 0.0
    %1628 = vmatpush1.msra.mxu0 0.0
    %1629 = vmatprep.subr.mxu0 0.0
    %1630 = vmatpush1.msra.mxu0 0.0
    %1631 = vmatprep.subr.mxu0 0.0
    %1632 = vmatpush1.msra.mxu0 0.0
    %1633 = vmatprep.subr.mxu0 0.0
    %1634 = vmatpush1.msra.mxu0 0.0
    %1635 = vmatprep.subr.mxu0 0.0
    %1636 = vmatpush1.msra.mxu0 0.0
    %1637 = vmatprep.subr.mxu0 0.0
    %1638 = vmatpush1.msra.mxu0 0.0
    %1639 = vmatprep.subr.mxu0 0.0
    %1640 = vmatpush1.msra.mxu0 0.0
    %1641 = vmatprep.subr.mxu0 0.0
    %1642 = vmatpush1.msra.mxu0 0.0
    %1643 = vmatprep.subr.mxu0 0.0
    %1644 = vmatpush1.msra.mxu0 0.0
    %1645 = vmatprep.subr.mxu0 0.0
    %1646 = vmatpush1.msra.mxu0 0.0
    %1647 = vmatprep.subr.mxu0 0.0
    %1648 = vmatpush1.msra.mxu0 0.0
    %1649 = vmatprep.subr.mxu0 0.0
    %1650 = vmatpush1.msra.mxu0 0.0
    %1651 = vmatprep.subr.mxu0 0.0
    %1652 = vmatpush1.msra.mxu0 0.0
    %1653 = vmatprep.subr.mxu0 0.0
    %1654 = vmatpush1.msra.mxu0 0.0
    %1655 = vmatprep.subr.mxu0 0.0
    %1656 = vmatpush1.msra.mxu0 0.0
    %1657 = vmatprep.subr.mxu0 0.0
    %1658 = vmatpush1.msra.mxu0 0.0
    %1659 = vmatprep.subr.mxu0 0.0
    %1660 = vmatpush1.msra.mxu0 0.0
    %1661 = vmatprep.subr.mxu0 0.0
    %1662 = vmatpush1.msra.mxu0 0.0
    %1663 = vmatprep.subr.mxu0 0.0
    %1664 = vmatpush1.msra.mxu0 0.0
    %1665 = vmatprep.subr.mxu0 0.0
    %1666 = vmatpush1.msra.mxu0 0.0
    %1667 = vmatprep.subr.mxu0 0.0
    %1668 = vmatpush1.msra.mxu0 0.0
    %1669 = vmatprep.subr.mxu0 0.0
    %1670 = vmatpush1.msra.mxu0 0.0
    %1671 = vmatprep.subr.mxu0 0.0
    %1672 = vmatpush1.msra.mxu0 0.0
    %1673 = vmatprep.subr.mxu0 0.0
    %1674 = vmatpush1.msra.mxu0 0.0
    %1675 = vmatprep.mubr.f32.mxu0 0.0
    %1676 = vmatmul.mubr.f32.gmra.mrb[0].mxu0 %v1609
    %v1677 = vpop.f32.mrb[0].mxu0
    %v1678 = vadd.f32 0.0, %v1677
    %v1679 = vpop.f32.mrb[0].mxu0
    %1680 = vdwg.mxu0
    %v1681 = vadd.f32 %v1607, %v1678
    %v1682 = vxor.u32 %v1681, 2147483648
    %v1683 = vmul.f32 %v1682, 1.442695
    %v1684 = vpow.pop %v1683
    %v1685 = vadd.f32 %v1684, 1.0
    %v1686 = vrcp.pop %v1685
    %v1687 = vmul.f32 1.0, %v1686
    %v1688 = vtanh.pop %v1681
    %v1689 = vsel %vm118, %v1688, %v1687
    %1690 = vrot.lane.b32.xlu0 %v1689, 64
    %v1691 = vpop.permute.xlu0 %1690
    %v1692 = vmul.f32 %v1689, %v1691
    %1693 = vrot.lane.b32.xlu0 %v1602, 32
    %v1694 = vpop.permute.xlu0 %1693
    %v1695 = vmul.f32 %v1689, %v1694
    %1696 = vrot.lane.b32.xlu0 %v1695, 96
    %v1697 = vpop.permute.xlu0 %1696
    %v1698 = vadd.f32 %v1692, %v1697
    %1699 = vrot.lane.b32.xlu0 %v1689, 32
    %v1700 = vpop.permute.xlu0 %1699
    %v1701 = vtanh.pop %v1698
    %v1702 = vmul.f32 %v1700, %v1701
    %v1703 = vld [vmem:[%s771] sm:$0xff]
    %v1705 = vsel %vm278, %v1702, 0
    %1707 = vmatprep.subr.mxu0 0.0
    %1708 = vmatpush1.msra.mxu0 %v1224
    %1709 = vmatprep.subr.mxu0 0.0
    %1710 = vmatpush1.msra.mxu0 %v1225
    %1711 = vmatprep.subr.mxu0 0.0
    %1712 = vmatpush1.msra.mxu0 %v1226
    %1713 = vmatprep.subr.mxu0 0.0
    %1714 = vmatpush1.msra.mxu0 %v1227
    %1715 = vmatprep.subr.mxu0 0.0
    %1716 = vmatpush1.msra.mxu0 0.0
    %1717 = vmatprep.subr.mxu0 0.0
    %1718 = vmatpush1.msra.mxu0 0.0
    %1719 = vmatprep.subr.mxu0 0.0
    %1720 = vmatpush1.msra.mxu0 0.0
    %1721 = vmatprep.subr.mxu0 0.0
    %1722 = vmatpush1.msra.mxu0 0.0
    %1723 = vmatprep.subr.mxu0 0.0
    %1724 = vmatpush1.msra.mxu0 0.0
    %1725 = vmatprep.subr.mxu0 0.0
    %1726 = vmatpush1.msra.mxu0 0.0
    %1727 = vmatprep.subr.mxu0 0.0
    %1728 = vmatpush1.msra.mxu0 0.0
    %1729 = vmatprep.subr.mxu0 0.0
    %1730 = vmatpush1.msra.mxu0 0.0
    %1731 = vmatprep.subr.mxu0 0.0
    %1732 = vmatpush1.msra.mxu0 0.0
    %1733 = vmatprep.subr.mxu0 0.0
    %1734 = vmatpush1.msra.mxu0 0.0
    %1735 = vmatprep.subr.mxu0 0.0
    %1736 = vmatpush1.msra.mxu0 0.0
    %1737 = vmatprep.subr.mxu0 0.0
    %1738 = vmatpush1.msra.mxu0 0.0
    %1739 = vmatprep.subr.mxu0 0.0
    %1740 = vmatpush1.msra.mxu0 0.0
    %1741 = vmatprep.subr.mxu0 0.0
    %1742 = vmatpush1.msra.mxu0 0.0
    %1743 = vmatprep.subr.mxu0 0.0
    %1744 = vmatpush1.msra.mxu0 0.0
    %1745 = vmatprep.subr.mxu0 0.0
    %1746 = vmatpush1.msra.mxu0 0.0
    %1747 = vmatprep.subr.mxu0 0.0
    %1748 = vmatpush1.msra.mxu0 0.0
    %1749 = vmatprep.subr.mxu0 0.0
    %1750 = vmatpush1.msra.mxu0 0.0
    %1751 = vmatprep.subr.mxu0 0.0
    %1752 = vmatpush1.msra.mxu0 0.0
    %1753 = vmatprep.subr.mxu0 0.0
    %1754 = vmatpush1.msra.mxu0 0.0
    %1755 = vmatprep.subr.mxu0 0.0
    %1756 = vmatpush1.msra.mxu0 0.0
    %1757 = vmatprep.subr.mxu0 0.0
    %1758 = vmatpush1.msra.mxu0 0.0
    %1759 = vmatprep.subr.mxu0 0.0
    %1760 = vmatpush1.msra.mxu0 0.0
    %1761 = vmatprep.subr.mxu0 0.0
    %1762 = vmatpush1.msra.mxu0 0.0
    %1763 = vmatprep.subr.mxu0 0.0
    %1764 = vmatpush1.msra.mxu0 0.0
    %1765 = vmatprep.subr.mxu0 0.0
    %1766 = vmatpush1.msra.mxu0 0.0
    %1767 = vmatprep.subr.mxu0 0.0
    %1768 = vmatpush1.msra.mxu0 0.0
    %1769 = vmatprep.subr.mxu0 0.0
    %1770 = vmatpush1.msra.mxu0 0.0
    %1771 = vmatprep.mubr.f32.mxu0 0.0
    %1772 = vmatmul.mubr.f32.gmra.mrb[0].mxu0 %v1705
    %v1773 = vpop.f32.mrb[0].mxu0
    %v1774 = vadd.f32 0.0, %v1773
    %v1775 = vpop.f32.mrb[0].mxu0
    %1776 = vdwg.mxu0
    %v1777 = vadd.f32 %v1703, %v1774
    %v1778 = vxor.u32 %v1777, 2147483648
    %v1779 = vmul.f32 %v1778, 1.442695
    %v1780 = vpow.pop %v1779
    %v1781 = vadd.f32 %v1780, 1.0
    %v1782 = vrcp.pop %v1781
    %v1783 = vmul.f32 1.0, %v1782
    %v1784 = vtanh.pop %v1777
    %v1785 = vsel %vm118, %v1784, %v1783
    %1786 = vrot.lane.b32.xlu0 %v1785, 64
    %v1787 = vpop.permute.xlu0 %1786
    %v1788 = vmul.f32 %v1785, %v1787
    %1789 = vrot.lane.b32.xlu0 %v1698, 32
    %v1790 = vpop.permute.xlu0 %1789
    %v1791 = vmul.f32 %v1785, %v1790
    %1792 = vrot.lane.b32.xlu0 %v1791, 96
    %v1793 = vpop.permute.xlu0 %1792
    %v1794 = vadd.f32 %v1788, %v1793
    %1795 = vrot.lane.b32.xlu0 %v1785, 32
    %v1796 = vpop.permute.xlu0 %1795
    %v1797 = vtanh.pop %v1794
    %v1798 = vmul.f32 %v1796, %v1797
    %v1799 = vld [vmem:[%s870] sm:$0xff]
    %v1801 = vsel %vm278, %v1798, 0
    %1803 = vmatprep.subr.mxu0 0.0
    %1804 = vmatpush1.msra.mxu0 %v1224
    %1805 = vmatprep.subr.mxu0 0.0
    %1806 = vmatpush1.msra.mxu0 %v1225
    %1807 = vmatprep.subr.mxu0 0.0
    %1808 = vmatpush1.msra.mxu0 %v1226
    %1809 = vmatprep.subr.mxu0 0.0
    %1810 = vmatpush1.msra.mxu0 %v1227
    %1811 = vmatprep.subr.mxu0 0.0
    %1812 = vmatpush1.msra.mxu0 0.0
    %1813 = vmatprep.subr.mxu0 0.0
    %1814 = vmatpush1.msra.mxu0 0.0
    %1815 = vmatprep.subr.mxu0 0.0
    %1816 = vmatpush1.msra.mxu0 0.0
    %1817 = vmatprep.subr.mxu0 0.0
    %1818 = vmatpush1.msra.mxu0 0.0
    %1819 = vmatprep.subr.mxu0 0.0
    %1820 = vmatpush1.msra.mxu0 0.0
    %1821 = vmatprep.subr.mxu0 0.0
    %1822 = vmatpush1.msra.mxu0 0.0
    %1823 = vmatprep.subr.mxu0 0.0
    %1824 = vmatpush1.msra.mxu0 0.0
    %1825 = vmatprep.subr.mxu0 0.0
    %1826 = vmatpush1.msra.mxu0 0.0
    %1827 = vmatprep.subr.mxu0 0.0
    %1828 = vmatpush1.msra.mxu0 0.0
    %1829 = vmatprep.subr.mxu0 0.0
    %1830 = vmatpush1.msra.mxu0 0.0
    %1831 = vmatprep.subr.mxu0 0.0
    %1832 = vmatpush1.msra.mxu0 0.0
    %1833 = vmatprep.subr.mxu0 0.0
    %1834 = vmatpush1.msra.mxu0 0.0
    %1835 = vmatprep.subr.mxu0 0.0
    %1836 = vmatpush1.msra.mxu0 0.0
    %1837 = vmatprep.subr.mxu0 0.0
    %1838 = vmatpush1.msra.mxu0 0.0
    %1839 = vmatprep.subr.mxu0 0.0
    %1840 = vmatpush1.msra.mxu0 0.0
    %1841 = vmatprep.subr.mxu0 0.0
    %1842 = vmatpush1.msra.mxu0 0.0
    %1843 = vmatprep.subr.mxu0 0.0
    %1844 = vmatpush1.msra.mxu0 0.0
    %1845 = vmatprep.subr.mxu0 0.0
    %1846 = vmatpush1.msra.mxu0 0.0
    %1847 = vmatprep.subr.mxu0 0.0
    %1848 = vmatpush1.msra.mxu0 0.0
    %1849 = vmatprep.subr.mxu0 0.0
    %1850 = vmatpush1.msra.mxu0 0.0
    %1851 = vmatprep.subr.mxu0 0.0
    %1852 = vmatpush1.msra.mxu0 0.0
    %1853 = vmatprep.subr.mxu0 0.0
    %1854 = vmatpush1.msra.mxu0 0.0
    %1855 = vmatprep.subr.mxu0 0.0
    %1856 = vmatpush1.msra.mxu0 0.0
    %1857 = vmatprep.subr.mxu0 0.0
    %1858 = vmatpush1.msra.mxu0 0.0
    %1859 = vmatprep.subr.mxu0 0.0
    %1860 = vmatpush1.msra.mxu0 0.0
    %1861 = vmatprep.subr.mxu0 0.0
    %1862 = vmatpush1.msra.mxu0 0.0
    %1863 = vmatprep.subr.mxu0 0.0
    %1864 = vmatpush1.msra.mxu0 0.0
    %1865 = vmatprep.subr.mxu0 0.0
    %1866 = vmatpush1.msra.mxu0 0.0
    %1867 = vmatprep.mubr.f32.mxu0 0.0
    %1868 = vmatmul.mubr.f32.gmra.mrb[0].mxu0 %v1801
    %v1869 = vpop.f32.mrb[0].mxu0
    %v1870 = vadd.f32 0.0, %v1869
    %v1871 = vpop.f32.mrb[0].mxu0
    %1872 = vdwg.mxu0
    %v1873 = vadd.f32 %v1799, %v1870
    %v1874 = vxor.u32 %v1873, 2147483648
    %v1875 = vmul.f32 %v1874, 1.442695
    %v1876 = vpow.pop %v1875
    %v1877 = vadd.f32 %v1876, 1.0
    %v1878 = vrcp.pop %v1877
    %v1879 = vmul.f32 1.0, %v1878
    %v1880 = vtanh.pop %v1873
    %v1881 = vsel %vm118, %v1880, %v1879
    %1882 = vrot.lane.b32.xlu0 %v1881, 64
    %v1883 = vpop.permute.xlu0 %1882
    %v1884 = vmul.f32 %v1881, %v1883
    %1885 = vrot.lane.b32.xlu0 %v1794, 32
    %v1886 = vpop.permute.xlu0 %1885
    %v1887 = vmul.f32 %v1881, %v1886
    %1888 = vrot.lane.b32.xlu0 %v1887, 96
    %v1889 = vpop.permute.xlu0 %1888
    %v1890 = vadd.f32 %v1884, %v1889
    %1891 = vrot.lane.b32.xlu0 %v1881, 32
    %v1892 = vpop.permute.xlu0 %1891
    %v1893 = vtanh.pop %v1890
    %v1894 = vmul.f32 %v1892, %v1893
    %v1895 = vld [vmem:[%s969] sm:$0xff]
    %v1897 = vsel %vm278, %v1894, 0
    %1899 = vmatprep.subr.mxu0 0.0
    %1900 = vmatpush1.msra.mxu0 %v1224
    %1901 = vmatprep.subr.mxu0 0.0
    %1902 = vmatpush1.msra.mxu0 %v1225
    %1903 = vmatprep.subr.mxu0 0.0
    %1904 = vmatpush1.msra.mxu0 %v1226
    %1905 = vmatprep.subr.mxu0 0.0
    %1906 = vmatpush1.msra.mxu0 %v1227
    %1907 = vmatprep.subr.mxu0 0.0
    %1908 = vmatpush1.msra.mxu0 0.0
    %1909 = vmatprep.subr.mxu0 0.0
    %1910 = vmatpush1.msra.mxu0 0.0
    %1911 = vmatprep.subr.mxu0 0.0
    %1912 = vmatpush1.msra.mxu0 0.0
    %1913 = vmatprep.subr.mxu0 0.0
    %1914 = vmatpush1.msra.mxu0 0.0
    %1915 = vmatprep.subr.mxu0 0.0
    %1916 = vmatpush1.msra.mxu0 0.0
    %1917 = vmatprep.subr.mxu0 0.0
    %1918 = vmatpush1.msra.mxu0 0.0
    %1919 = vmatprep.subr.mxu0 0.0
    %1920 = vmatpush1.msra.mxu0 0.0
    %1921 = vmatprep.subr.mxu0 0.0
    %1922 = vmatpush1.msra.mxu0 0.0
    %1923 = vmatprep.subr.mxu0 0.0
    %1924 = vmatpush1.msra.mxu0 0.0
    %1925 = vmatprep.subr.mxu0 0.0
    %1926 = vmatpush1.msra.mxu0 0.0
    %1927 = vmatprep.subr.mxu0 0.0
    %1928 = vmatpush1.msra.mxu0 0.0
    %1929 = vmatprep.subr.mxu0 0.0
    %1930 = vmatpush1.msra.mxu0 0.0
    %1931 = vmatprep.subr.mxu0 0.0
    %1932 = vmatpush1.msra.mxu0 0.0
    %1933 = vmatprep.subr.mxu0 0.0
    %1934 = vmatpush1.msra.mxu0 0.0
    %1935 = vmatprep.subr.mxu0 0.0
    %1936 = vmatpush1.msra.mxu0 0.0
    %1937 = vmatprep.subr.mxu0 0.0
    %1938 = vmatpush1.msra.mxu0 0.0
    %1939 = vmatprep.subr.mxu0 0.0
    %1940 = vmatpush1.msra.mxu0 0.0
    %1941 = vmatprep.subr.mxu0 0.0
    %1942 = vmatpush1.msra.mxu0 0.0
    %1943 = vmatprep.subr.mxu0 0.0
    %1944 = vmatpush1.msra.mxu0 0.0
    %1945 = vmatprep.subr.mxu0 0.0
    %1946 = vmatpush1.msra.mxu0 0.0
    %1947 = vmatprep.subr.mxu0 0.0
    %1948 = vmatpush1.msra.mxu0 0.0
    %1949 = vmatprep.subr.mxu0 0.0
    %1950 = vmatpush1.msra.mxu0 0.0
    %1951 = vmatprep.subr.mxu0 0.0
    %1952 = vmatpush1.msra.mxu0 0.0
    %1953 = vmatprep.subr.mxu0 0.0
    %1954 = vmatpush1.msra.mxu0 0.0
    %1955 = vmatprep.subr.mxu0 0.0
    %1956 = vmatpush1.msra.mxu0 0.0
    %1957 = vmatprep.subr.mxu0 0.0
    %1958 = vmatpush1.msra.mxu0 0.0
    %1959 = vmatprep.subr.mxu0 0.0
    %1960 = vmatpush1.msra.mxu0 0.0
    %1961 = vmatprep.subr.mxu0 0.0
    %1962 = vmatpush1.msra.mxu0 0.0
    %1963 = vmatprep.mubr.f32.mxu0 0.0
    %1964 = vmatmul.mubr.f32.gmra.mrb[0].mxu0 %v1897
    %v1965 = vpop.f32.mrb[0].mxu0
    %v1966 = vadd.f32 0.0, %v1965
    %v1967 = vpop.f32.mrb[0].mxu0
    %1968 = vdwg.mxu0
    %v1969 = vadd.f32 %v1895, %v1966
    %v1970 = vxor.u32 %v1969, 2147483648
    %v1971 = vmul.f32 %v1970, 1.442695
    %v1972 = vpow.pop %v1971
    %v1973 = vadd.f32 %v1972, 1.0
    %v1974 = vrcp.pop %v1973
    %v1975 = vmul.f32 1.0, %v1974
    %v1976 = vtanh.pop %v1969
    %v1977 = vsel %vm118, %v1976, %v1975
    %1978 = vrot.lane.b32.xlu0 %v1977, 64
    %v1979 = vpop.permute.xlu0 %1978
    %v1980 = vmul.f32 %v1977, %v1979
    %1981 = vrot.lane.b32.xlu0 %v1890, 32
    %v1982 = vpop.permute.xlu0 %1981
    %v1983 = vmul.f32 %v1977, %v1982
    %1984 = vrot.lane.b32.xlu0 %v1983, 96
    %v1985 = vpop.permute.xlu0 %1984
    %v1986 = vadd.f32 %v1980, %v1985
    %1987 = vrot.lane.b32.xlu0 %v1977, 32
    %v1988 = vpop.permute.xlu0 %1987
    %v1989 = vtanh.pop %v1986
    %v1990 = vmul.f32 %v1988, %v1989
    %v1991 = vld [vmem:[%s8] sm:$0x1]
    %v1993 = vlaneseq
    %v1994 = vshrl.u32 %v1993, 7
    %v1995 = vsub.s32 0, %v1994
    %v1996 = vrot.slane %v1991, %v1995
    %v1998 = vld [vmem:[%s7] sm:$0xff]
    %v1999 = vld [vmem:[%s7 + $0x8] sm:$0xff]
    %v2000 = vld [vmem:[%s7 + $0x10] sm:$0xff]
    %v2001 = vld [vmem:[%s7 + $0x18] sm:$0xff]
    %v2003 = vsel %vm278, %v1065, 0
    %2005 = vmatprep.subr.mxu0 0.0
    %2006 = vmatpush1.msra.mxu0 %v1998
    %2007 = vmatprep.subr.mxu0 0.0
    %2008 = vmatpush1.msra.mxu0 %v1999
    %2009 = vmatprep.subr.mxu0 0.0
    %2010 = vmatpush1.msra.mxu0 %v2000
    %2011 = vmatprep.subr.mxu0 0.0
    %2012 = vmatpush1.msra.mxu0 %v2001
    %2013 = vmatprep.subr.mxu0 0.0
    %2014 = vmatpush1.msra.mxu0 0.0
    %2015 = vmatprep.subr.mxu0 0.0
    %2016 = vmatpush1.msra.mxu0 0.0
    %2017 = vmatprep.subr.mxu0 0.0
    %2018 = vmatpush1.msra.mxu0 0.0
    %2019 = vmatprep.subr.mxu0 0.0
    %2020 = vmatpush1.msra.mxu0 0.0
    %2021 = vmatprep.subr.mxu0 0.0
    %2022 = vmatpush1.msra.mxu0 0.0
    %2023 = vmatprep.subr.mxu0 0.0
    %2024 = vmatpush1.msra.mxu0 0.0
    %2025 = vmatprep.subr.mxu0 0.0
    %2026 = vmatpush1.msra.mxu0 0.0
    %2027 = vmatprep.subr.mxu0 0.0
    %2028 = vmatpush1.msra.mxu0 0.0
    %2029 = vmatprep.subr.mxu0 0.0
    %2030 = vmatpush1.msra.mxu0 0.0
    %2031 = vmatprep.subr.mxu0 0.0
    %2032 = vmatpush1.msra.mxu0 0.0
    %2033 = vmatprep.subr.mxu0 0.0
    %2034 = vmatpush1.msra.mxu0 0.0
    %2035 = vmatprep.subr.mxu0 0.0
    %2036 = vmatpush1.msra.mxu0 0.0
    %2037 = vmatprep.subr.mxu0 0.0
    %2038 = vmatpush1.msra.mxu0 0.0
    %2039 = vmatprep.subr.mxu0 0.0
    %2040 = vmatpush1.msra.mxu0 0.0
    %2041 = vmatprep.subr.mxu0 0.0
    %2042 = vmatpush1.msra.mxu0 0.0
    %2043 = vmatprep.subr.mxu0 0.0
    %2044 = vmatpush1.msra.mxu0 0.0
    %2045 = vmatprep.subr.mxu0 0.0
    %2046 = vmatpush1.msra.mxu0 0.0
    %2047 = vmatprep.subr.mxu0 0.0
    %2048 = vmatpush1.msra.mxu0 0.0
    %2049 = vmatprep.subr.mxu0 0.0
    %2050 = vmatpush1.msra.mxu0 0.0
    %2051 = vmatprep.subr.mxu0 0.0
    %2052 = vmatpush1.msra.mxu0 0.0
    %2053 = vmatprep.subr.mxu0 0.0
    %2054 = vmatpush1.msra.mxu0 0.0
    %2055 = vmatprep.subr.mxu0 0.0
    %2056 = vmatpush1.msra.mxu0 0.0
    %2057 = vmatprep.subr.mxu0 0.0
    %2058 = vmatpush1.msra.mxu0 0.0
    %2059 = vmatprep.subr.mxu0 0.0
    %2060 = vmatpush1.msra.mxu0 0.0
    %2061 = vmatprep.subr.mxu0 0.0
    %2062 = vmatpush1.msra.mxu0 0.0
    %2063 = vmatprep.subr.mxu0 0.0
    %2064 = vmatpush1.msra.mxu0 0.0
    %2065 = vmatprep.subr.mxu0 0.0
    %2066 = vmatpush1.msra.mxu0 0.0
    %2067 = vmatprep.subr.mxu0 0.0
    %2068 = vmatpush1.msra.mxu0 0.0
    %2069 = vmatprep.mubr.f32.mxu0 0.0
    %2070 = vmatmul.mubr.f32.gmra.mrb[0].mxu0 %v2003
    %v2071 = vpop.f32.mrb[0].mxu0
    %v2072 = vadd.f32 0.0, %v2071
    %v2073 = vpop.f32.mrb[0].mxu0
    %2074 = vdwg.mxu0
    %v2075 = vadd.f32 %v1996, %v2072
    %v2076 = vxor.u32 %v2075, 2147483648
    %v2077 = vmul.f32 %v2076, 1.442695
    %v2078 = vpow.pop %v2077
    %v2079 = vadd.f32 %v2078, 1.0
    %v2080 = vrcp.pop %v2079
    %v2081 = vmul.f32 1.0, %v2080
    %v2082 = vtanh.pop %v2075
    %v2083 = vsel %vm118, %v2082, %v2081
    %2084 = vrot.lane.b32.xlu0 %v2083, 64
    %v2085 = vpop.permute.xlu0 %2084
    %v2086 = vmul.f32 %v2083, %v2085
    %2087 = vrot.lane.b32.xlu0 %v1061, 32
    %v2088 = vpop.permute.xlu0 %2087
    %v2089 = vmul.f32 %v2083, %v2088
    %2090 = vrot.lane.b32.xlu0 %v2089, 96
    %v2091 = vpop.permute.xlu0 %2090
    %v2092 = vadd.f32 %v2086, %v2091
    %2093 = vrot.lane.b32.xlu0 %v2083, 32
    %v2094 = vpop.permute.xlu0 %2093
    %v2095 = vtanh.pop %v2092
    %v2096 = vmul.f32 %v2094, %v2095
    %2097 = vst.msk [vmem:[#allocation3] sm:$0xff] %vm278, %v2096
    %v2099 = vsel %vm278, %v2096, 0
    %2101 = vmatprep.subr.mxu0 0.0
    %2102 = vmatpush1.msra.mxu0 %v1998
    %2103 = vmatprep.subr.mxu0 0.0
    %2104 = vmatpush1.msra.mxu0 %v1999
    %2105 = vmatprep.subr.mxu0 0.0
    %2106 = vmatpush1.msra.mxu0 %v2000
    %2107 = vmatprep.subr.mxu0 0.0
    %2108 = vmatpush1.msra.mxu0 %v2001
    %2109 = vmatprep.subr.mxu0 0.0
    %2110 = vmatpush1.msra.mxu0 0.0
    %2111 = vmatprep.subr.mxu0 0.0
    %2112 = vmatpush1.msra.mxu0 0.0
    %2113 = vmatprep.subr.mxu0 0.0
    %2114 = vmatpush1.msra.mxu0 0.0
    %2115 = vmatprep.subr.mxu0 0.0
    %2116 = vmatpush1.msra.mxu0 0.0
    %2117 = vmatprep.subr.mxu0 0.0
    %2118 = vmatpush1.msra.mxu0 0.0
    %2119 = vmatprep.subr.mxu0 0.0
    %2120 = vmatpush1.msra.mxu0 0.0
    %2121 = vmatprep.subr.mxu0 0.0
    %2122 = vmatpush1.msra.mxu0 0.0
    %2123 = vmatprep.subr.mxu0 0.0
    %2124 = vmatpush1.msra.mxu0 0.0
    %2125 = vmatprep.subr.mxu0 0.0
    %2126 = vmatpush1.msra.mxu0 0.0
    %2127 = vmatprep.subr.mxu0 0.0
    %2128 = vmatpush1.msra.mxu0 0.0
    %2129 = vmatprep.subr.mxu0 0.0
    %2130 = vmatpush1.msra.mxu0 0.0
    %2131 = vmatprep.subr.mxu0 0.0
    %2132 = vmatpush1.msra.mxu0 0.0
    %2133 = vmatprep.subr.mxu0 0.0
    %2134 = vmatpush1.msra.mxu0 0.0
    %2135 = vmatprep.subr.mxu0 0.0
    %2136 = vmatpush1.msra.mxu0 0.0
    %2137 = vmatprep.subr.mxu0 0.0
    %2138 = vmatpush1.msra.mxu0 0.0
    %2139 = vmatprep.subr.mxu0 0.0
    %2140 = vmatpush1.msra.mxu0 0.0
    %2141 = vmatprep.subr.mxu0 0.0
    %2142 = vmatpush1.msra.mxu0 0.0
    %2143 = vmatprep.subr.mxu0 0.0
    %2144 = vmatpush1.msra.mxu0 0.0
    %2145 = vmatprep.subr.mxu0 0.0
    %2146 = vmatpush1.msra.mxu0 0.0
    %2147 = vmatprep.subr.mxu0 0.0
    %2148 = vmatpush1.msra.mxu0 0.0
    %2149 = vmatprep.subr.mxu0 0.0
    %2150 = vmatpush1.msra.mxu0 0.0
    %2151 = vmatprep.subr.mxu0 0.0
    %2152 = vmatpush1.msra.mxu0 0.0
    %2153 = vmatprep.subr.mxu0 0.0
    %2154 = vmatpush1.msra.mxu0 0.0
    %2155 = vmatprep.subr.mxu0 0.0
    %2156 = vmatpush1.msra.mxu0 0.0
    %2157 = vmatprep.subr.mxu0 0.0
    %2158 = vmatpush1.msra.mxu0 0.0
    %2159 = vmatprep.subr.mxu0 0.0
    %2160 = vmatpush1.msra.mxu0 0.0
    %2161 = vmatprep.subr.mxu0 0.0
    %2162 = vmatpush1.msra.mxu0 0.0
    %2163 = vmatprep.subr.mxu0 0.0
    %2164 = vmatpush1.msra.mxu0 0.0
    %2165 = vmatprep.mubr.f32.mxu0 0.0
    %2166 = vmatmul.mubr.f32.gmra.mrb[0].mxu0 %v2099
    %v2167 = vpop.f32.mrb[0].mxu0
    %v2168 = vadd.f32 0.0, %v2167
    %v2169 = vpop.f32.mrb[0].mxu0
    %2170 = vdwg.mxu0
    %v2171 = vadd.f32 %v1996, %v2168
    %v2172 = vxor.u32 %v2171, 2147483648
    %v2173 = vmul.f32 %v2172, 1.442695
    %v2174 = vpow.pop %v2173
    %v2175 = vadd.f32 %v2174, 1.0
    %v2176 = vrcp.pop %v2175
    %v2177 = vmul.f32 1.0, %v2176
    %v2178 = vtanh.pop %v2171
    %v2179 = vsel %vm118, %v2178, %v2177
    %2180 = vrot.lane.b32.xlu0 %v2179, 64
    %v2181 = vpop.permute.xlu0 %2180
    %v2182 = vmul.f32 %v2179, %v2181
    %2183 = vrot.lane.b32.xlu0 %v2092, 32
    %v2184 = vpop.permute.xlu0 %2183
    %v2185 = vmul.f32 %v2179, %v2184
    %2186 = vrot.lane.b32.xlu0 %v2185, 96
    %v2187 = vpop.permute.xlu0 %2186
    %v2188 = vadd.f32 %v2182, %v2187
    %2189 = vrot.lane.b32.xlu0 %v2179, 32
    %v2190 = vpop.permute.xlu0 %2189
    %v2191 = vtanh.pop %v2188
    %v2192 = vmul.f32 %v2190, %v2191
    %2193 = vst.msk [vmem:[%s472] sm:$0xff] %vm278, %v2192
    %v2195 = vsel %vm278, %v2192, 0
    %2197 = vmatprep.subr.mxu0 0.0
    %2198 = vmatpush1.msra.mxu0 %v1998
    %2199 = vmatprep.subr.mxu0 0.0
    %2200 = vmatpush1.msra.mxu0 %v1999
    %2201 = vmatprep.subr.mxu0 0.0
    %2202 = vmatpush1.msra.mxu0 %v2000
    %2203 = vmatprep.subr.mxu0 0.0
    %2204 = vmatpush1.msra.mxu0 %v2001
    %2205 = vmatprep.subr.mxu0 0.0
    %2206 = vmatpush1.msra.mxu0 0.0
    %2207 = vmatprep.subr.mxu0 0.0
    %2208 = vmatpush1.msra.mxu0 0.0
    %2209 = vmatprep.subr.mxu0 0.0
    %2210 = vmatpush1.msra.mxu0 0.0
    %2211 = vmatprep.subr.mxu0 0.0
    %2212 = vmatpush1.msra.mxu0 0.0
    %2213 = vmatprep.subr.mxu0 0.0
    %2214 = vmatpush1.msra.mxu0 0.0
    %2215 = vmatprep.subr.mxu0 0.0
    %2216 = vmatpush1.msra.mxu0 0.0
    %2217 = vmatprep.subr.mxu0 0.0
    %2218 = vmatpush1.msra.mxu0 0.0
    %2219 = vmatprep.subr.mxu0 0.0
    %2220 = vmatpush1.msra.mxu0 0.0
    %2221 = vmatprep.subr.mxu0 0.0
    %2222 = vmatpush1.msra.mxu0 0.0
    %2223 = vmatprep.subr.mxu0 0.0
    %2224 = vmatpush1.msra.mxu0 0.0
    %2225 = vmatprep.subr.mxu0 0.0
    %2226 = vmatpush1.msra.mxu0 0.0
    %2227 = vmatprep.subr.mxu0 0.0
    %2228 = vmatpush1.msra.mxu0 0.0
    %2229 = vmatprep.subr.mxu0 0.0
    %2230 = vmatpush1.msra.mxu0 0.0
    %2231 = vmatprep.subr.mxu0 0.0
    %2232 = vmatpush1.msra.mxu0 0.0
    %2233 = vmatprep.subr.mxu0 0.0
    %2234 = vmatpush1.msra.mxu0 0.0
    %2235 = vmatprep.subr.mxu0 0.0
    %2236 = vmatpush1.msra.mxu0 0.0
    %2237 = vmatprep.subr.mxu0 0.0
    %2238 = vmatpush1.msra.mxu0 0.0
    %2239 = vmatprep.subr.mxu0 0.0
    %2240 = vmatpush1.msra.mxu0 0.0
    %2241 = vmatprep.subr.mxu0 0.0
    %2242 = vmatpush1.msra.mxu0 0.0
    %2243 = vmatprep.subr.mxu0 0.0
    %2244 = vmatpush1.msra.mxu0 0.0
    %2245 = vmatprep.subr.mxu0 0.0
    %2246 = vmatpush1.msra.mxu0 0.0
    %2247 = vmatprep.subr.mxu0 0.0
    %2248 = vmatpush1.msra.mxu0 0.0
    %2249 = vmatprep.subr.mxu0 0.0
    %2250 = vmatpush1.msra.mxu0 0.0
    %2251 = vmatprep.subr.mxu0 0.0
    %2252 = vmatpush1.msra.mxu0 0.0
    %2253 = vmatprep.subr.mxu0 0.0
    %2254 = vmatpush1.msra.mxu0 0.0
    %2255 = vmatprep.subr.mxu0 0.0
    %2256 = vmatpush1.msra.mxu0 0.0
    %2257 = vmatprep.subr.mxu0 0.0
    %2258 = vmatpush1.msra.mxu0 0.0
    %2259 = vmatprep.subr.mxu0 0.0
    %2260 = vmatpush1.msra.mxu0 0.0
    %2261 = vmatprep.mubr.f32.mxu0 0.0
    %2262 = vmatmul.mubr.f32.gmra.mrb[0].mxu0 %v2195
    %v2263 = vpop.f32.mrb[0].mxu0
    %v2264 = vadd.f32 0.0, %v2263
    %v2265 = vpop.f32.mrb[0].mxu0
    %2266 = vdwg.mxu0
    %v2267 = vadd.f32 %v1996, %v2264
    %v2268 = vxor.u32 %v2267, 2147483648
    %v2269 = vmul.f32 %v2268, 1.442695
    %v2270 = vpow.pop %v2269
    %v2271 = vadd.f32 %v2270, 1.0
    %v2272 = vrcp.pop %v2271
    %v2273 = vmul.f32 1.0, %v2272
    %v2274 = vtanh.pop %v2267
    %v2275 = vsel %vm118, %v2274, %v2273
    %2276 = vrot.lane.b32.xlu0 %v2275, 64
    %v2277 = vpop.permute.xlu0 %2276
    %v2278 = vmul.f32 %v2275, %v2277
    %2279 = vrot.lane.b32.xlu0 %v2188, 32
    %v2280 = vpop.permute.xlu0 %2279
    %v2281 = vmul.f32 %v2275, %v2280
    %2282 = vrot.lane.b32.xlu0 %v2281, 96
    %v2283 = vpop.permute.xlu0 %2282
    %v2284 = vadd.f32 %v2278, %v2283
    %2285 = vrot.lane.b32.xlu0 %v2275, 32
    %v2286 = vpop.permute.xlu0 %2285
    %v2287 = vtanh.pop %v2284
    %v2288 = vmul.f32 %v2286, %v2287
    %2289 = vst.msk [vmem:[%s571] sm:$0xff] %vm278, %v2288
    %v2291 = vsel %vm278, %v2288, 0
    %2293 = vmatprep.subr.mxu0 0.0
    %2294 = vmatpush1.msra.mxu0 %v1998
    %2295 = vmatprep.subr.mxu0 0.0
    %2296 = vmatpush1.msra.mxu0 %v1999
    %2297 = vmatprep.subr.mxu0 0.0
    %2298 = vmatpush1.msra.mxu0 %v2000
    %2299 = vmatprep.subr.mxu0 0.0
    %2300 = vmatpush1.msra.mxu0 %v2001
    %2301 = vmatprep.subr.mxu0 0.0
    %2302 = vmatpush1.msra.mxu0 0.0
    %2303 = vmatprep.subr.mxu0 0.0
    %2304 = vmatpush1.msra.mxu0 0.0
    %2305 = vmatprep.subr.mxu0 0.0
    %2306 = vmatpush1.msra.mxu0 0.0
    %2307 = vmatprep.subr.mxu0 0.0
    %2308 = vmatpush1.msra.mxu0 0.0
    %2309 = vmatprep.subr.mxu0 0.0
    %2310 = vmatpush1.msra.mxu0 0.0
    %2311 = vmatprep.subr.mxu0 0.0
    %2312 = vmatpush1.msra.mxu0 0.0
    %2313 = vmatprep.subr.mxu0 0.0
    %2314 = vmatpush1.msra.mxu0 0.0
    %2315 = vmatprep.subr.mxu0 0.0
    %2316 = vmatpush1.msra.mxu0 0.0
    %2317 = vmatprep.subr.mxu0 0.0
    %2318 = vmatpush1.msra.mxu0 0.0
    %2319 = vmatprep.subr.mxu0 0.0
    %2320 = vmatpush1.msra.mxu0 0.0
    %2321 = vmatprep.subr.mxu0 0.0
    %2322 = vmatpush1.msra.mxu0 0.0
    %2323 = vmatprep.subr.mxu0 0.0
    %2324 = vmatpush1.msra.mxu0 0.0
    %2325 = vmatprep.subr.mxu0 0.0
    %2326 = vmatpush1.msra.mxu0 0.0
    %2327 = vmatprep.subr.mxu0 0.0
    %2328 = vmatpush1.msra.mxu0 0.0
    %2329 = vmatprep.subr.mxu0 0.0
    %2330 = vmatpush1.msra.mxu0 0.0
    %2331 = vmatprep.subr.mxu0 0.0
    %2332 = vmatpush1.msra.mxu0 0.0
    %2333 = vmatprep.subr.mxu0 0.0
    %2334 = vmatpush1.msra.mxu0 0.0
    %2335 = vmatprep.subr.mxu0 0.0
    %2336 = vmatpush1.msra.mxu0 0.0
    %2337 = vmatprep.subr.mxu0 0.0
    %2338 = vmatpush1.msra.mxu0 0.0
    %2339 = vmatprep.subr.mxu0 0.0
    %2340 = vmatpush1.msra.mxu0 0.0
    %2341 = vmatprep.subr.mxu0 0.0
    %2342 = vmatpush1.msra.mxu0 0.0
    %2343 = vmatprep.subr.mxu0 0.0
    %2344 = vmatpush1.msra.mxu0 0.0
    %2345 = vmatprep.subr.mxu0 0.0
    %2346 = vmatpush1.msra.mxu0 0.0
    %2347 = vmatprep.subr.mxu0 0.0
    %2348 = vmatpush1.msra.mxu0 0.0
    %2349 = vmatprep.subr.mxu0 0.0
    %2350 = vmatpush1.msra.mxu0 0.0
    %2351 = vmatprep.subr.mxu0 0.0
    %2352 = vmatpush1.msra.mxu0 0.0
    %2353 = vmatprep.subr.mxu0 0.0
    %2354 = vmatpush1.msra.mxu0 0.0
    %2355 = vmatprep.subr.mxu0 0.0
    %2356 = vmatpush1.msra.mxu0 0.0
    %2357 = vmatprep.mubr.f32.mxu0 0.0
    %2358 = vmatmul.mubr.f32.gmra.mrb[0].mxu0 %v2291
    %v2359 = vpop.f32.mrb[0].mxu0
    %v2360 = vadd.f32 0.0, %v2359
    %v2361 = vpop.f32.mrb[0].mxu0
    %2362 = vdwg.mxu0
    %v2363 = vadd.f32 %v1996, %v2360
    %v2364 = vxor.u32 %v2363, 2147483648
    %v2365 = vmul.f32 %v2364, 1.442695
    %v2366 = vpow.pop %v2365
    %v2367 = vadd.f32 %v2366, 1.0
    %v2368 = vrcp.pop %v2367
    %v2369 = vmul.f32 1.0, %v2368
    %v2370 = vtanh.pop %v2363
    %v2371 = vsel %vm118, %v2370, %v2369
    %2372 = vrot.lane.b32.xlu0 %v2371, 64
    %v2373 = vpop.permute.xlu0 %2372
    %v2374 = vmul.f32 %v2371, %v2373
    %2375 = vrot.lane.b32.xlu0 %v2284, 32
    %v2376 = vpop.permute.xlu0 %2375
    %v2377 = vmul.f32 %v2371, %v2376
    %2378 = vrot.lane.b32.xlu0 %v2377, 96
    %v2379 = vpop.permute.xlu0 %2378
    %v2380 = vadd.f32 %v2374, %v2379
    %2381 = vrot.lane.b32.xlu0 %v2371, 32
    %v2382 = vpop.permute.xlu0 %2381
    %v2383 = vtanh.pop %v2380
    %v2384 = vmul.f32 %v2382, %v2383
    %2385 = vst.msk [vmem:[%s670] sm:$0xff] %vm278, %v2384
    %v2387 = vsel %vm278, %v2384, 0
    %2389 = vmatprep.subr.mxu0 0.0
    %2390 = vmatpush1.msra.mxu0 %v1998
    %2391 = vmatprep.subr.mxu0 0.0
    %2392 = vmatpush1.msra.mxu0 %v1999
    %2393 = vmatprep.subr.mxu0 0.0
    %2394 = vmatpush1.msra.mxu0 %v2000
    %2395 = vmatprep.subr.mxu0 0.0
    %2396 = vmatpush1.msra.mxu0 %v2001
    %2397 = vmatprep.subr.mxu0 0.0
    %2398 = vmatpush1.msra.mxu0 0.0
    %2399 = vmatprep.subr.mxu0 0.0
    %2400 = vmatpush1.msra.mxu0 0.0
    %2401 = vmatprep.subr.mxu0 0.0
    %2402 = vmatpush1.msra.mxu0 0.0
    %2403 = vmatprep.subr.mxu0 0.0
    %2404 = vmatpush1.msra.mxu0 0.0
    %2405 = vmatprep.subr.mxu0 0.0
    %2406 = vmatpush1.msra.mxu0 0.0
    %2407 = vmatprep.subr.mxu0 0.0
    %2408 = vmatpush1.msra.mxu0 0.0
    %2409 = vmatprep.subr.mxu0 0.0
    %2410 = vmatpush1.msra.mxu0 0.0
    %2411 = vmatprep.subr.mxu0 0.0
    %2412 = vmatpush1.msra.mxu0 0.0
    %2413 = vmatprep.subr.mxu0 0.0
    %2414 = vmatpush1.msra.mxu0 0.0
    %2415 = vmatprep.subr.mxu0 0.0
    %2416 = vmatpush1.msra.mxu0 0.0
    %2417 = vmatprep.subr.mxu0 0.0
    %2418 = vmatpush1.msra.mxu0 0.0
    %2419 = vmatprep.subr.mxu0 0.0
    %2420 = vmatpush1.msra.mxu0 0.0
    %2421 = vmatprep.subr.mxu0 0.0
    %2422 = vmatpush1.msra.mxu0 0.0
    %2423 = vmatprep.subr.mxu0 0.0
    %2424 = vmatpush1.msra.mxu0 0.0
    %2425 = vmatprep.subr.mxu0 0.0
    %2426 = vmatpush1.msra.mxu0 0.0
    %2427 = vmatprep.subr.mxu0 0.0
    %2428 = vmatpush1.msra.mxu0 0.0
    %2429 = vmatprep.subr.mxu0 0.0
    %2430 = vmatpush1.msra.mxu0 0.0
    %2431 = vmatprep.subr.mxu0 0.0
    %2432 = vmatpush1.msra.mxu0 0.0
    %2433 = vmatprep.subr.mxu0 0.0
    %2434 = vmatpush1.msra.mxu0 0.0
    %2435 = vmatprep.subr.mxu0 0.0
    %2436 = vmatpush1.msra.mxu0 0.0
    %2437 = vmatprep.subr.mxu0 0.0
    %2438 = vmatpush1.msra.mxu0 0.0
    %2439 = vmatprep.subr.mxu0 0.0
    %2440 = vmatpush1.msra.mxu0 0.0
    %2441 = vmatprep.subr.mxu0 0.0
    %2442 = vmatpush1.msra.mxu0 0.0
    %2443 = vmatprep.subr.mxu0 0.0
    %2444 = vmatpush1.msra.mxu0 0.0
    %2445 = vmatprep.subr.mxu0 0.0
    %2446 = vmatpush1.msra.mxu0 0.0
    %2447 = vmatprep.subr.mxu0 0.0
    %2448 = vmatpush1.msra.mxu0 0.0
    %2449 = vmatprep.subr.mxu0 0.0
    %2450 = vmatpush1.msra.mxu0 0.0
    %2451 = vmatprep.subr.mxu0 0.0
    %2452 = vmatpush1.msra.mxu0 0.0
    %2453 = vmatprep.mubr.f32.mxu0 0.0
    %2454 = vmatmul.mubr.f32.gmra.mrb[0].mxu0 %v2387
    %v2455 = vpop.f32.mrb[0].mxu0
    %v2456 = vadd.f32 0.0, %v2455
    %v2457 = vpop.f32.mrb[0].mxu0
    %2458 = vdwg.mxu0
    %v2459 = vadd.f32 %v1996, %v2456
    %v2460 = vxor.u32 %v2459, 2147483648
    %v2461 = vmul.f32 %v2460, 1.442695
    %v2462 = vpow.pop %v2461
    %v2463 = vadd.f32 %v2462, 1.0
    %v2464 = vrcp.pop %v2463
    %v2465 = vmul.f32 1.0, %v2464
    %v2466 = vtanh.pop %v2459
    %v2467 = vsel %vm118, %v2466, %v2465
    %2468 = vrot.lane.b32.xlu0 %v2467, 64
    %v2469 = vpop.permute.xlu0 %2468
    %v2470 = vmul.f32 %v2467, %v2469
    %2471 = vrot.lane.b32.xlu0 %v2380, 32
    %v2472 = vpop.permute.xlu0 %2471
    %v2473 = vmul.f32 %v2467, %v2472
    %2474 = vrot.lane.b32.xlu0 %v2473, 96
    %v2475 = vpop.permute.xlu0 %2474
    %v2476 = vadd.f32 %v2470, %v2475
    %2477 = vrot.lane.b32.xlu0 %v2467, 32
    %v2478 = vpop.permute.xlu0 %2477
    %v2479 = vtanh.pop %v2476
    %v2480 = vmul.f32 %v2478, %v2479
    %2481 = vst.msk [vmem:[%s769] sm:$0xff] %vm278, %v2480
    %v2482 = vld [vmem:[#allocation3] sm:$0xff]
    %v2483 = vld [vmem:[#allocation3 + $0x8] sm:$0xff]
    %v2484 = vld [vmem:[#allocation3 + $0x10] sm:$0xff]
    %v2485 = vld [vmem:[#allocation3 + $0x18] sm:$0xff]
    %v2486 = vld [vmem:[#allocation3 + $0x20] sm:$0xff]
    %v2487 = vld [vmem:[#allocation9] sm:$0xff]
    %v2488 = vld [vmem:[#allocation9 + $0x8] sm:$0xff]
    %v2489 = vld [vmem:[#allocation9 + $0x10] sm:$0xff]
    %v2490 = vld [vmem:[#allocation9 + $0x18] sm:$0xff]
    %v2491 = vld [vmem:[%s11] sm:$0x1]
    %v2493 = vlaneseq
    %v2494 = vshrl.u32 %v2493, 7
    %v2495 = vsub.s32 0, %v2494
    %v2496 = vrot.slane %v2491, %v2495
    %v2499 = vsel %vm278, %v2482, 0
    %v2502 = vsel %vm278, %v2483, 0
    %v2505 = vsel %vm278, %v2484, 0
    %v2508 = vsel %vm278, %v2485, 0
    %v2511 = vsel %vm278, %v2486, 0
    %2513 = vmatprep.subr.mxu0 0.0
    %2514 = vmatpush1.msra.mxu0 %v2487
    %2515 = vmatprep.subr.mxu0 0.0
    %2516 = vmatpush1.msra.mxu0 %v2488
    %2517 = vmatprep.subr.mxu0 0.0
    %2518 = vmatpush1.msra.mxu0 %v2489
    %2519 = vmatprep.subr.mxu0 0.0
    %2520 = vmatpush1.msra.mxu0 %v2490
    %2521 = vmatprep.subr.mxu0 0.0
    %2522 = vmatpush1.msra.mxu0 0.0
    %2523 = vmatprep.subr.mxu0 0.0
    %2524 = vmatpush1.msra.mxu0 0.0
    %2525 = vmatprep.subr.mxu0 0.0
    %2526 = vmatpush1.msra.mxu0 0.0
    %2527 = vmatprep.subr.mxu0 0.0
    %2528 = vmatpush1.msra.mxu0 0.0
    %2529 = vmatprep.subr.mxu0 0.0
    %2530 = vmatpush1.msra.mxu0 0.0
    %2531 = vmatprep.subr.mxu0 0.0
    %2532 = vmatpush1.msra.mxu0 0.0
    %2533 = vmatprep.subr.mxu0 0.0
    %2534 = vmatpush1.msra.mxu0 0.0
    %2535 = vmatprep.subr.mxu0 0.0
    %2536 = vmatpush1.msra.mxu0 0.0
    %2537 = vmatprep.subr.mxu0 0.0
    %2538 = vmatpush1.msra.mxu0 0.0
    %2539 = vmatprep.subr.mxu0 0.0
    %2540 = vmatpush1.msra.mxu0 0.0
    %2541 = vmatprep.subr.mxu0 0.0
    %2542 = vmatpush1.msra.mxu0 0.0
    %2543 = vmatprep.subr.mxu0 0.0
    %2544 = vmatpush1.msra.mxu0 0.0
    %2545 = vmatprep.subr.mxu0 0.0
    %2546 = vmatpush1.msra.mxu0 0.0
    %2547 = vmatprep.subr.mxu0 0.0
    %2548 = vmatpush1.msra.mxu0 0.0
    %2549 = vmatprep.subr.mxu0 0.0
    %2550 = vmatpush1.msra.mxu0 0.0
    %2551 = vmatprep.subr.mxu0 0.0
    %2552 = vmatpush1.msra.mxu0 0.0
    %2553 = vmatprep.subr.mxu0 0.0
    %2554 = vmatpush1.msra.mxu0 0.0
    %2555 = vmatprep.subr.mxu0 0.0
    %2556 = vmatpush1.msra.mxu0 0.0
    %2557 = vmatprep.subr.mxu0 0.0
    %2558 = vmatpush1.msra.mxu0 0.0
    %2559 = vmatprep.subr.mxu0 0.0
    %2560 = vmatpush1.msra.mxu0 0.0
    %2561 = vmatprep.subr.mxu0 0.0
    %2562 = vmatpush1.msra.mxu0 0.0
    %2563 = vmatprep.subr.mxu0 0.0
    %2564 = vmatpush1.msra.mxu0 0.0
    %2565 = vmatprep.subr.mxu0 0.0
    %2566 = vmatpush1.msra.mxu0 0.0
    %2567 = vmatprep.subr.mxu0 0.0
    %2568 = vmatpush1.msra.mxu0 0.0
    %2569 = vmatprep.subr.mxu0 0.0
    %2570 = vmatpush1.msra.mxu0 0.0
    %2571 = vmatprep.subr.mxu0 0.0
    %2572 = vmatpush1.msra.mxu0 0.0
    %2573 = vmatprep.subr.mxu0 0.0
    %2574 = vmatpush1.msra.mxu0 0.0
    %2575 = vmatprep.subr.mxu0 0.0
    %2576 = vmatpush1.msra.mxu0 0.0
    %2577 = vmatprep.mubr.f32.mxu0 0.0
    %2578 = vmatmul.mubr.f32.gmra.mrb[0].mxu0 %v2499
    %v2579 = vpop.f32.mrb[0].mxu0
    %v2580 = vadd.f32 %v2496, %v2579
    %v2581 = vpop.f32.mrb[0].mxu0
    %2582 = vmatprep.mubr.f32.mxu0 0.0
    %2583 = vmatmul.mubr.f32.gmra.mrb[0].mxu0 %v2502
    %v2584 = vpop.f32.mrb[0].mxu0
    %v2585 = vadd.f32 %v2496, %v2584
    %v2586 = vpop.f32.mrb[0].mxu0
    %2587 = vmatprep.mubr.f32.mxu0 0.0
    %2588 = vmatmul.mubr.f32.gmra.mrb[0].mxu0 %v2505
    %v2589 = vpop.f32.mrb[0].mxu0
    %v2590 = vadd.f32 %v2496, %v2589
    %v2591 = vpop.f32.mrb[0].mxu0
    %2592 = vmatprep.mubr.f32.mxu0 0.0
    %2593 = vmatmul.mubr.f32.gmra.mrb[0].mxu0 %v2508
    %v2594 = vpop.f32.mrb[0].mxu0
    %v2595 = vadd.f32 %v2496, %v2594
    %v2596 = vpop.f32.mrb[0].mxu0
    %2597 = vmatprep.mubr.f32.mxu0 0.0
    %2598 = vmatmul.mubr.f32.gmra.mrb[0].mxu0 %v2511
    %v2599 = vpop.f32.mrb[0].mxu0
    %v2600 = vadd.f32 %v2496, %v2599
    %v2601 = vpop.f32.mrb[0].mxu0
    %2602 = vdwg.mxu0
    %2603 = vst [vmem:[#allocation2] sm:$0xff] %v2580
    %2604 = vst [vmem:[#allocation2 + $0x8] sm:$0xff] %v2585
    %2605 = vst [vmem:[#allocation2 + $0x10] sm:$0xff] %v2590
    %2606 = vst [vmem:[#allocation2 + $0x18] sm:$0xff] %v2595
    %2607 = vst [vmem:[#allocation2 + $0x20] sm:$0xff] %v2600
    %v2608 = vld [vmem:[#allocation10] sm:$0xff]
    %v2609 = vld [vmem:[#allocation10 + $0x8] sm:$0xff]
    %v2610 = vld [vmem:[#allocation10 + $0x10] sm:$0xff]
    %v2611 = vld [vmem:[#allocation10 + $0x18] sm:$0xff]
    %v2612 = vld [vmem:[#allocation2] sm:$0xff]
    %v2614 = vsel %vm278, %v1990, 0
    %2616 = vmatprep.subr.mxu0 0.0
    %2617 = vmatpush1.msra.mxu0 %v2608
    %2618 = vmatprep.subr.mxu0 0.0
    %2619 = vmatpush1.msra.mxu0 %v2609
    %2620 = vmatprep.subr.mxu0 0.0
    %2621 = vmatpush1.msra.mxu0 %v2610
    %2622 = vmatprep.subr.mxu0 0.0
    %2623 = vmatpush1.msra.mxu0 %v2611
    %2624 = vmatprep.subr.mxu0 0.0
    %2625 = vmatpush1.msra.mxu0 0.0
    %2626 = vmatprep.subr.mxu0 0.0
    %2627 = vmatpush1.msra.mxu0 0.0
    %2628 = vmatprep.subr.mxu0 0.0
    %2629 = vmatpush1.msra.mxu0 0.0
    %2630 = vmatprep.subr.mxu0 0.0
    %2631 = vmatpush1.msra.mxu0 0.0
    %2632 = vmatprep.subr.mxu0 0.0
    %2633 = vmatpush1.msra.mxu0 0.0
    %2634 = vmatprep.subr.mxu0 0.0
    %2635 = vmatpush1.msra.mxu0 0.0
    %2636 = vmatprep.subr.mxu0 0.0
    %2637 = vmatpush1.msra.mxu0 0.0
    %2638 = vmatprep.subr.mxu0 0.0
    %2639 = vmatpush1.msra.mxu0 0.0
    %2640 = vmatprep.subr.mxu0 0.0
    %2641 = vmatpush1.msra.mxu0 0.0
    %2642 = vmatprep.subr.mxu0 0.0
    %2643 = vmatpush1.msra.mxu0 0.0
    %2644 = vmatprep.subr.mxu0 0.0
    %2645 = vmatpush1.msra.mxu0 0.0
    %2646 = vmatprep.subr.mxu0 0.0
    %2647 = vmatpush1.msra.mxu0 0.0
    %2648 = vmatprep.subr.mxu0 0.0
    %2649 = vmatpush1.msra.mxu0 0.0
    %2650 = vmatprep.subr.mxu0 0.0
    %2651 = vmatpush1.msra.mxu0 0.0
    %2652 = vmatprep.subr.mxu0 0.0
    %2653 = vmatpush1.msra.mxu0 0.0
    %2654 = vmatprep.subr.mxu0 0.0
    %2655 = vmatpush1.msra.mxu0 0.0
    %2656 = vmatprep.subr.mxu0 0.0
    %2657 = vmatpush1.msra.mxu0 0.0
    %2658 = vmatprep.subr.mxu0 0.0
    %2659 = vmatpush1.msra.mxu0 0.0
    %2660 = vmatprep.subr.mxu0 0.0
    %2661 = vmatpush1.msra.mxu0 0.0
    %2662 = vmatprep.subr.mxu0 0.0
    %2663 = vmatpush1.msra.mxu0 0.0
    %2664 = vmatprep.subr.mxu0 0.0
    %2665 = vmatpush1.msra.mxu0 0.0
    %2666 = vmatprep.subr.mxu0 0.0
    %2667 = vmatpush1.msra.mxu0 0.0
    %2668 = vmatprep.subr.mxu0 0.0
    %2669 = vmatpush1.msra.mxu0 0.0
    %2670 = vmatprep.subr.mxu0 0.0
    %2671 = vmatpush1.msra.mxu0 0.0
    %2672 = vmatprep.subr.mxu0 0.0
    %2673 = vmatpush1.msra.mxu0 0.0
    %2674 = vmatprep.subr.mxu0 0.0
    %2675 = vmatpush1.msra.mxu0 0.0
    %2676 = vmatprep.subr.mxu0 0.0
    %2677 = vmatpush1.msra.mxu0 0.0
    %2678 = vmatprep.subr.mxu0 0.0
    %2679 = vmatpush1.msra.mxu0 0.0
    %2680 = vmatprep.mubr.f32.mxu0 0.0
    %2681 = vmatmul.mubr.f32.gmra.mrb[0].mxu0 %v2614
    %v2682 = vpop.f32.mrb[0].mxu0
    %v2683 = vadd.f32 0.0, %v2682
    %v2684 = vpop.f32.mrb[0].mxu0
    %2685 = vdwg.mxu0
    %v2686 = vadd.f32 %v2612, %v2683
    %v2687 = vxor.u32 %v2686, 2147483648
    %v2688 = vmul.f32 %v2687, 1.442695
    %v2689 = vpow.pop %v2688
    %v2690 = vadd.f32 %v2689, 1.0
    %v2691 = vrcp.pop %v2690
    %v2692 = vmul.f32 1.0, %v2691
    %v2693 = vtanh.pop %v2686
    %v2694 = vsel %vm118, %v2693, %v2692
    %2695 = vrot.lane.b32.xlu0 %v2694, 64
    %v2696 = vpop.permute.xlu0 %2695
    %v2697 = vmul.f32 %v2694, %v2696
    %2698 = vrot.lane.b32.xlu0 %v1986, 32
    %v2699 = vpop.permute.xlu0 %2698
    %v2700 = vmul.f32 %v2694, %v2699
    %2701 = vrot.lane.b32.xlu0 %v2700, 96
    %v2702 = vpop.permute.xlu0 %2701
    %v2703 = vadd.f32 %v2697, %v2702
    %2704 = vrot.lane.b32.xlu0 %v2694, 32
    %v2705 = vpop.permute.xlu0 %2704
    %v2706 = vtanh.pop %v2703
    %v2707 = vmul.f32 %v2705, %v2706
    %2708 = vst.msk [vmem:[#allocation3] sm:$0xff] %vm278, %v2707
    %v2709 = vld [vmem:[%s375] sm:$0xff]
    %v2711 = vsel %vm278, %v2707, 0
    %2713 = vmatprep.subr.mxu0 0.0
    %2714 = vmatpush1.msra.mxu0 %v2608
    %2715 = vmatprep.subr.mxu0 0.0
    %2716 = vmatpush1.msra.mxu0 %v2609
    %2717 = vmatprep.subr.mxu0 0.0
    %2718 = vmatpush1.msra.mxu0 %v2610
    %2719 = vmatprep.subr.mxu0 0.0
    %2720 = vmatpush1.msra.mxu0 %v2611
    %2721 = vmatprep.subr.mxu0 0.0
    %2722 = vmatpush1.msra.mxu0 0.0
    %2723 = vmatprep.subr.mxu0 0.0
    %2724 = vmatpush1.msra.mxu0 0.0
    %2725 = vmatprep.subr.mxu0 0.0
    %2726 = vmatpush1.msra.mxu0 0.0
    %2727 = vmatprep.subr.mxu0 0.0
    %2728 = vmatpush1.msra.mxu0 0.0
    %2729 = vmatprep.subr.mxu0 0.0
    %2730 = vmatpush1.msra.mxu0 0.0
    %2731 = vmatprep.subr.mxu0 0.0
    %2732 = vmatpush1.msra.mxu0 0.0
    %2733 = vmatprep.subr.mxu0 0.0
    %2734 = vmatpush1.msra.mxu0 0.0
    %2735 = vmatprep.subr.mxu0 0.0
    %2736 = vmatpush1.msra.mxu0 0.0
    %2737 = vmatprep.subr.mxu0 0.0
    %2738 = vmatpush1.msra.mxu0 0.0
    %2739 = vmatprep.subr.mxu0 0.0
    %2740 = vmatpush1.msra.mxu0 0.0
    %2741 = vmatprep.subr.mxu0 0.0
    %2742 = vmatpush1.msra.mxu0 0.0
    %2743 = vmatprep.subr.mxu0 0.0
    %2744 = vmatpush1.msra.mxu0 0.0
    %2745 = vmatprep.subr.mxu0 0.0
    %2746 = vmatpush1.msra.mxu0 0.0
    %2747 = vmatprep.subr.mxu0 0.0
    %2748 = vmatpush1.msra.mxu0 0.0
    %2749 = vmatprep.subr.mxu0 0.0
    %2750 = vmatpush1.msra.mxu0 0.0
    %2751 = vmatprep.subr.mxu0 0.0
    %2752 = vmatpush1.msra.mxu0 0.0
    %2753 = vmatprep.subr.mxu0 0.0
    %2754 = vmatpush1.msra.mxu0 0.0
    %2755 = vmatprep.subr.mxu0 0.0
    %2756 = vmatpush1.msra.mxu0 0.0
    %2757 = vmatprep.subr.mxu0 0.0
    %2758 = vmatpush1.msra.mxu0 0.0
    %2759 = vmatprep.subr.mxu0 0.0
    %2760 = vmatpush1.msra.mxu0 0.0
    %2761 = vmatprep.subr.mxu0 0.0
    %2762 = vmatpush1.msra.mxu0 0.0
    %2763 = vmatprep.subr.mxu0 0.0
    %2764 = vmatpush1.msra.mxu0 0.0
    %2765 = vmatprep.subr.mxu0 0.0
    %2766 = vmatpush1.msra.mxu0 0.0
    %2767 = vmatprep.subr.mxu0 0.0
    %2768 = vmatpush1.msra.mxu0 0.0
    %2769 = vmatprep.subr.mxu0 0.0
    %2770 = vmatpush1.msra.mxu0 0.0
    %2771 = vmatprep.subr.mxu0 0.0
    %2772 = vmatpush1.msra.mxu0 0.0
    %2773 = vmatprep.subr.mxu0 0.0
    %2774 = vmatpush1.msra.mxu0 0.0
    %2775 = vmatprep.subr.mxu0 0.0
    %2776 = vmatpush1.msra.mxu0 0.0
    %2777 = vmatprep.mubr.f32.mxu0 0.0
    %2778 = vmatmul.mubr.f32.gmra.mrb[0].mxu0 %v2711
    %v2779 = vpop.f32.mrb[0].mxu0
    %v2780 = vadd.f32 0.0, %v2779
    %v2781 = vpop.f32.mrb[0].mxu0
    %2782 = vdwg.mxu0
    %v2783 = vadd.f32 %v2709, %v2780
    %v2784 = vxor.u32 %v2783, 2147483648
    %v2785 = vmul.f32 %v2784, 1.442695
    %v2786 = vpow.pop %v2785
    %v2787 = vadd.f32 %v2786, 1.0
    %v2788 = vrcp.pop %v2787
    %v2789 = vmul.f32 1.0, %v2788
    %v2790 = vtanh.pop %v2783
    %v2791 = vsel %vm118, %v2790, %v2789
    %2792 = vrot.lane.b32.xlu0 %v2791, 64
    %v2793 = vpop.permute.xlu0 %2792
    %v2794 = vmul.f32 %v2791, %v2793
    %2795 = vrot.lane.b32.xlu0 %v2703, 32
    %v2796 = vpop.permute.xlu0 %2795
    %v2797 = vmul.f32 %v2791, %v2796
    %2798 = vrot.lane.b32.xlu0 %v2797, 96
    %v2799 = vpop.permute.xlu0 %2798
    %v2800 = vadd.f32 %v2794, %v2799
    %2801 = vrot.lane.b32.xlu0 %v2791, 32
    %v2802 = vpop.permute.xlu0 %2801
    %v2803 = vtanh.pop %v2800
    %v2804 = vmul.f32 %v2802, %v2803
    %2805 = vst.msk [vmem:[%s472] sm:$0xff] %vm278, %v2804
    %v2806 = vld [vmem:[%s474] sm:$0xff]
    %v2808 = vsel %vm278, %v2804, 0
    %2810 = vmatprep.subr.mxu0 0.0
    %2811 = vmatpush1.msra.mxu0 %v2608
    %2812 = vmatprep.subr.mxu0 0.0
    %2813 = vmatpush1.msra.mxu0 %v2609
    %2814 = vmatprep.subr.mxu0 0.0
    %2815 = vmatpush1.msra.mxu0 %v2610
    %2816 = vmatprep.subr.mxu0 0.0
    %2817 = vmatpush1.msra.mxu0 %v2611
    %2818 = vmatprep.subr.mxu0 0.0
    %2819 = vmatpush1.msra.mxu0 0.0
    %2820 = vmatprep.subr.mxu0 0.0
    %2821 = vmatpush1.msra.mxu0 0.0
    %2822 = vmatprep.subr.mxu0 0.0
    %2823 = vmatpush1.msra.mxu0 0.0
    %2824 = vmatprep.subr.mxu0 0.0
    %2825 = vmatpush1.msra.mxu0 0.0
    %2826 = vmatprep.subr.mxu0 0.0
    %2827 = vmatpush1.msra.mxu0 0.0
    %2828 = vmatprep.subr.mxu0 0.0
    %2829 = vmatpush1.msra.mxu0 0.0
    %2830 = vmatprep.subr.mxu0 0.0
    %2831 = vmatpush1.msra.mxu0 0.0
    %2832 = vmatprep.subr.mxu0 0.0
    %2833 = vmatpush1.msra.mxu0 0.0
    %2834 = vmatprep.subr.mxu0 0.0
    %2835 = vmatpush1.msra.mxu0 0.0
    %2836 = vmatprep.subr.mxu0 0.0
    %2837 = vmatpush1.msra.mxu0 0.0
    %2838 = vmatprep.subr.mxu0 0.0
    %2839 = vmatpush1.msra.mxu0 0.0
    %2840 = vmatprep.subr.mxu0 0.0
    %2841 = vmatpush1.msra.mxu0 0.0
    %2842 = vmatprep.subr.mxu0 0.0
    %2843 = vmatpush1.msra.mxu0 0.0
    %2844 = vmatprep.subr.mxu0 0.0
    %2845 = vmatpush1.msra.mxu0 0.0
    %2846 = vmatprep.subr.mxu0 0.0
    %2847 = vmatpush1.msra.mxu0 0.0
    %2848 = vmatprep.subr.mxu0 0.0
    %2849 = vmatpush1.msra.mxu0 0.0
    %2850 = vmatprep.subr.mxu0 0.0
    %2851 = vmatpush1.msra.mxu0 0.0
    %2852 = vmatprep.subr.mxu0 0.0
    %2853 = vmatpush1.msra.mxu0 0.0
    %2854 = vmatprep.subr.mxu0 0.0
    %2855 = vmatpush1.msra.mxu0 0.0
    %2856 = vmatprep.subr.mxu0 0.0
    %2857 = vmatpush1.msra.mxu0 0.0
    %2858 = vmatprep.subr.mxu0 0.0
    %2859 = vmatpush1.msra.mxu0 0.0
    %2860 = vmatprep.subr.mxu0 0.0
    %2861 = vmatpush1.msra.mxu0 0.0
    %2862 = vmatprep.subr.mxu0 0.0
    %2863 = vmatpush1.msra.mxu0 0.0
    %2864 = vmatprep.subr.mxu0 0.0
    %2865 = vmatpush1.msra.mxu0 0.0
    %2866 = vmatprep.subr.mxu0 0.0
    %2867 = vmatpush1.msra.mxu0 0.0
    %2868 = vmatprep.subr.mxu0 0.0
    %2869 = vmatpush1.msra.mxu0 0.0
    %2870 = vmatprep.subr.mxu0 0.0
    %2871 = vmatpush1.msra.mxu0 0.0
    %2872 = vmatprep.subr.mxu0 0.0
    %2873 = vmatpush1.msra.mxu0 0.0
    %2874 = vmatprep.mubr.f32.mxu0 0.0
    %2875 = vmatmul.mubr.f32.gmra.mrb[0].mxu0 %v2808
    %v2876 = vpop.f32.mrb[0].mxu0
    %v2877 = vadd.f32 0.0, %v2876
    %v2878 = vpop.f32.mrb[0].mxu0
    %2879 = vdwg.mxu0
    %v2880 = vadd.f32 %v2806, %v2877
    %v2881 = vxor.u32 %v2880, 2147483648
    %v2882 = vmul.f32 %v2881, 1.442695
    %v2883 = vpow.pop %v2882
    %v2884 = vadd.f32 %v2883, 1.0
    %v2885 = vrcp.pop %v2884
    %v2886 = vmul.f32 1.0, %v2885
    %v2887 = vtanh.pop %v2880
    %v2888 = vsel %vm118, %v2887, %v2886
    %2889 = vrot.lane.b32.xlu0 %v2888, 64
    %v2890 = vpop.permute.xlu0 %2889
    %v2891 = vmul.f32 %v2888, %v2890
    %2892 = vrot.lane.b32.xlu0 %v2800, 32
    %v2893 = vpop.permute.xlu0 %2892
    %v2894 = vmul.f32 %v2888, %v2893
    %2895 = vrot.lane.b32.xlu0 %v2894, 96
    %v2896 = vpop.permute.xlu0 %2895
    %v2897 = vadd.f32 %v2891, %v2896
    %2898 = vrot.lane.b32.xlu0 %v2888, 32
    %v2899 = vpop.permute.xlu0 %2898
    %v2900 = vtanh.pop %v2897
    %v2901 = vmul.f32 %v2899, %v2900
    %2902 = vst.msk [vmem:[%s571] sm:$0xff] %vm278, %v2901
    %v2903 = vld [vmem:[%s573] sm:$0xff]
    %v2905 = vsel %vm278, %v2901, 0
    %2907 = vmatprep.subr.mxu0 0.0
    %2908 = vmatpush1.msra.mxu0 %v2608
    %2909 = vmatprep.subr.mxu0 0.0
    %2910 = vmatpush1.msra.mxu0 %v2609
    %2911 = vmatprep.subr.mxu0 0.0
    %2912 = vmatpush1.msra.mxu0 %v2610
    %2913 = vmatprep.subr.mxu0 0.0
    %2914 = vmatpush1.msra.mxu0 %v2611
    %2915 = vmatprep.subr.mxu0 0.0
    %2916 = vmatpush1.msra.mxu0 0.0
    %2917 = vmatprep.subr.mxu0 0.0
    %2918 = vmatpush1.msra.mxu0 0.0
    %2919 = vmatprep.subr.mxu0 0.0
    %2920 = vmatpush1.msra.mxu0 0.0
    %2921 = vmatprep.subr.mxu0 0.0
    %2922 = vmatpush1.msra.mxu0 0.0
    %2923 = vmatprep.subr.mxu0 0.0
    %2924 = vmatpush1.msra.mxu0 0.0
    %2925 = vmatprep.subr.mxu0 0.0
    %2926 = vmatpush1.msra.mxu0 0.0
    %2927 = vmatprep.subr.mxu0 0.0
    %2928 = vmatpush1.msra.mxu0 0.0
    %2929 = vmatprep.subr.mxu0 0.0
    %2930 = vmatpush1.msra.mxu0 0.0
    %2931 = vmatprep.subr.mxu0 0.0
    %2932 = vmatpush1.msra.mxu0 0.0
    %2933 = vmatprep.subr.mxu0 0.0
    %2934 = vmatpush1.msra.mxu0 0.0
    %2935 = vmatprep.subr.mxu0 0.0
    %2936 = vmatpush1.msra.mxu0 0.0
    %2937 = vmatprep.subr.mxu0 0.0
    %2938 = vmatpush1.msra.mxu0 0.0
    %2939 = vmatprep.subr.mxu0 0.0
    %2940 = vmatpush1.msra.mxu0 0.0
    %2941 = vmatprep.subr.mxu0 0.0
    %2942 = vmatpush1.msra.mxu0 0.0
    %2943 = vmatprep.subr.mxu0 0.0
    %2944 = vmatpush1.msra.mxu0 0.0
    %2945 = vmatprep.subr.mxu0 0.0
    %2946 = vmatpush1.msra.mxu0 0.0
    %2947 = vmatprep.subr.mxu0 0.0
    %2948 = vmatpush1.msra.mxu0 0.0
    %2949 = vmatprep.subr.mxu0 0.0
    %2950 = vmatpush1.msra.mxu0 0.0
    %2951 = vmatprep.subr.mxu0 0.0
    %2952 = vmatpush1.msra.mxu0 0.0
    %2953 = vmatprep.subr.mxu0 0.0
    %2954 = vmatpush1.msra.mxu0 0.0
    %2955 = vmatprep.subr.mxu0 0.0
    %2956 = vmatpush1.msra.mxu0 0.0
    %2957 = vmatprep.subr.mxu0 0.0
    %2958 = vmatpush1.msra.mxu0 0.0
    %2959 = vmatprep.subr.mxu0 0.0
    %2960 = vmatpush1.msra.mxu0 0.0
    %2961 = vmatprep.subr.mxu0 0.0
    %2962 = vmatpush1.msra.mxu0 0.0
    %2963 = vmatprep.subr.mxu0 0.0
    %2964 = vmatpush1.msra.mxu0 0.0
    %2965 = vmatprep.subr.mxu0 0.0
    %2966 = vmatpush1.msra.mxu0 0.0
    %2967 = vmatprep.subr.mxu0 0.0
    %2968 = vmatpush1.msra.mxu0 0.0
    %2969 = vmatprep.subr.mxu0 0.0
    %2970 = vmatpush1.msra.mxu0 0.0
    %2971 = vmatprep.mubr.f32.mxu0 0.0
    %2972 = vmatmul.mubr.f32.gmra.mrb[0].mxu0 %v2905
    %v2973 = vpop.f32.mrb[0].mxu0
    %v2974 = vadd.f32 0.0, %v2973
    %v2975 = vpop.f32.mrb[0].mxu0
    %2976 = vdwg.mxu0
    %v2977 = vadd.f32 %v2903, %v2974
    %v2978 = vxor.u32 %v2977, 2147483648
    %v2979 = vmul.f32 %v2978, 1.442695
    %v2980 = vpow.pop %v2979
    %v2981 = vadd.f32 %v2980, 1.0
    %v2982 = vrcp.pop %v2981
    %v2983 = vmul.f32 1.0, %v2982
    %v2984 = vtanh.pop %v2977
    %v2985 = vsel %vm118, %v2984, %v2983
    %2986 = vrot.lane.b32.xlu0 %v2985, 64
    %v2987 = vpop.permute.xlu0 %2986
    %v2988 = vmul.f32 %v2985, %v2987
    %2989 = vrot.lane.b32.xlu0 %v2897, 32
    %v2990 = vpop.permute.xlu0 %2989
    %v2991 = vmul.f32 %v2985, %v2990
    %2992 = vrot.lane.b32.xlu0 %v2991, 96
    %v2993 = vpop.permute.xlu0 %2992
    %v2994 = vadd.f32 %v2988, %v2993
    %2995 = vrot.lane.b32.xlu0 %v2985, 32
    %v2996 = vpop.permute.xlu0 %2995
    %v2997 = vtanh.pop %v2994
    %v2998 = vmul.f32 %v2996, %v2997
    %2999 = vst.msk [vmem:[%s670] sm:$0xff] %vm278, %v2998
    %v3000 = vld [vmem:[%s672] sm:$0xff]
    %v3002 = vsel %vm278, %v2998, 0
    %3004 = vmatprep.subr.mxu0 0.0
    %3005 = vmatpush1.msra.mxu0 %v2608
    %3006 = vmatprep.subr.mxu0 0.0
    %3007 = vmatpush1.msra.mxu0 %v2609
    %3008 = vmatprep.subr.mxu0 0.0
    %3009 = vmatpush1.msra.mxu0 %v2610
    %3010 = vmatprep.subr.mxu0 0.0
    %3011 = vmatpush1.msra.mxu0 %v2611
    %3012 = vmatprep.subr.mxu0 0.0
    %3013 = vmatpush1.msra.mxu0 0.0
    %3014 = vmatprep.subr.mxu0 0.0
    %3015 = vmatpush1.msra.mxu0 0.0
    %3016 = vmatprep.subr.mxu0 0.0
    %3017 = vmatpush1.msra.mxu0 0.0
    %3018 = vmatprep.subr.mxu0 0.0
    %3019 = vmatpush1.msra.mxu0 0.0
    %3020 = vmatprep.subr.mxu0 0.0
    %3021 = vmatpush1.msra.mxu0 0.0
    %3022 = vmatprep.subr.mxu0 0.0
    %3023 = vmatpush1.msra.mxu0 0.0
    %3024 = vmatprep.subr.mxu0 0.0
    %3025 = vmatpush1.msra.mxu0 0.0
    %3026 = vmatprep.subr.mxu0 0.0
    %3027 = vmatpush1.msra.mxu0 0.0
    %3028 = vmatprep.subr.mxu0 0.0
    %3029 = vmatpush1.msra.mxu0 0.0
    %3030 = vmatprep.subr.mxu0 0.0
    %3031 = vmatpush1.msra.mxu0 0.0
    %3032 = vmatprep.subr.mxu0 0.0
    %3033 = vmatpush1.msra.mxu0 0.0
    %3034 = vmatprep.subr.mxu0 0.0
    %3035 = vmatpush1.msra.mxu0 0.0
    %3036 = vmatprep.subr.mxu0 0.0
    %3037 = vmatpush1.msra.mxu0 0.0
    %3038 = vmatprep.subr.mxu0 0.0
    %3039 = vmatpush1.msra.mxu0 0.0
    %3040 = vmatprep.subr.mxu0 0.0
    %3041 = vmatpush1.msra.mxu0 0.0
    %3042 = vmatprep.subr.mxu0 0.0
    %3043 = vmatpush1.msra.mxu0 0.0
    %3044 = vmatprep.subr.mxu0 0.0
    %3045 = vmatpush1.msra.mxu0 0.0
    %3046 = vmatprep.subr.mxu0 0.0
    %3047 = vmatpush1.msra.mxu0 0.0
    %3048 = vmatprep.subr.mxu0 0.0
    %3049 = vmatpush1.msra.mxu0 0.0
    %3050 = vmatprep.subr.mxu0 0.0
    %3051 = vmatpush1.msra.mxu0 0.0
    %3052 = vmatprep.subr.mxu0 0.0
    %3053 = vmatpush1.msra.mxu0 0.0
    %3054 = vmatprep.subr.mxu0 0.0
    %3055 = vmatpush1.msra.mxu0 0.0
    %3056 = vmatprep.subr.mxu0 0.0
    %3057 = vmatpush1.msra.mxu0 0.0
    %3058 = vmatprep.subr.mxu0 0.0
    %3059 = vmatpush1.msra.mxu0 0.0
    %3060 = vmatprep.subr.mxu0 0.0
    %3061 = vmatpush1.msra.mxu0 0.0
    %3062 = vmatprep.subr.mxu0 0.0
    %3063 = vmatpush1.msra.mxu0 0.0
    %3064 = vmatprep.subr.mxu0 0.0
    %3065 = vmatpush1.msra.mxu0 0.0
    %3066 = vmatprep.subr.mxu0 0.0
    %3067 = vmatpush1.msra.mxu0 0.0
    %3068 = vmatprep.mubr.f32.mxu0 0.0
    %3069 = vmatmul.mubr.f32.gmra.mrb[0].mxu0 %v3002
    %v3070 = vpop.f32.mrb[0].mxu0
    %v3071 = vadd.f32 0.0, %v3070
    %v3072 = vpop.f32.mrb[0].mxu0
    %3073 = vdwg.mxu0
    %v3074 = vadd.f32 %v3000, %v3071
    %v3075 = vxor.u32 %v3074, 2147483648
    %v3076 = vmul.f32 %v3075, 1.442695
    %v3077 = vpow.pop %v3076
    %v3078 = vadd.f32 %v3077, 1.0
    %v3079 = vrcp.pop %v3078
    %v3080 = vmul.f32 1.0, %v3079
    %v3081 = vtanh.pop %v3074
    %v3082 = vsel %vm118, %v3081, %v3080
    %3083 = vrot.lane.b32.xlu0 %v3082, 64
    %v3084 = vpop.permute.xlu0 %3083
    %v3085 = vmul.f32 %v3082, %v3084
    %3086 = vrot.lane.b32.xlu0 %v2994, 32
    %v3087 = vpop.permute.xlu0 %3086
    %v3088 = vmul.f32 %v3082, %v3087
    %3089 = vrot.lane.b32.xlu0 %v3088, 96
    %v3090 = vpop.permute.xlu0 %3089
    %v3091 = vadd.f32 %v3085, %v3090
    %3092 = vrot.lane.b32.xlu0 %v3082, 32
    %v3093 = vpop.permute.xlu0 %3092
    %v3094 = vtanh.pop %v3091
    %v3095 = vmul.f32 %v3093, %v3094
    %3096 = vst.msk [vmem:[%s769] sm:$0xff] %vm278, %v3095
    %v3097 = vld [vmem:[#allocation3] sm:$0xff]
    %v3098 = vld [vmem:[#allocation3 + $0x8] sm:$0xff]
    %v3099 = vld [vmem:[#allocation3 + $0x10] sm:$0xff]
    %v3100 = vld [vmem:[#allocation3 + $0x18] sm:$0xff]
    %v3101 = vld [vmem:[#allocation3 + $0x20] sm:$0xff]
    %v3102 = vld [vmem:[#allocation12] sm:$0xff]
    %v3103 = vld [vmem:[#allocation12 + $0x8] sm:$0xff]
    %v3104 = vld [vmem:[#allocation12 + $0x10] sm:$0xff]
    %v3105 = vld [vmem:[#allocation12 + $0x18] sm:$0xff]
    %v3106 = vld [vmem:[%s13] sm:$0x1]
    %v3108 = vlaneseq
    %v3109 = vshrl.u32 %v3108, 7
    %v3110 = vsub.s32 0, %v3109
    %v3111 = vrot.slane %v3106, %v3110
    %v3114 = vsel %vm278, %v3097, 0
    %v3117 = vsel %vm278, %v3098, 0
    %v3120 = vsel %vm278, %v3099, 0
    %v3123 = vsel %vm278, %v3100, 0
    %v3126 = vsel %vm278, %v3101, 0
    %3128 = vmatprep.subr.mxu0 0.0
    %3129 = vmatpush1.msra.mxu0 %v3102
    %3130 = vmatprep.subr.mxu0 0.0
    %3131 = vmatpush1.msra.mxu0 %v3103
    %3132 = vmatprep.subr.mxu0 0.0
    %3133 = vmatpush1.msra.mxu0 %v3104
    %3134 = vmatprep.subr.mxu0 0.0
    %3135 = vmatpush1.msra.mxu0 %v3105
    %3136 = vmatprep.subr.mxu0 0.0
    %3137 = vmatpush1.msra.mxu0 0.0
    %3138 = vmatprep.subr.mxu0 0.0
    %3139 = vmatpush1.msra.mxu0 0.0
    %3140 = vmatprep.subr.mxu0 0.0
    %3141 = vmatpush1.msra.mxu0 0.0
    %3142 = vmatprep.subr.mxu0 0.0
    %3143 = vmatpush1.msra.mxu0 0.0
    %3144 = vmatprep.subr.mxu0 0.0
    %3145 = vmatpush1.msra.mxu0 0.0
    %3146 = vmatprep.subr.mxu0 0.0
    %3147 = vmatpush1.msra.mxu0 0.0
    %3148 = vmatprep.subr.mxu0 0.0
    %3149 = vmatpush1.msra.mxu0 0.0
    %3150 = vmatprep.subr.mxu0 0.0
    %3151 = vmatpush1.msra.mxu0 0.0
    %3152 = vmatprep.subr.mxu0 0.0
    %3153 = vmatpush1.msra.mxu0 0.0
    %3154 = vmatprep.subr.mxu0 0.0
    %3155 = vmatpush1.msra.mxu0 0.0
    %3156 = vmatprep.subr.mxu0 0.0
    %3157 = vmatpush1.msra.mxu0 0.0
    %3158 = vmatprep.subr.mxu0 0.0
    %3159 = vmatpush1.msra.mxu0 0.0
    %3160 = vmatprep.subr.mxu0 0.0
    %3161 = vmatpush1.msra.mxu0 0.0
    %3162 = vmatprep.subr.mxu0 0.0
    %3163 = vmatpush1.msra.mxu0 0.0
    %3164 = vmatprep.subr.mxu0 0.0
    %3165 = vmatpush1.msra.mxu0 0.0
    %3166 = vmatprep.subr.mxu0 0.0
    %3167 = vmatpush1.msra.mxu0 0.0
    %3168 = vmatprep.subr.mxu0 0.0
    %3169 = vmatpush1.msra.mxu0 0.0
    %3170 = vmatprep.subr.mxu0 0.0
    %3171 = vmatpush1.msra.mxu0 0.0
    %3172 = vmatprep.subr.mxu0 0.0
    %3173 = vmatpush1.msra.mxu0 0.0
    %3174 = vmatprep.subr.mxu0 0.0
    %3175 = vmatpush1.msra.mxu0 0.0
    %3176 = vmatprep.subr.mxu0 0.0
    %3177 = vmatpush1.msra.mxu0 0.0
    %3178 = vmatprep.subr.mxu0 0.0
    %3179 = vmatpush1.msra.mxu0 0.0
    %3180 = vmatprep.subr.mxu0 0.0
    %3181 = vmatpush1.msra.mxu0 0.0
    %3182 = vmatprep.subr.mxu0 0.0
    %3183 = vmatpush1.msra.mxu0 0.0
    %3184 = vmatprep.subr.mxu0 0.0
    %3185 = vmatpush1.msra.mxu0 0.0
    %3186 = vmatprep.subr.mxu0 0.0
    %3187 = vmatpush1.msra.mxu0 0.0
    %3188 = vmatprep.subr.mxu0 0.0
    %3189 = vmatpush1.msra.mxu0 0.0
    %3190 = vmatprep.subr.mxu0 0.0
    %3191 = vmatpush1.msra.mxu0 0.0
    %3192 = vmatprep.mubr.f32.mxu0 0.0
    %3193 = vmatmul.mubr.f32.gmra.mrb[0].mxu0 %v3114
    %v3194 = vpop.f32.mrb[0].mxu0
    %v3195 = vadd.f32 %v3111, %v3194
    %v3196 = vpop.f32.mrb[0].mxu0
    %3197 = vmatprep.mubr.f32.mxu0 0.0
    %3198 = vmatmul.mubr.f32.gmra.mrb[0].mxu0 %v3117
    %v3199 = vpop.f32.mrb[0].mxu0
    %v3200 = vadd.f32 %v3111, %v3199
    %v3201 = vpop.f32.mrb[0].mxu0
    %3202 = vmatprep.mubr.f32.mxu0 0.0
    %3203 = vmatmul.mubr.f32.gmra.mrb[0].mxu0 %v3120
    %v3204 = vpop.f32.mrb[0].mxu0
    %v3205 = vadd.f32 %v3111, %v3204
    %v3206 = vpop.f32.mrb[0].mxu0
    %3207 = vmatprep.mubr.f32.mxu0 0.0
    %3208 = vmatmul.mubr.f32.gmra.mrb[0].mxu0 %v3123
    %v3209 = vpop.f32.mrb[0].mxu0
    %v3210 = vadd.f32 %v3111, %v3209
    %v3211 = vpop.f32.mrb[0].mxu0
    %3212 = vmatprep.mubr.f32.mxu0 0.0
    %3213 = vmatmul.mubr.f32.gmra.mrb[0].mxu0 %v3126
    %v3214 = vpop.f32.mrb[0].mxu0
    %v3215 = vadd.f32 %v3111, %v3214
    %v3216 = vpop.f32.mrb[0].mxu0
    %3217 = vdwg.mxu0
    %3218 = vst [vmem:[#allocation13] sm:$0xff] %v3195
    %3219 = vst [vmem:[#allocation13 + $0x8] sm:$0xff] %v3200
    %3220 = vst [vmem:[#allocation13 + $0x10] sm:$0xff] %v3205
    %3221 = vst [vmem:[#allocation13 + $0x18] sm:$0xff] %v3210
    %3222 = vst [vmem:[#allocation13 + $0x20] sm:$0xff] %v3215
    // Predicated region
    $region78: #{tpu_custom_call.1} parent=1 // pred_check
      _
    $region79: #{tpu_custom_call.1} parent=1 // pred_check_branch
      %3224 = sbr.rel (0) target = $region81
    $region80: #{tpu_custom_call.1} parent=1 // pred_region
      %s3226 = ssub.s32 640, 640
      %3227 = vsyncadd [#allocation6], %s3226
      %s3228 = sshll.u32 [#allocation13], 4
      %s3229 = int_to_ptr.vmem [resolvable:$true] %s3228
      %3234 = dma.vmem_to_hbm [thread:$0]  %s3229, 640, %s14, [#allocation6], 128, 128, 8
    $region81: #{tpu_custom_call.1} parent=1 // pred_fallthru
      _
    // Predicated region
    $region82: #{tpu_custom_call.1} parent=1 // pred_check
      _
    $region83: #{tpu_custom_call.1} parent=1 // pred_check_branch
      %3236 = sbr.rel (0) target = $region85
    $region84: #{tpu_custom_call.1} parent=1 // pred_region
      %3237 = dma.done [#allocation6], 640
    $region85: #{tpu_custom_call.1} parent=1 // pred_fallthru
      _
    %3238 = vsyncpa [#allocation5], 1
    %3239 = vsyncpa [#allocation8], 1
    %3240 = vsyncpa [#allocation11], 1
    %3241 = vsyncpa [#allocation6], 1

</llo_original>
